<compile_context>
chip_gen: v7x
topology: tpu7x:2x2x1
jax: 0.10.0
libtpu: 0.0.40
codegen_flags: <defaults>
</compile_context>

<pallas_src>
import functools
import math

import jax
import jax.numpy as jnp
from jax.experimental import pallas as pl
from jax.experimental.pallas import tpu as pltpu


# ---------------------------------------------------------------------------
# Heterograph structure (static)
# ---------------------------------------------------------------------------
NT = ('MiRNA', 'Disease', 'Target')             # canonical node-type order
RELS = {                                        # relation -> (src, dst)
    'MvsD': ('MiRNA', 'Disease'), 'DvsM': ('Disease', 'MiRNA'),
    'MvsT': ('MiRNA', 'Target'),  'TvsM': ('Target', 'MiRNA'),
    'TvsD': ('Target', 'Disease'), 'DvsT': ('Disease', 'Target'),
}
REL_ORDER = tuple(RELS)
DST_RELS = {                                    # dst -> ((rel, src), (rel, src))
    'MiRNA':   (('DvsM', 'Disease'), ('TvsM', 'Target')),
    'Disease': (('MvsD', 'MiRNA'),   ('TvsD', 'Target')),
    'Target':  (('MvsT', 'MiRNA'),   ('DvsT', 'Disease')),
}


def _rup(x, m):
  return ((x + m - 1) // m) * m


def _pad2(a, rows, cols):
  r, c = a.shape
  return jnp.pad(a, ((0, rows - r), (0, cols - c)))


# ---------------------------------------------------------------------------
# Fused generator kernel
# ---------------------------------------------------------------------------
def make_generator_kernel(*, align_start, win):
  """Builds the fused kernel. Ref order must match generator_forward()."""

  def kernel(*refs):
    it = iter(refs)
    a = {r: next(it)[...] for r in REL_ORDER}            # 6 normalized adjacencies
    h_cur = {t: next(it)[...] for t in NT}               # 3 node-feature slabs
    conv = []
    for _ in range(3):                                   # 3 hetero conv layers
      w_rel = {r: next(it)[...] for r in REL_ORDER}      # 6 relation weights
      b_dst = {d: next(it)[...] for d in NT}             # 3 summed dst biases
      conv.append((w_rel, b_dst))
    adj_win = next(it)[...]                              # (win, I_pad)
    w0_adj = next(it)[...]                               # (I_pad, 256) bf16
    w0_fake = next(it)[...]                              # (O_pad, 256) bf16
    b0 = next(it)[...]                                   # (1, 256) f32
    mlp_tail = [(next(it)[...], next(it)[...]) for _ in range(3)]
    fake_ref = next(it)                                  # outputs
    x_ref = next(it)

    # ---- 3 HeteroGraphConv layers (aggregate='sum'); per-relation dots,
    #      no packing / slicing / concats, intermediates never leave VMEM ----
    for w_rel, b_dst in conv:
      new_h = {}
      for d in NT:
        acc = None
        for rel, s in DST_RELS[d]:
          z = jnp.dot(h_cur[s], w_rel[rel], preferred_element_type=jnp.float32)
          m = jnp.dot(a[rel], z, preferred_element_type=jnp.float32)
          acc = m if acc is None else acc + m
        new_h[d] = acc + b_dst[d]
      h_cur = new_h

    # ---- sublane-aligned MiRNA window + F.normalize(p=1, dim=1) (f32) ----
    window = h_cur['MiRNA'][align_start:align_start + win, :]
    denom = jnp.maximum(jnp.sum(jnp.abs(window), axis=1, keepdims=True), 1e-12)
    fake = window / denom
    fake_ref[...] = fake

    # ---- fused 4-layer MLP; split-K first layer (no lane-axis concat),
    #      bf16 MXU operands with f32 accumulation ----
    act = (jnp.dot(adj_win.astype(jnp.bfloat16), w0_adj,
                   preferred_element_type=jnp.float32)
           + jnp.dot(fake.astype(jnp.bfloat16), w0_fake,
                     preferred_element_type=jnp.float32)
           + b0)
    act = jnp.maximum(act, 0.0)
    for li, (w, b) in enumerate(mlp_tail):
      act = jnp.dot(act.astype(jnp.bfloat16), w,
                    preferred_element_type=jnp.float32) + b
      act = jnp.maximum(act, 0.0) if li < 2 else jax.nn.sigmoid(act)
    x_ref[...] = act

  return kernel


# ---------------------------------------------------------------------------
# Static-graph preprocessing (run ONCE, outside the per-step jit)
# ---------------------------------------------------------------------------
def preprocess_graph(adjs):
  """dgl GraphConv norm='both': D_in^-1/2 A D_out^-1/2, then pad to (8,8)."""
  out = {}
  for r, a in adjs.items():
    a = a.astype(jnp.float32)
    d_in = jnp.sum(a, axis=1)     # in-degree of dst nodes (rows)
    d_out = jnp.sum(a, axis=0)    # out-degree of src nodes (cols)
    n_in = jnp.where(d_in > 0, jax.lax.rsqrt(jnp.maximum(d_in, 1e-30)), 0.0)
    n_out = jnp.where(d_out > 0, jax.lax.rsqrt(jnp.maximum(d_out, 1e-30)), 0.0)
    a = n_in[:, None] * a * n_out[None, :]
    nd, ns = a.shape
    out[r] = jnp.pad(a, ((0, _rup(nd, 8) - nd), (0, _rup(ns, 8) - ns)))
  return out


# ---------------------------------------------------------------------------
# JAX-side packing + single pallas_call
# ---------------------------------------------------------------------------
def generator_forward(params, a_norm, h, Adj, *, size, leftIndex):
  feat_shape = h['MiRNA'].shape[1]
  hidden = params['conv1']['MvsD'][0].shape[1]
  out_feat = params['conv3']['MvsD'][0].shape[1]
  item_count = Adj.shape[1]
  n_mirna = h['MiRNA'].shape[0]
  assert 0 <= leftIndex and leftIndex + size <= n_mirna, (
      "MiRNA slice [leftIndex, leftIndex+size) is out of range")

  # Lane dims padded to 128, row counts to multiples of 8.
  F_pad = _rup(feat_shape, 128)
  H_pad = _rup(hidden, 128)
  O_pad = _rup(out_feat, 128)
  I_pad = _rup(item_count, 128)
  n_pad = {t: _rup(h[t].shape[0], 8) for t in NT}

  # Sublane-aligned MiRNA window containing [leftIndex, leftIndex+size).
  align_start = (leftIndex // 8) * 8
  offset = leftIndex - align_start
  win = _rup(offset + size, 8)          # always <= n_pad['MiRNA'] - align_start

  args = []
  # Pre-normalized, pre-padded adjacencies (graph is static across steps).
  for r in REL_ORDER:
    src, dst = RELS[r]
    adj = a_norm[r]
    assert adj.shape == (n_pad[dst], n_pad[src]), "adjacency/h shape mismatch"
    args.append(adj)
  # Node features (zero-padded; zero rows/cols contribute nothing).
  for t in NT:
    args.append(_pad2(h[t].astype(jnp.float32), n_pad[t], F_pad))
  # Conv weights per relation + per-destination summed biases.
  layer_dims = (('conv1', F_pad, H_pad), ('conv2', H_pad, H_pad),
                ('conv3', H_pad, O_pad))
  for lname, fip, fop in layer_dims:
    lp = params[lname]
    for r in REL_ORDER:
      args.append(_pad2(lp[r][0].astype(jnp.float32), fip, fop))
    for d in NT:
      (r1, _s1), (r2, _s2) = DST_RELS[d]
      args.append(_pad2((lp[r1][1] + lp[r2][1]).reshape(1, -1), 1, fop))
  # Adj placed at the window row offset so kernel rows line up with the
  # aligned MiRNA window; extra rows compute garbage and are cropped outside.
  args.append(jnp.pad(Adj.astype(jnp.float32),
                      ((offset, win - offset - size),
                       (0, I_pad - item_count))))
  # MLP weights: split-K first layer, bf16 operands, f32 biases.
  (w0, b0), (w1, b1), (w2, b2), (w3, b3) = params['mlp']
  args.append(_pad2(w0[:item_count, :], I_pad, 256).astype(jnp.bfloat16))
  args.append(_pad2(w0[item_count:, :], O_pad, 256).astype(jnp.bfloat16))
  args.append(b0.reshape(1, -1).astype(jnp.float32))
  args.append(w1.astype(jnp.bfloat16))
  args.append(b1.reshape(1, -1).astype(jnp.float32))
  args.append(w2.astype(jnp.bfloat16))
  args.append(b2.reshape(1, -1).astype(jnp.float32))
  args.append(_pad2(w3, 1024, I_pad).astype(jnp.bfloat16))
  args.append(_pad2(b3.reshape(1, -1), 1, I_pad).astype(jnp.float32))

  out_shape = (jax.ShapeDtypeStruct((win, O_pad), jnp.float32),
               jax.ShapeDtypeStruct((win, I_pad), jnp.float32))

  # Advisory cost estimate so XLA can overlap surrounding ops with this call.
  flops = 0
  for _lname, fip, fop in layer_dims:
    for r in REL_ORDER:
      s, d = RELS[r]
      flops += 2 * n_pad[s] * fip * fop        # h_src @ W_rel
      flops += 2 * n_pad[d] * n_pad[s] * fop   # A_rel @ z
  flops += 2 * win * (I_pad + O_pad) * 256
  flops += 2 * win * 256 * 512 + 2 * win * 512 * 1024 + 2 * win * 1024 * I_pad
  bytes_accessed = sum(math.prod(x.shape) * x.dtype.itemsize for x in args)
  bytes_accessed += win * (O_pad + I_pad) * 4
  cost = pl.CostEstimate(flops=int(flops), transcendentals=int(win * I_pad),
                         bytes_accessed=int(bytes_accessed))

  # Grid-less call: whole (small, padded) operands resident in VMEM, no
  # pointless double-buffering. Default scoped VMEM limit is ample here.
  vmem = pl.BlockSpec(memory_space=pltpu.MemorySpace.VMEM)
  kernel = make_generator_kernel(align_start=align_start, win=win)
  fake_p, x_p = pl.pallas_call(
      kernel,
      out_shape=out_shape,
      in_specs=[vmem] * len(args),
      out_specs=(vmem, vmem),
      cost_estimate=cost,
  )(*args)

  # Crop the sublane-aligned / lane-padded outputs back to user shapes.
  fake_embeding = fake_p[offset:offset + size, :out_feat]
  x = x_p[offset:offset + size, :item_count]
  return fake_embeding, x


# ---------------------------------------------------------------------------
# Deterministic parameter / input construction
# ---------------------------------------------------------------------------
def init_linear(key, fan_in, fan_out):
  limit = (6.0 / (fan_in + fan_out)) ** 0.5
  w = jax.random.uniform(key, (fan_in, fan_out), jnp.float32, -limit, limit)
  b = jnp.zeros((fan_out,), jnp.float32)
  return w, b


def init_params(key, itemCount, feat_shape, out_feat_shape):
  params = {}
  dims = [('conv1', feat_shape, 64), ('conv2', 64, 64),
          ('conv3', 64, out_feat_shape)]
  for name, fi, fo in dims:
    layer = {}
    for rel in RELS:
      key, sub = jax.random.split(key)
      layer[rel] = init_linear(sub, fi, fo)
    params[name] = layer
  mlp = []
  for fi, fo in [(itemCount + out_feat_shape, 256), (256, 512),
                 (512, 1024), (1024, itemCount)]:
    key, sub = jax.random.split(key)
    mlp.append(init_linear(sub, fi, fo))
  params['mlp'] = tuple(mlp)
  return params


if __name__ == "__main__":
  itemCount = 16
  feat_shape = 32
  out_feat_shape = 16
  n_nodes = {'MiRNA': 8, 'Disease': 8, 'Target': 8}
  size = 4
  leftIndex = 2

  root = jax.random.PRNGKey(0)
  k_params, k_graph, k_feat, k_adjmat = jax.random.split(root, 4)

  params = init_params(k_params, itemCount, feat_shape, out_feat_shape)

  # synthetic bipartite edges per relation (dense adjacency, dst x src)
  adjs = {}
  for i, (rel, (src, dst)) in enumerate(RELS.items()):
    sub = jax.random.fold_in(k_graph, i)
    adjs[rel] = jax.random.bernoulli(
        sub, 0.5, (n_nodes[dst], n_nodes[src])).astype(jnp.float32)

  # node input features h
  h = {}
  for i, (ntype, n) in enumerate(n_nodes.items()):
    sub = jax.random.fold_in(k_feat, i)
    h[ntype] = jax.random.normal(sub, (n, feat_shape), jnp.float32)

  # Adj rows for the current mini-batch (size x itemCount implicit ratings)
  Adj = jax.random.bernoulli(k_adjmat, 0.3, (size, itemCount)).astype(jnp.float32)

  # Static graph: degree-normalize + pad adjacencies ONCE, outside the jit.
  a_norm = preprocess_graph(adjs)

  fwd = jax.jit(functools.partial(generator_forward, size=size,
                                  leftIndex=leftIndex))
  fake_embeding, x = fwd(params, a_norm, h, Adj)
  jax.block_until_ready((fake_embeding, x))

  assert fake_embeding.shape == (size, out_feat_shape)
  assert x.shape == (size, itemCount)
  assert bool(jnp.all(jnp.isfinite(fake_embeding))) and bool(jnp.all(jnp.isfinite(x)))
  assert bool(jnp.all((x >= 0.0) & (x <= 1.0)))
  print("KERNEL_OK")
</pallas_src>

<mosaic_0001>
module attributes {stable_mosaic.version = 11 : i64} {
  func.func @kernel(%arg0: memref<8x8xf32, #tpu.memory_space<vmem>>, %arg1: memref<8x8xf32, #tpu.memory_space<vmem>>, %arg2: memref<8x8xf32, #tpu.memory_space<vmem>>, %arg3: memref<8x8xf32, #tpu.memory_space<vmem>>, %arg4: memref<8x8xf32, #tpu.memory_space<vmem>>, %arg5: memref<8x8xf32, #tpu.memory_space<vmem>>, %arg6: memref<8x128xf32, #tpu.memory_space<vmem>>, %arg7: memref<8x128xf32, #tpu.memory_space<vmem>>, %arg8: memref<8x128xf32, #tpu.memory_space<vmem>>, %arg9: memref<128x128xf32, #tpu.memory_space<vmem>>, %arg10: memref<128x128xf32, #tpu.memory_space<vmem>>, %arg11: memref<128x128xf32, #tpu.memory_space<vmem>>, %arg12: memref<128x128xf32, #tpu.memory_space<vmem>>, %arg13: memref<128x128xf32, #tpu.memory_space<vmem>>, %arg14: memref<128x128xf32, #tpu.memory_space<vmem>>, %arg15: memref<1x128xf32, #tpu.memory_space<vmem>>, %arg16: memref<1x128xf32, #tpu.memory_space<vmem>>, %arg17: memref<1x128xf32, #tpu.memory_space<vmem>>, %arg18: memref<128x128xf32, #tpu.memory_space<vmem>>, %arg19: memref<128x128xf32, #tpu.memory_space<vmem>>, %arg20: memref<128x128xf32, #tpu.memory_space<vmem>>, %arg21: memref<128x128xf32, #tpu.memory_space<vmem>>, %arg22: memref<128x128xf32, #tpu.memory_space<vmem>>, %arg23: memref<128x128xf32, #tpu.memory_space<vmem>>, %arg24: memref<1x128xf32, #tpu.memory_space<vmem>>, %arg25: memref<1x128xf32, #tpu.memory_space<vmem>>, %arg26: memref<1x128xf32, #tpu.memory_space<vmem>>, %arg27: memref<128x128xf32, #tpu.memory_space<vmem>>, %arg28: memref<128x128xf32, #tpu.memory_space<vmem>>, %arg29: memref<128x128xf32, #tpu.memory_space<vmem>>, %arg30: memref<128x128xf32, #tpu.memory_space<vmem>>, %arg31: memref<128x128xf32, #tpu.memory_space<vmem>>, %arg32: memref<128x128xf32, #tpu.memory_space<vmem>>, %arg33: memref<1x128xf32, #tpu.memory_space<vmem>>, %arg34: memref<1x128xf32, #tpu.memory_space<vmem>>, %arg35: memref<1x128xf32, #tpu.memory_space<vmem>>, %arg36: memref<8x128xf32, #tpu.memory_space<vmem>>, %arg37: memref<128x256xbf16, #tpu.memory_space<vmem>>, %arg38: memref<128x256xbf16, #tpu.memory_space<vmem>>, %arg39: memref<1x256xf32, #tpu.memory_space<vmem>>, %arg40: memref<256x512xbf16, #tpu.memory_space<vmem>>, %arg41: memref<1x512xf32, #tpu.memory_space<vmem>>, %arg42: memref<512x1024xbf16, #tpu.memory_space<vmem>>, %arg43: memref<1x1024xf32, #tpu.memory_space<vmem>>, %arg44: memref<1024x128xbf16, #tpu.memory_space<vmem>>, %arg45: memref<1x128xf32, #tpu.memory_space<vmem>>, %arg46: memref<8x128xf32, #tpu.memory_space<vmem>>, %arg47: memref<8x128xf32, #tpu.memory_space<vmem>>) attributes {dimension_semantics = [], scalar_prefetch = 0 : i64, scratch_operands = 0 : i64, tpu.core_type = #tpu.core_type<tc>} {
    %c0 = arith.constant 0 : index
    %c0_0 = arith.constant 0 : index
    %0 = vector.load %arg0[%c0, %c0_0] : memref<8x8xf32, #tpu.memory_space<vmem>>, vector<8x8xf32>
    %c0_1 = arith.constant 0 : index
    %c0_2 = arith.constant 0 : index
    %1 = vector.load %arg1[%c0_1, %c0_2] : memref<8x8xf32, #tpu.memory_space<vmem>>, vector<8x8xf32>
    %c0_3 = arith.constant 0 : index
    %c0_4 = arith.constant 0 : index
    %2 = vector.load %arg2[%c0_3, %c0_4] : memref<8x8xf32, #tpu.memory_space<vmem>>, vector<8x8xf32>
    %c0_5 = arith.constant 0 : index
    %c0_6 = arith.constant 0 : index
    %3 = vector.load %arg3[%c0_5, %c0_6] : memref<8x8xf32, #tpu.memory_space<vmem>>, vector<8x8xf32>
    %c0_7 = arith.constant 0 : index
    %c0_8 = arith.constant 0 : index
    %4 = vector.load %arg4[%c0_7, %c0_8] : memref<8x8xf32, #tpu.memory_space<vmem>>, vector<8x8xf32>
    %c0_9 = arith.constant 0 : index
    %c0_10 = arith.constant 0 : index
    %5 = vector.load %arg5[%c0_9, %c0_10] : memref<8x8xf32, #tpu.memory_space<vmem>>, vector<8x8xf32>
    %c0_11 = arith.constant 0 : index
    %c0_12 = arith.constant 0 : index
    %6 = vector.load %arg6[%c0_11, %c0_12] : memref<8x128xf32, #tpu.memory_space<vmem>>, vector<8x128xf32>
    %c0_13 = arith.constant 0 : index
    %c0_14 = arith.constant 0 : index
    %7 = vector.load %arg7[%c0_13, %c0_14] : memref<8x128xf32, #tpu.memory_space<vmem>>, vector<8x128xf32>
    %c0_15 = arith.constant 0 : index
    %c0_16 = arith.constant 0 : index
    %8 = vector.load %arg8[%c0_15, %c0_16] : memref<8x128xf32, #tpu.memory_space<vmem>>, vector<8x128xf32>
    %c0_17 = arith.constant 0 : index
    %c0_18 = arith.constant 0 : index
    %9 = vector.load %arg9[%c0_17, %c0_18] : memref<128x128xf32, #tpu.memory_space<vmem>>, vector<128x128xf32>
    %c0_19 = arith.constant 0 : index
    %c0_20 = arith.constant 0 : index
    %10 = vector.load %arg10[%c0_19, %c0_20] : memref<128x128xf32, #tpu.memory_space<vmem>>, vector<128x128xf32>
    %c0_21 = arith.constant 0 : index
    %c0_22 = arith.constant 0 : index
    %11 = vector.load %arg11[%c0_21, %c0_22] : memref<128x128xf32, #tpu.memory_space<vmem>>, vector<128x128xf32>
    %c0_23 = arith.constant 0 : index
    %c0_24 = arith.constant 0 : index
    %12 = vector.load %arg12[%c0_23, %c0_24] : memref<128x128xf32, #tpu.memory_space<vmem>>, vector<128x128xf32>
    %c0_25 = arith.constant 0 : index
    %c0_26 = arith.constant 0 : index
    %13 = vector.load %arg13[%c0_25, %c0_26] : memref<128x128xf32, #tpu.memory_space<vmem>>, vector<128x128xf32>
    %c0_27 = arith.constant 0 : index
    %c0_28 = arith.constant 0 : index
    %14 = vector.load %arg14[%c0_27, %c0_28] : memref<128x128xf32, #tpu.memory_space<vmem>>, vector<128x128xf32>
    %c0_29 = arith.constant 0 : index
    %c0_30 = arith.constant 0 : index
    %15 = vector.load %arg15[%c0_29, %c0_30] : memref<1x128xf32, #tpu.memory_space<vmem>>, vector<1x128xf32>
    %c0_31 = arith.constant 0 : index
    %c0_32 = arith.constant 0 : index
    %16 = vector.load %arg16[%c0_31, %c0_32] : memref<1x128xf32, #tpu.memory_space<vmem>>, vector<1x128xf32>
    %c0_33 = arith.constant 0 : index
    %c0_34 = arith.constant 0 : index
    %17 = vector.load %arg17[%c0_33, %c0_34] : memref<1x128xf32, #tpu.memory_space<vmem>>, vector<1x128xf32>
    %c0_35 = arith.constant 0 : index
    %c0_36 = arith.constant 0 : index
    %18 = vector.load %arg18[%c0_35, %c0_36] : memref<128x128xf32, #tpu.memory_space<vmem>>, vector<128x128xf32>
    %c0_37 = arith.constant 0 : index
    %c0_38 = arith.constant 0 : index
    %19 = vector.load %arg20[%c0_37, %c0_38] : memref<128x128xf32, #tpu.memory_space<vmem>>, vector<128x128xf32>
    %c0_39 = arith.constant 0 : index
    %c0_40 = arith.constant 0 : index
    %20 = vector.load %arg22[%c0_39, %c0_40] : memref<128x128xf32, #tpu.memory_space<vmem>>, vector<128x128xf32>
    %c0_41 = arith.constant 0 : index
    %c0_42 = arith.constant 0 : index
    %21 = vector.load %arg23[%c0_41, %c0_42] : memref<128x128xf32, #tpu.memory_space<vmem>>, vector<128x128xf32>
    %c0_43 = arith.constant 0 : index
    %c0_44 = arith.constant 0 : index
    %22 = vector.load %arg25[%c0_43, %c0_44] : memref<1x128xf32, #tpu.memory_space<vmem>>, vector<1x128xf32>
    %c0_45 = arith.constant 0 : index
    %c0_46 = arith.constant 0 : index
    %23 = vector.load %arg26[%c0_45, %c0_46] : memref<1x128xf32, #tpu.memory_space<vmem>>, vector<1x128xf32>
    %c0_47 = arith.constant 0 : index
    %c0_48 = arith.constant 0 : index
    %24 = vector.load %arg28[%c0_47, %c0_48] : memref<128x128xf32, #tpu.memory_space<vmem>>, vector<128x128xf32>
    %c0_49 = arith.constant 0 : index
    %c0_50 = arith.constant 0 : index
    %25 = vector.load %arg30[%c0_49, %c0_50] : memref<128x128xf32, #tpu.memory_space<vmem>>, vector<128x128xf32>
    %c0_51 = arith.constant 0 : index
    %c0_52 = arith.constant 0 : index
    %26 = vector.load %arg33[%c0_51, %c0_52] : memref<1x128xf32, #tpu.memory_space<vmem>>, vector<1x128xf32>
    %c0_53 = arith.constant 0 : index
    %c0_54 = arith.constant 0 : index
    %27 = vector.load %arg36[%c0_53, %c0_54] : memref<8x128xf32, #tpu.memory_space<vmem>>, vector<8x128xf32>
    %c0_55 = arith.constant 0 : index
    %c0_56 = arith.constant 0 : index
    %28 = vector.load %arg37[%c0_55, %c0_56] : memref<128x256xbf16, #tpu.memory_space<vmem>>, vector<128x256xbf16>
    %c0_57 = arith.constant 0 : index
    %c0_58 = arith.constant 0 : index
    %29 = vector.load %arg38[%c0_57, %c0_58] : memref<128x256xbf16, #tpu.memory_space<vmem>>, vector<128x256xbf16>
    %c0_59 = arith.constant 0 : index
    %c0_60 = arith.constant 0 : index
    %30 = vector.load %arg39[%c0_59, %c0_60] : memref<1x256xf32, #tpu.memory_space<vmem>>, vector<1x256xf32>
    %c0_61 = arith.constant 0 : index
    %c0_62 = arith.constant 0 : index
    %31 = vector.load %arg40[%c0_61, %c0_62] : memref<256x512xbf16, #tpu.memory_space<vmem>>, vector<256x512xbf16>
    %c0_63 = arith.constant 0 : index
    %c0_64 = arith.constant 0 : index
    %32 = vector.load %arg41[%c0_63, %c0_64] : memref<1x512xf32, #tpu.memory_space<vmem>>, vector<1x512xf32>
    %c0_65 = arith.constant 0 : index
    %c0_66 = arith.constant 0 : index
    %33 = vector.load %arg42[%c0_65, %c0_66] : memref<512x1024xbf16, #tpu.memory_space<vmem>>, vector<512x1024xbf16>
    %c0_67 = arith.constant 0 : index
    %c0_68 = arith.constant 0 : index
    %34 = vector.load %arg43[%c0_67, %c0_68] : memref<1x1024xf32, #tpu.memory_space<vmem>>, vector<1x1024xf32>
    %c0_69 = arith.constant 0 : index
    %c0_70 = arith.constant 0 : index
    %35 = vector.load %arg44[%c0_69, %c0_70] : memref<1024x128xbf16, #tpu.memory_space<vmem>>, vector<1024x128xbf16>
    %c0_71 = arith.constant 0 : index
    %c0_72 = arith.constant 0 : index
    %36 = vector.load %arg45[%c0_71, %c0_72] : memref<1x128xf32, #tpu.memory_space<vmem>>, vector<1x128xf32>
    %cst = arith.constant dense<0.000000e+00> : vector<8x128xf32>
    %37 = tpu.matmul %7, %10, %cst {dimension_numbers = #tpu.dot_dimension_numbers<[1], [0], [0], [1], [0, 0, 1, 1], [], []>} : vector<8x128xf32>, vector<128x128xf32>, vector<8x128xf32> -> vector<8x128xf32>
    %cst_73 = arith.constant dense<0.000000e+00> : vector<8x128xf32>
    %38 = tpu.matmul %1, %37, %cst_73 {dimension_numbers = #tpu.dot_dimension_numbers<[1], [0], [0], [1], [0, 0, 1, 1], [], []>} : vector<8x8xf32>, vector<8x128xf32>, vector<8x128xf32> -> vector<8x128xf32>
    %cst_74 = arith.constant dense<0.000000e+00> : vector<8x128xf32>
    %39 = tpu.matmul %8, %12, %cst_74 {dimension_numbers = #tpu.dot_dimension_numbers<[1], [0], [0], [1], [0, 0, 1, 1], [], []>} : vector<8x128xf32>, vector<128x128xf32>, vector<8x128xf32> -> vector<8x128xf32>
    %cst_75 = arith.constant dense<0.000000e+00> : vector<8x128xf32>
    %40 = tpu.matmul %3, %39, %cst_75 {dimension_numbers = #tpu.dot_dimension_numbers<[1], [0], [0], [1], [0, 0, 1, 1], [], []>} : vector<8x8xf32>, vector<8x128xf32>, vector<8x128xf32> -> vector<8x128xf32>
    %41 = arith.addf %38, %40 : vector<8x128xf32>
    %42 = vector.broadcast %15 : vector<1x128xf32> to vector<8x128xf32>
    %43 = arith.addf %41, %42 : vector<8x128xf32>
    %cst_76 = arith.constant dense<0.000000e+00> : vector<8x128xf32>
    %44 = tpu.matmul %6, %9, %cst_76 {dimension_numbers = #tpu.dot_dimension_numbers<[1], [0], [0], [1], [0, 0, 1, 1], [], []>} : vector<8x128xf32>, vector<128x128xf32>, vector<8x128xf32> -> vector<8x128xf32>
    %cst_77 = arith.constant dense<0.000000e+00> : vector<8x128xf32>
    %45 = tpu.matmul %0, %44, %cst_77 {dimension_numbers = #tpu.dot_dimension_numbers<[1], [0], [0], [1], [0, 0, 1, 1], [], []>} : vector<8x8xf32>, vector<8x128xf32>, vector<8x128xf32> -> vector<8x128xf32>
    %cst_78 = arith.constant dense<0.000000e+00> : vector<8x128xf32>
    %46 = tpu.matmul %8, %13, %cst_78 {dimension_numbers = #tpu.dot_dimension_numbers<[1], [0], [0], [1], [0, 0, 1, 1], [], []>} : vector<8x128xf32>, vector<128x128xf32>, vector<8x128xf32> -> vector<8x128xf32>
    %cst_79 = arith.constant dense<0.000000e+00> : vector<8x128xf32>
    %47 = tpu.matmul %4, %46, %cst_79 {dimension_numbers = #tpu.dot_dimension_numbers<[1], [0], [0], [1], [0, 0, 1, 1], [], []>} : vector<8x8xf32>, vector<8x128xf32>, vector<8x128xf32> -> vector<8x128xf32>
    %48 = arith.addf %45, %47 : vector<8x128xf32>
    %49 = vector.broadcast %16 : vector<1x128xf32> to vector<8x128xf32>
    %50 = arith.addf %48, %49 : vector<8x128xf32>
    %cst_80 = arith.constant dense<0.000000e+00> : vector<8x128xf32>
    %51 = tpu.matmul %6, %11, %cst_80 {dimension_numbers = #tpu.dot_dimension_numbers<[1], [0], [0], [1], [0, 0, 1, 1], [], []>} : vector<8x128xf32>, vector<128x128xf32>, vector<8x128xf32> -> vector<8x128xf32>
    %cst_81 = arith.constant dense<0.000000e+00> : vector<8x128xf32>
    %52 = tpu.matmul %2, %51, %cst_81 {dimension_numbers = #tpu.dot_dimension_numbers<[1], [0], [0], [1], [0, 0, 1, 1], [], []>} : vector<8x8xf32>, vector<8x128xf32>, vector<8x128xf32> -> vector<8x128xf32>
    %cst_82 = arith.constant dense<0.000000e+00> : vector<8x128xf32>
    %53 = tpu.matmul %7, %14, %cst_82 {dimension_numbers = #tpu.dot_dimension_numbers<[1], [0], [0], [1], [0, 0, 1, 1], [], []>} : vector<8x128xf32>, vector<128x128xf32>, vector<8x128xf32> -> vector<8x128xf32>
    %cst_83 = arith.constant dense<0.000000e+00> : vector<8x128xf32>
    %54 = tpu.matmul %5, %53, %cst_83 {dimension_numbers = #tpu.dot_dimension_numbers<[1], [0], [0], [1], [0, 0, 1, 1], [], []>} : vector<8x8xf32>, vector<8x128xf32>, vector<8x128xf32> -> vector<8x128xf32>
    %55 = arith.addf %52, %54 : vector<8x128xf32>
    %56 = vector.broadcast %17 : vector<1x128xf32> to vector<8x128xf32>
    %57 = arith.addf %55, %56 : vector<8x128xf32>
    %cst_84 = arith.constant dense<0.000000e+00> : vector<8x128xf32>
    %58 = tpu.matmul %43, %18, %cst_84 {dimension_numbers = #tpu.dot_dimension_numbers<[1], [0], [0], [1], [0, 0, 1, 1], [], []>} : vector<8x128xf32>, vector<128x128xf32>, vector<8x128xf32> -> vector<8x128xf32>
    %cst_85 = arith.constant dense<0.000000e+00> : vector<8x128xf32>
    %59 = tpu.matmul %0, %58, %cst_85 {dimension_numbers = #tpu.dot_dimension_numbers<[1], [0], [0], [1], [0, 0, 1, 1], [], []>} : vector<8x8xf32>, vector<8x128xf32>, vector<8x128xf32> -> vector<8x128xf32>
    %cst_86 = arith.constant dense<0.000000e+00> : vector<8x128xf32>
    %60 = tpu.matmul %57, %20, %cst_86 {dimension_numbers = #tpu.dot_dimension_numbers<[1], [0], [0], [1], [0, 0, 1, 1], [], []>} : vector<8x128xf32>, vector<128x128xf32>, vector<8x128xf32> -> vector<8x128xf32>
    %cst_87 = arith.constant dense<0.000000e+00> : vector<8x128xf32>
    %61 = tpu.matmul %4, %60, %cst_87 {dimension_numbers = #tpu.dot_dimension_numbers<[1], [0], [0], [1], [0, 0, 1, 1], [], []>} : vector<8x8xf32>, vector<8x128xf32>, vector<8x128xf32> -> vector<8x128xf32>
    %62 = arith.addf %59, %61 : vector<8x128xf32>
    %63 = vector.broadcast %22 : vector<1x128xf32> to vector<8x128xf32>
    %64 = arith.addf %62, %63 : vector<8x128xf32>
    %cst_88 = arith.constant dense<0.000000e+00> : vector<8x128xf32>
    %65 = tpu.matmul %43, %19, %cst_88 {dimension_numbers = #tpu.dot_dimension_numbers<[1], [0], [0], [1], [0, 0, 1, 1], [], []>} : vector<8x128xf32>, vector<128x128xf32>, vector<8x128xf32> -> vector<8x128xf32>
    %cst_89 = arith.constant dense<0.000000e+00> : vector<8x128xf32>
    %66 = tpu.matmul %2, %65, %cst_89 {dimension_numbers = #tpu.dot_dimension_numbers<[1], [0], [0], [1], [0, 0, 1, 1], [], []>} : vector<8x8xf32>, vector<8x128xf32>, vector<8x128xf32> -> vector<8x128xf32>
    %cst_90 = arith.constant dense<0.000000e+00> : vector<8x128xf32>
    %67 = tpu.matmul %50, %21, %cst_90 {dimension_numbers = #tpu.dot_dimension_numbers<[1], [0], [0], [1], [0, 0, 1, 1], [], []>} : vector<8x128xf32>, vector<128x128xf32>, vector<8x128xf32> -> vector<8x128xf32>
    %cst_91 = arith.constant dense<0.000000e+00> : vector<8x128xf32>
    %68 = tpu.matmul %5, %67, %cst_91 {dimension_numbers = #tpu.dot_dimension_numbers<[1], [0], [0], [1], [0, 0, 1, 1], [], []>} : vector<8x8xf32>, vector<8x128xf32>, vector<8x128xf32> -> vector<8x128xf32>
    %69 = arith.addf %66, %68 : vector<8x128xf32>
    %70 = vector.broadcast %23 : vector<1x128xf32> to vector<8x128xf32>
    %71 = arith.addf %69, %70 : vector<8x128xf32>
    %cst_92 = arith.constant dense<0.000000e+00> : vector<8x128xf32>
    %72 = tpu.matmul %64, %24, %cst_92 {dimension_numbers = #tpu.dot_dimension_numbers<[1], [0], [0], [1], [0, 0, 1, 1], [], []>} : vector<8x128xf32>, vector<128x128xf32>, vector<8x128xf32> -> vector<8x128xf32>
    %cst_93 = arith.constant dense<0.000000e+00> : vector<8x128xf32>
    %73 = tpu.matmul %1, %72, %cst_93 {dimension_numbers = #tpu.dot_dimension_numbers<[1], [0], [0], [1], [0, 0, 1, 1], [], []>} : vector<8x8xf32>, vector<8x128xf32>, vector<8x128xf32> -> vector<8x128xf32>
    %cst_94 = arith.constant dense<0.000000e+00> : vector<8x128xf32>
    %74 = tpu.matmul %71, %25, %cst_94 {dimension_numbers = #tpu.dot_dimension_numbers<[1], [0], [0], [1], [0, 0, 1, 1], [], []>} : vector<8x128xf32>, vector<128x128xf32>, vector<8x128xf32> -> vector<8x128xf32>
    %cst_95 = arith.constant dense<0.000000e+00> : vector<8x128xf32>
    %75 = tpu.matmul %3, %74, %cst_95 {dimension_numbers = #tpu.dot_dimension_numbers<[1], [0], [0], [1], [0, 0, 1, 1], [], []>} : vector<8x8xf32>, vector<8x128xf32>, vector<8x128xf32> -> vector<8x128xf32>
    %76 = arith.addf %73, %75 : vector<8x128xf32>
    %77 = vector.broadcast %26 : vector<1x128xf32> to vector<8x128xf32>
    %78 = arith.addf %76, %77 : vector<8x128xf32>
    %79 = math.absf %78 : vector<8x128xf32>
    %cst_96 = arith.constant dense<0.000000e+00> : vector<8xf32>
    %80 = vector.multi_reduction <add>, %79, %cst_96 [1] : vector<8x128xf32> to vector<8xf32>
    %81 = vector.shape_cast %80 : vector<8xf32> to vector<8x1xf32>
    %cst_97 = arith.constant 9.99999996E-13 : f32
    %82 = vector.broadcast %cst_97 : f32 to vector<8x1xf32>
    %83 = arith.maximumf %81, %82 : vector<8x1xf32>
    %84 = vector.broadcast %83 : vector<8x1xf32> to vector<8x128xf32>
    %85 = arith.divf %78, %84 : vector<8x128xf32>
    %c0_98 = arith.constant 0 : index
    %c0_99 = arith.constant 0 : index
    %86 = vector.load %arg46[%c0_98, %c0_99] : memref<8x128xf32, #tpu.memory_space<vmem>>, vector<8x128xf32>
    tpu.vector_store %arg46[%c0_98, %c0_99], %85 {strides = array<i32>} : memref<8x128xf32, #tpu.memory_space<vmem>>, vector<8x128xf32>,
    %87 = arith.truncf %27 : vector<8x128xf32> to vector<8x128xbf16>
    %cst_100 = arith.constant dense<0.000000e+00> : vector<8x256xf32>
    %88 = tpu.matmul %87, %28, %cst_100 {dimension_numbers = #tpu.dot_dimension_numbers<[1], [0], [0], [1], [0, 0, 1, 1], [], []>} : vector<8x128xbf16>, vector<128x256xbf16>, vector<8x256xf32> -> vector<8x256xf32>
    %89 = arith.truncf %85 : vector<8x128xf32> to vector<8x128xbf16>
    %cst_101 = arith.constant dense<0.000000e+00> : vector<8x256xf32>
    %90 = tpu.matmul %89, %29, %cst_101 {dimension_numbers = #tpu.dot_dimension_numbers<[1], [0], [0], [1], [0, 0, 1, 1], [], []>} : vector<8x128xbf16>, vector<128x256xbf16>, vector<8x256xf32> -> vector<8x256xf32>
    %91 = arith.addf %88, %90 : vector<8x256xf32>
    %92 = vector.broadcast %30 : vector<1x256xf32> to vector<8x256xf32>
    %93 = arith.addf %91, %92 : vector<8x256xf32>
    %cst_102 = arith.constant 0.000000e+00 : f32
    %94 = vector.broadcast %cst_102 : f32 to vector<8x256xf32>
    %95 = arith.maximumf %93, %94 : vector<8x256xf32>
    %96 = arith.truncf %95 : vector<8x256xf32> to vector<8x256xbf16>
    %cst_103 = arith.constant dense<0.000000e+00> : vector<8x512xf32>
    %97 = tpu.matmul %96, %31, %cst_103 {dimension_numbers = #tpu.dot_dimension_numbers<[1], [0], [0], [1], [0, 0, 1, 1], [], []>} : vector<8x256xbf16>, vector<256x512xbf16>, vector<8x512xf32> -> vector<8x512xf32>
    %98 = vector.broadcast %32 : vector<1x512xf32> to vector<8x512xf32>
    %99 = arith.addf %97, %98 : vector<8x512xf32>
    %cst_104 = arith.constant 0.000000e+00 : f32
    %100 = vector.broadcast %cst_104 : f32 to vector<8x512xf32>
    %101 = arith.maximumf %99, %100 : vector<8x512xf32>
    %102 = arith.truncf %101 : vector<8x512xf32> to vector<8x512xbf16>
    %cst_105 = arith.constant dense<0.000000e+00> : vector<8x1024xf32>
    %103 = tpu.matmul %102, %33, %cst_105 {dimension_numbers = #tpu.dot_dimension_numbers<[1], [0], [0], [1], [0, 0, 1, 1], [], []>} : vector<8x512xbf16>, vector<512x1024xbf16>, vector<8x1024xf32> -> vector<8x1024xf32>
    %104 = vector.broadcast %34 : vector<1x1024xf32> to vector<8x1024xf32>
    %105 = arith.addf %103, %104 : vector<8x1024xf32>
    %cst_106 = arith.constant 0.000000e+00 : f32
    %106 = vector.broadcast %cst_106 : f32 to vector<8x1024xf32>
    %107 = arith.maximumf %105, %106 : vector<8x1024xf32>
    %108 = arith.truncf %107 : vector<8x1024xf32> to vector<8x1024xbf16>
    %cst_107 = arith.constant dense<0.000000e+00> : vector<8x128xf32>
    %109 = tpu.matmul %108, %35, %cst_107 {dimension_numbers = #tpu.dot_dimension_numbers<[1], [0], [0], [1], [0, 0, 1, 1], [], []>} : vector<8x1024xbf16>, vector<1024x128xbf16>, vector<8x128xf32> -> vector<8x128xf32>
    %110 = vector.broadcast %36 : vector<1x128xf32> to vector<8x128xf32>
    %111 = arith.addf %109, %110 : vector<8x128xf32>
    %112 = arith.negf %111 : vector<8x128xf32>
    %113 = math.exp %112 : vector<8x128xf32>
    %cst_108 = arith.constant 1.000000e+00 : f32
    %114 = vector.broadcast %cst_108 : f32 to vector<8x128xf32>
    %115 = arith.addf %114, %113 : vector<8x128xf32>
    %116 = arith.divf %114, %115 : vector<8x128xf32>
    %c0_109 = arith.constant 0 : index
    %c0_110 = arith.constant 0 : index
    %117 = vector.load %arg47[%c0_109, %c0_110] : memref<8x128xf32, #tpu.memory_space<vmem>>, vector<8x128xf32>
    tpu.vector_store %arg47[%c0_109, %c0_110], %116 {strides = array<i32>} : memref<8x128xf32, #tpu.memory_space<vmem>>, vector<8x128xf32>,
    return
  }
}

</mosaic_0001>

<llo_original>
// kernel: generator_forward.1
$region0: #{generator_forward.1}
  #allocation0 [shape = 'u32[]', space=smem, size = 0x4, offset = 0x4, fixed_abs, tag = 'smem constant byte address 0x4 - core index']
  #allocation1 [shape = 'u32[144,128]{1,0:T(1,128)}', space=vmem, size = 0x12000, scoped, tag = 'internal scratch']
  %s0 = inlined_call_operand.smem [shape: u32[48], index: -1, kind: input, shape index: {}]
  %s1 = sld [smem:[%s0]]
  %s2 = scalar_lea.smem %s0, 1
  %s3 = sld [smem:[%s2]]
  %s4 = scalar_lea.smem %s0, 2
  %s5 = sld [smem:[%s4]]
  %s6 = scalar_lea.smem %s0, 3
  %s7 = sld [smem:[%s6]]
  %s8 = scalar_lea.smem %s0, 4
  %s9 = sld [smem:[%s8]]
  %s10 = scalar_lea.smem %s0, 5
  %s11 = sld [smem:[%s10]]
  %s12 = scalar_lea.smem %s0, 6
  %s13 = sld [smem:[%s12]]
  %s14 = scalar_lea.smem %s0, 7
  %s15 = sld [smem:[%s14]]
  %s16 = scalar_lea.smem %s0, 8
  %s17 = sld [smem:[%s16]]
  %s18 = scalar_lea.smem %s0, 9
  %s19 = sld [smem:[%s18]]
  %s20 = scalar_lea.smem %s0, 10
  %s21 = sld [smem:[%s20]]
  %s22 = scalar_lea.smem %s0, 11
  %s23 = sld [smem:[%s22]]
  %s24 = scalar_lea.smem %s0, 12
  %s25 = sld [smem:[%s24]]
  %s26 = scalar_lea.smem %s0, 13
  %s27 = sld [smem:[%s26]]
  %s28 = scalar_lea.smem %s0, 14
  %s29 = sld [smem:[%s28]]
  %s30 = scalar_lea.smem %s0, 15
  %s31 = sld [smem:[%s30]]
  %s32 = scalar_lea.smem %s0, 16
  %s33 = sld [smem:[%s32]]
  %s34 = scalar_lea.smem %s0, 17
  %s35 = sld [smem:[%s34]]
  %s36 = scalar_lea.smem %s0, 18
  %s37 = sld [smem:[%s36]]
  %s38 = scalar_lea.smem %s0, 19
  %s39 = sld [smem:[%s38]]
  %s40 = scalar_lea.smem %s0, 20
  %s41 = sld [smem:[%s40]]
  %s42 = scalar_lea.smem %s0, 21
  %s43 = sld [smem:[%s42]]
  %s44 = scalar_lea.smem %s0, 22
  %s45 = sld [smem:[%s44]]
  %s46 = scalar_lea.smem %s0, 23
  %s47 = sld [smem:[%s46]]
  %s48 = scalar_lea.smem %s0, 24
  %s49 = sld [smem:[%s48]]
  %s50 = scalar_lea.smem %s0, 25
  %s51 = sld [smem:[%s50]]
  %s52 = scalar_lea.smem %s0, 26
  %s53 = sld [smem:[%s52]]
  %s54 = scalar_lea.smem %s0, 27
  %s55 = sld [smem:[%s54]]
  %s56 = scalar_lea.smem %s0, 28
  %s57 = sld [smem:[%s56]]
  %s58 = scalar_lea.smem %s0, 29
  %s59 = sld [smem:[%s58]]
  %s60 = scalar_lea.smem %s0, 30
  %s61 = sld [smem:[%s60]]
  %s62 = scalar_lea.smem %s0, 31
  %s63 = sld [smem:[%s62]]
  %s64 = scalar_lea.smem %s0, 32
  %s65 = sld [smem:[%s64]]
  %s66 = scalar_lea.smem %s0, 33
  %s67 = sld [smem:[%s66]]
  %s68 = scalar_lea.smem %s0, 34
  %s69 = sld [smem:[%s68]]
  %s70 = scalar_lea.smem %s0, 35
  %s71 = sld [smem:[%s70]]
  %s72 = scalar_lea.smem %s0, 36
  %s73 = sld [smem:[%s72]]
  %s74 = scalar_lea.smem %s0, 37
  %s75 = sld [smem:[%s74]]
  %s76 = scalar_lea.smem %s0, 38
  %s77 = sld [smem:[%s76]]
  %s78 = scalar_lea.smem %s0, 39
  %s79 = sld [smem:[%s78]]
  %s80 = scalar_lea.smem %s0, 40
  %s81 = sld [smem:[%s80]]
  %s82 = scalar_lea.smem %s0, 41
  %s83 = sld [smem:[%s82]]
  %s84 = scalar_lea.smem %s0, 42
  %s85 = sld [smem:[%s84]]
  %s86 = scalar_lea.smem %s0, 43
  %s87 = sld [smem:[%s86]]
  %s88 = scalar_lea.smem %s0, 44
  %s89 = sld [smem:[%s88]]
  %s90 = scalar_lea.smem %s0, 45
  %s91 = sld [smem:[%s90]]
  %s92 = scalar_lea.smem %s0, 46
  %s93 = sld [smem:[%s92]]
  %s94 = scalar_lea.smem %s0, 47
  %s95 = sld [smem:[%s94]]
  %96 = xla_tuple %s93, %s95
  %s97 = sld [smem:[#allocation0]]
  $region202: #{generator_forward.1} parent=0
    _
  %s99 = ssub.s32 1, %s97
  %s100 = scalar_select 0, %s99, %s97
  // Predicated region
  $region2: #{generator_forward.1} parent=0 // pred_check
    _
  $region3: #{generator_forward.1} parent=0 // pred_check_branch
    %102 = sbr.rel (0) target = $region5
  $region4: #{generator_forward.1} parent=0 // pred_region
    _
  $region5: #{generator_forward.1} parent=0 // pred_fallthru
    _
  // Predicated region
  $region6: #{generator_forward.1} parent=0 // pred_check
    _
  $region7: #{generator_forward.1} parent=0 // pred_check_branch
    %104 = sbr.rel (0) target = $region9
  $region8: #{generator_forward.1} parent=0 // pred_region
    _
  $region9: #{generator_forward.1} parent=0 // pred_fallthru
    _
  // Predicated region
  $region10: #{generator_forward.1} parent=0 // pred_check
    _
  $region11: #{generator_forward.1} parent=0 // pred_check_branch
    %106 = sbr.rel (0) target = $region13
  $region12: #{generator_forward.1} parent=0 // pred_region
    _
  $region13: #{generator_forward.1} parent=0 // pred_fallthru
    _
  // Predicated region
  $region14: #{generator_forward.1} parent=0 // pred_check
    _
  $region15: #{generator_forward.1} parent=0 // pred_check_branch
    %108 = sbr.rel (0) target = $region17
  $region16: #{generator_forward.1} parent=0 // pred_region
    _
  $region17: #{generator_forward.1} parent=0 // pred_fallthru
    _
  // Predicated region
  $region18: #{generator_forward.1} parent=0 // pred_check
    _
  $region19: #{generator_forward.1} parent=0 // pred_check_branch
    %110 = sbr.rel (0) target = $region21
  $region20: #{generator_forward.1} parent=0 // pred_region
    _
  $region21: #{generator_forward.1} parent=0 // pred_fallthru
    _
  // Predicated region
  $region22: #{generator_forward.1} parent=0 // pred_check
    _
  $region23: #{generator_forward.1} parent=0 // pred_check_branch
    %112 = sbr.rel (0) target = $region25
  $region24: #{generator_forward.1} parent=0 // pred_region
    _
  $region25: #{generator_forward.1} parent=0 // pred_fallthru
    _
  // Predicated region
  $region26: #{generator_forward.1} parent=0 // pred_check
    _
  $region27: #{generator_forward.1} parent=0 // pred_check_branch
    %114 = sbr.rel (0) target = $region29
  $region28: #{generator_forward.1} parent=0 // pred_region
    _
  $region29: #{generator_forward.1} parent=0 // pred_fallthru
    _
  // Predicated region
  $region30: #{generator_forward.1} parent=0 // pred_check
    _
  $region31: #{generator_forward.1} parent=0 // pred_check_branch
    %116 = sbr.rel (0) target = $region33
  $region32: #{generator_forward.1} parent=0 // pred_region
    _
  $region33: #{generator_forward.1} parent=0 // pred_fallthru
    _
  // Predicated region
  $region34: #{generator_forward.1} parent=0 // pred_check
    _
  $region35: #{generator_forward.1} parent=0 // pred_check_branch
    %118 = sbr.rel (0) target = $region37
  $region36: #{generator_forward.1} parent=0 // pred_region
    _
  $region37: #{generator_forward.1} parent=0 // pred_fallthru
    _
  // Predicated region
  $region38: #{generator_forward.1} parent=0 // pred_check
    _
  $region39: #{generator_forward.1} parent=0 // pred_check_branch
    %120 = sbr.rel (0) target = $region41
  $region40: #{generator_forward.1} parent=0 // pred_region
    _
  $region41: #{generator_forward.1} parent=0 // pred_fallthru
    _
  // Predicated region
  $region42: #{generator_forward.1} parent=0 // pred_check
    _
  $region43: #{generator_forward.1} parent=0 // pred_check_branch
    %122 = sbr.rel (0) target = $region45
  $region44: #{generator_forward.1} parent=0 // pred_region
    _
  $region45: #{generator_forward.1} parent=0 // pred_fallthru
    _
  // Predicated region
  $region46: #{generator_forward.1} parent=0 // pred_check
    _
  $region47: #{generator_forward.1} parent=0 // pred_check_branch
    %124 = sbr.rel (0) target = $region49
  $region48: #{generator_forward.1} parent=0 // pred_region
    _
  $region49: #{generator_forward.1} parent=0 // pred_fallthru
    _
  // Predicated region
  $region50: #{generator_forward.1} parent=0 // pred_check
    _
  $region51: #{generator_forward.1} parent=0 // pred_check_branch
    %126 = sbr.rel (0) target = $region53
  $region52: #{generator_forward.1} parent=0 // pred_region
    _
  $region53: #{generator_forward.1} parent=0 // pred_fallthru
    _
  // Predicated region
  $region54: #{generator_forward.1} parent=0 // pred_check
    _
  $region55: #{generator_forward.1} parent=0 // pred_check_branch
    %128 = sbr.rel (0) target = $region57
  $region56: #{generator_forward.1} parent=0 // pred_region
    _
  $region57: #{generator_forward.1} parent=0 // pred_fallthru
    _
  // Predicated region
  $region58: #{generator_forward.1} parent=0 // pred_check
    _
  $region59: #{generator_forward.1} parent=0 // pred_check_branch
    %130 = sbr.rel (0) target = $region61
  $region60: #{generator_forward.1} parent=0 // pred_region
    _
  $region61: #{generator_forward.1} parent=0 // pred_fallthru
    _
  // Predicated region
  $region62: #{generator_forward.1} parent=0 // pred_check
    _
  $region63: #{generator_forward.1} parent=0 // pred_check_branch
    %132 = sbr.rel (0) target = $region65
  $region64: #{generator_forward.1} parent=0 // pred_region
    _
  $region65: #{generator_forward.1} parent=0 // pred_fallthru
    _
  // Predicated region
  $region66: #{generator_forward.1} parent=0 // pred_check
    _
  $region67: #{generator_forward.1} parent=0 // pred_check_branch
    %134 = sbr.rel (0) target = $region69
  $region68: #{generator_forward.1} parent=0 // pred_region
    _
  $region69: #{generator_forward.1} parent=0 // pred_fallthru
    _
  // Predicated region
  $region70: #{generator_forward.1} parent=0 // pred_check
    _
  $region71: #{generator_forward.1} parent=0 // pred_check_branch
    %136 = sbr.rel (0) target = $region73
  $region72: #{generator_forward.1} parent=0 // pred_region
    _
  $region73: #{generator_forward.1} parent=0 // pred_fallthru
    _
  // Predicated region
  $region74: #{generator_forward.1} parent=0 // pred_check
    _
  $region75: #{generator_forward.1} parent=0 // pred_check_branch
    %138 = sbr.rel (0) target = $region77
  $region76: #{generator_forward.1} parent=0 // pred_region
    _
  $region77: #{generator_forward.1} parent=0 // pred_fallthru
    _
  // Predicated region
  $region78: #{generator_forward.1} parent=0 // pred_check
    _
  $region79: #{generator_forward.1} parent=0 // pred_check_branch
    %140 = sbr.rel (0) target = $region81
  $region80: #{generator_forward.1} parent=0 // pred_region
    _
  $region81: #{generator_forward.1} parent=0 // pred_fallthru
    _
  // Predicated region
  $region82: #{generator_forward.1} parent=0 // pred_check
    _
  $region83: #{generator_forward.1} parent=0 // pred_check_branch
    %142 = sbr.rel (0) target = $region85
  $region84: #{generator_forward.1} parent=0 // pred_region
    _
  $region85: #{generator_forward.1} parent=0 // pred_fallthru
    _
  // Predicated region
  $region86: #{generator_forward.1} parent=0 // pred_check
    _
  $region87: #{generator_forward.1} parent=0 // pred_check_branch
    %144 = sbr.rel (0) target = $region89
  $region88: #{generator_forward.1} parent=0 // pred_region
    _
  $region89: #{generator_forward.1} parent=0 // pred_fallthru
    _
  // Predicated region
  $region90: #{generator_forward.1} parent=0 // pred_check
    _
  $region91: #{generator_forward.1} parent=0 // pred_check_branch
    %146 = sbr.rel (0) target = $region93
  $region92: #{generator_forward.1} parent=0 // pred_region
    _
  $region93: #{generator_forward.1} parent=0 // pred_fallthru
    _
  // Predicated region
  $region94: #{generator_forward.1} parent=0 // pred_check
    _
  $region95: #{generator_forward.1} parent=0 // pred_check_branch
    %148 = sbr.rel (0) target = $region97
  $region96: #{generator_forward.1} parent=0 // pred_region
    _
  $region97: #{generator_forward.1} parent=0 // pred_fallthru
    _
  // Predicated region
  $region98: #{generator_forward.1} parent=0 // pred_check
    _
  $region99: #{generator_forward.1} parent=0 // pred_check_branch
    %150 = sbr.rel (0) target = $region101
  $region100: #{generator_forward.1} parent=0 // pred_region
    _
  $region101: #{generator_forward.1} parent=0 // pred_fallthru
    _
  // Predicated region
  $region102: #{generator_forward.1} parent=0 // pred_check
    _
  $region103: #{generator_forward.1} parent=0 // pred_check_branch
    %152 = sbr.rel (0) target = $region105
  $region104: #{generator_forward.1} parent=0 // pred_region
    _
  $region105: #{generator_forward.1} parent=0 // pred_fallthru
    _
  // Predicated region
  $region106: #{generator_forward.1} parent=0 // pred_check
    _
  $region107: #{generator_forward.1} parent=0 // pred_check_branch
    %154 = sbr.rel (0) target = $region109
  $region108: #{generator_forward.1} parent=0 // pred_region
    _
  $region109: #{generator_forward.1} parent=0 // pred_fallthru
    _
  // Predicated region
  $region110: #{generator_forward.1} parent=0 // pred_check
    _
  $region111: #{generator_forward.1} parent=0 // pred_check_branch
    %156 = sbr.rel (0) target = $region113
  $region112: #{generator_forward.1} parent=0 // pred_region
    _
  $region113: #{generator_forward.1} parent=0 // pred_fallthru
    _
  // Predicated region
  $region114: #{generator_forward.1} parent=0 // pred_check
    _
  $region115: #{generator_forward.1} parent=0 // pred_check_branch
    %158 = sbr.rel (0) target = $region117
  $region116: #{generator_forward.1} parent=0 // pred_region
    _
  $region117: #{generator_forward.1} parent=0 // pred_fallthru
    _
  // Predicated region
  $region118: #{generator_forward.1} parent=0 // pred_check
    _
  $region119: #{generator_forward.1} parent=0 // pred_check_branch
    %160 = sbr.rel (0) target = $region121
  $region120: #{generator_forward.1} parent=0 // pred_region
    _
  $region121: #{generator_forward.1} parent=0 // pred_fallthru
    _
  // Predicated region
  $region122: #{generator_forward.1} parent=0 // pred_check
    _
  $region123: #{generator_forward.1} parent=0 // pred_check_branch
    %162 = sbr.rel (0) target = $region125
  $region124: #{generator_forward.1} parent=0 // pred_region
    _
  $region125: #{generator_forward.1} parent=0 // pred_fallthru
    _
  // Predicated region
  $region126: #{generator_forward.1} parent=0 // pred_check
    _
  $region127: #{generator_forward.1} parent=0 // pred_check_branch
    %164 = sbr.rel (0) target = $region129
  $region128: #{generator_forward.1} parent=0 // pred_region
    _
  $region129: #{generator_forward.1} parent=0 // pred_fallthru
    _
  // Predicated region
  $region130: #{generator_forward.1} parent=0 // pred_check
    _
  $region131: #{generator_forward.1} parent=0 // pred_check_branch
    %166 = sbr.rel (0) target = $region133
  $region132: #{generator_forward.1} parent=0 // pred_region
    _
  $region133: #{generator_forward.1} parent=0 // pred_fallthru
    _
  // Predicated region
  $region134: #{generator_forward.1} parent=0 // pred_check
    _
  $region135: #{generator_forward.1} parent=0 // pred_check_branch
    %168 = sbr.rel (0) target = $region137
  $region136: #{generator_forward.1} parent=0 // pred_region
    _
  $region137: #{generator_forward.1} parent=0 // pred_fallthru
    _
  // Predicated region
  $region138: #{generator_forward.1} parent=0 // pred_check
    _
  $region139: #{generator_forward.1} parent=0 // pred_check_branch
    %170 = sbr.rel (0) target = $region141
  $region140: #{generator_forward.1} parent=0 // pred_region
    _
  $region141: #{generator_forward.1} parent=0 // pred_fallthru
    _
  // Predicated region
  $region142: #{generator_forward.1} parent=0 // pred_check
    _
  $region143: #{generator_forward.1} parent=0 // pred_check_branch
    %172 = sbr.rel (0) target = $region145
  $region144: #{generator_forward.1} parent=0 // pred_region
    _
  $region145: #{generator_forward.1} parent=0 // pred_fallthru
    _
  // Predicated region
  $region146: #{generator_forward.1} parent=0 // pred_check
    _
  $region147: #{generator_forward.1} parent=0 // pred_check_branch
    %174 = sbr.rel (0) target = $region149
  $region148: #{generator_forward.1} parent=0 // pred_region
    _
  $region149: #{generator_forward.1} parent=0 // pred_fallthru
    _
  // Predicated region
  $region150: #{generator_forward.1} parent=0 // pred_check
    _
  $region151: #{generator_forward.1} parent=0 // pred_check_branch
    %176 = sbr.rel (0) target = $region153
  $region152: #{generator_forward.1} parent=0 // pred_region
    _
  $region153: #{generator_forward.1} parent=0 // pred_fallthru
    _
  // Predicated region
  $region154: #{generator_forward.1} parent=0 // pred_check
    _
  $region155: #{generator_forward.1} parent=0 // pred_check_branch
    %178 = sbr.rel (0) target = $region157
  $region156: #{generator_forward.1} parent=0 // pred_region
    _
  $region157: #{generator_forward.1} parent=0 // pred_fallthru
    _
  // Predicated region
  $region158: #{generator_forward.1} parent=0 // pred_check
    _
  $region159: #{generator_forward.1} parent=0 // pred_check_branch
    %180 = sbr.rel (0) target = $region161
  $region160: #{generator_forward.1} parent=0 // pred_region
    _
  $region161: #{generator_forward.1} parent=0 // pred_fallthru
    _
  // Predicated region
  $region162: #{generator_forward.1} parent=0 // pred_check
    _
  $region163: #{generator_forward.1} parent=0 // pred_check_branch
    %182 = sbr.rel (0) target = $region165
  $region164: #{generator_forward.1} parent=0 // pred_region
    _
  $region165: #{generator_forward.1} parent=0 // pred_fallthru
    _
  // Predicated region
  $region166: #{generator_forward.1} parent=0 // pred_check
    _
  $region167: #{generator_forward.1} parent=0 // pred_check_branch
    %184 = sbr.rel (0) target = $region169
  $region168: #{generator_forward.1} parent=0 // pred_region
    _
  $region169: #{generator_forward.1} parent=0 // pred_fallthru
    _
  // Predicated region
  $region170: #{generator_forward.1} parent=0 // pred_check
    _
  $region171: #{generator_forward.1} parent=0 // pred_check_branch
    %186 = sbr.rel (0) target = $region173
  $region172: #{generator_forward.1} parent=0 // pred_region
    _
  $region173: #{generator_forward.1} parent=0 // pred_fallthru
    _
  // Predicated region
  $region174: #{generator_forward.1} parent=0 // pred_check
    _
  $region175: #{generator_forward.1} parent=0 // pred_check_branch
    %188 = sbr.rel (0) target = $region177
  $region176: #{generator_forward.1} parent=0 // pred_region
    _
  $region177: #{generator_forward.1} parent=0 // pred_fallthru
    _
  // Predicated region
  $region178: #{generator_forward.1} parent=0 // pred_check
    _
  $region179: #{generator_forward.1} parent=0 // pred_check_branch
    %190 = sbr.rel (0) target = $region181
  $region180: #{generator_forward.1} parent=0 // pred_region
    _
  $region181: #{generator_forward.1} parent=0 // pred_fallthru
    _
  // Predicated region
  $region182: #{generator_forward.1} parent=0 // pred_check
    _
  $region183: #{generator_forward.1} parent=0 // pred_check_branch
    %192 = sbr.rel (0) target = $region185
  $region184: #{generator_forward.1} parent=0 // pred_region
    _
  $region185: #{generator_forward.1} parent=0 // pred_fallthru
    _
  %v194 = vld [vmem:[%s1] sm:$0xff]
  %v195 = vld [vmem:[%s3] sm:$0xff]
  %v196 = vld [vmem:[%s5] sm:$0xff]
  %v197 = vld [vmem:[%s7] sm:$0xff]
  %v198 = vld [vmem:[%s9] sm:$0xff]
  %v199 = vld [vmem:[%s11] sm:$0xff]
  %v200 = vld [vmem:[%s13] sm:$0xff]
  %v201 = vld [vmem:[%s15] sm:$0xff]
  %v202 = vld [vmem:[%s17] sm:$0xff]
  %v203 = vld [vmem:[%s19] sm:$0xff]
  %v204 = vld [vmem:[%s19 + $0x8] sm:$0xff]
  %v205 = vld [vmem:[%s19 + $0x10] sm:$0xff]
  %v206 = vld [vmem:[%s19 + $0x18] sm:$0xff]
  %v207 = vld [vmem:[%s19 + $0x20] sm:$0xff]
  %v208 = vld [vmem:[%s19 + $0x28] sm:$0xff]
  %v209 = vld [vmem:[%s19 + $0x30] sm:$0xff]
  %v210 = vld [vmem:[%s19 + $0x38] sm:$0xff]
  %v211 = vld [vmem:[%s19 + $0x40] sm:$0xff]
  %v212 = vld [vmem:[%s19 + $0x48] sm:$0xff]
  %v213 = vld [vmem:[%s19 + $0x50] sm:$0xff]
  %v214 = vld [vmem:[%s19 + $0x58] sm:$0xff]
  %v215 = vld [vmem:[%s19 + $0x60] sm:$0xff]
  %v216 = vld [vmem:[%s19 + $0x68] sm:$0xff]
  %v217 = vld [vmem:[%s19 + $0x70] sm:$0xff]
  %v218 = vld [vmem:[%s19 + $0x78] sm:$0xff]
  %v219 = vld [vmem:[%s21] sm:$0xff]
  %v220 = vld [vmem:[%s21 + $0x8] sm:$0xff]
  %v221 = vld [vmem:[%s21 + $0x10] sm:$0xff]
  %v222 = vld [vmem:[%s21 + $0x18] sm:$0xff]
  %v223 = vld [vmem:[%s21 + $0x20] sm:$0xff]
  %v224 = vld [vmem:[%s21 + $0x28] sm:$0xff]
  %v225 = vld [vmem:[%s21 + $0x30] sm:$0xff]
  %v226 = vld [vmem:[%s21 + $0x38] sm:$0xff]
  %v227 = vld [vmem:[%s21 + $0x40] sm:$0xff]
  %v228 = vld [vmem:[%s21 + $0x48] sm:$0xff]
  %v229 = vld [vmem:[%s21 + $0x50] sm:$0xff]
  %v230 = vld [vmem:[%s21 + $0x58] sm:$0xff]
  %v231 = vld [vmem:[%s21 + $0x60] sm:$0xff]
  %v232 = vld [vmem:[%s21 + $0x68] sm:$0xff]
  %v233 = vld [vmem:[%s21 + $0x70] sm:$0xff]
  %v234 = vld [vmem:[%s21 + $0x78] sm:$0xff]
  %v235 = vld [vmem:[%s23] sm:$0xff]
  %v236 = vld [vmem:[%s23 + $0x8] sm:$0xff]
  %v237 = vld [vmem:[%s23 + $0x10] sm:$0xff]
  %v238 = vld [vmem:[%s23 + $0x18] sm:$0xff]
  %v239 = vld [vmem:[%s23 + $0x20] sm:$0xff]
  %v240 = vld [vmem:[%s23 + $0x28] sm:$0xff]
  %v241 = vld [vmem:[%s23 + $0x30] sm:$0xff]
  %v242 = vld [vmem:[%s23 + $0x38] sm:$0xff]
  %v243 = vld [vmem:[%s23 + $0x40] sm:$0xff]
  %v244 = vld [vmem:[%s23 + $0x48] sm:$0xff]
  %v245 = vld [vmem:[%s23 + $0x50] sm:$0xff]
  %v246 = vld [vmem:[%s23 + $0x58] sm:$0xff]
  %v247 = vld [vmem:[%s23 + $0x60] sm:$0xff]
  %v248 = vld [vmem:[%s23 + $0x68] sm:$0xff]
  %v249 = vld [vmem:[%s23 + $0x70] sm:$0xff]
  %v250 = vld [vmem:[%s23 + $0x78] sm:$0xff]
  %v251 = vld [vmem:[%s25] sm:$0xff]
  %v252 = vld [vmem:[%s25 + $0x8] sm:$0xff]
  %v253 = vld [vmem:[%s25 + $0x10] sm:$0xff]
  %v254 = vld [vmem:[%s25 + $0x18] sm:$0xff]
  %v255 = vld [vmem:[%s25 + $0x20] sm:$0xff]
  %v256 = vld [vmem:[%s25 + $0x28] sm:$0xff]
  %v257 = vld [vmem:[%s25 + $0x30] sm:$0xff]
  %v258 = vld [vmem:[%s25 + $0x38] sm:$0xff]
  %v259 = vld [vmem:[%s25 + $0x40] sm:$0xff]
  %v260 = vld [vmem:[%s25 + $0x48] sm:$0xff]
  %v261 = vld [vmem:[%s25 + $0x50] sm:$0xff]
  %v262 = vld [vmem:[%s25 + $0x58] sm:$0xff]
  %v263 = vld [vmem:[%s25 + $0x60] sm:$0xff]
  %v264 = vld [vmem:[%s25 + $0x68] sm:$0xff]
  %v265 = vld [vmem:[%s25 + $0x70] sm:$0xff]
  %v266 = vld [vmem:[%s25 + $0x78] sm:$0xff]
  %v267 = vld [vmem:[%s27] sm:$0xff]
  %v268 = vld [vmem:[%s27 + $0x8] sm:$0xff]
  %v269 = vld [vmem:[%s27 + $0x10] sm:$0xff]
  %v270 = vld [vmem:[%s27 + $0x18] sm:$0xff]
  %v271 = vld [vmem:[%s27 + $0x20] sm:$0xff]
  %v272 = vld [vmem:[%s27 + $0x28] sm:$0xff]
  %v273 = vld [vmem:[%s27 + $0x30] sm:$0xff]
  %v274 = vld [vmem:[%s27 + $0x38] sm:$0xff]
  %v275 = vld [vmem:[%s27 + $0x40] sm:$0xff]
  %v276 = vld [vmem:[%s27 + $0x48] sm:$0xff]
  %v277 = vld [vmem:[%s27 + $0x50] sm:$0xff]
  %v278 = vld [vmem:[%s27 + $0x58] sm:$0xff]
  %v279 = vld [vmem:[%s27 + $0x60] sm:$0xff]
  %v280 = vld [vmem:[%s27 + $0x68] sm:$0xff]
  %v281 = vld [vmem:[%s27 + $0x70] sm:$0xff]
  %v282 = vld [vmem:[%s27 + $0x78] sm:$0xff]
  %v283 = vld [vmem:[%s29] sm:$0xff]
  %v284 = vld [vmem:[%s29 + $0x8] sm:$0xff]
  %v285 = vld [vmem:[%s29 + $0x10] sm:$0xff]
  %v286 = vld [vmem:[%s29 + $0x18] sm:$0xff]
  %v287 = vld [vmem:[%s29 + $0x20] sm:$0xff]
  %v288 = vld [vmem:[%s29 + $0x28] sm:$0xff]
  %v289 = vld [vmem:[%s29 + $0x30] sm:$0xff]
  %v290 = vld [vmem:[%s29 + $0x38] sm:$0xff]
  %v291 = vld [vmem:[%s29 + $0x40] sm:$0xff]
  %v292 = vld [vmem:[%s29 + $0x48] sm:$0xff]
  %v293 = vld [vmem:[%s29 + $0x50] sm:$0xff]
  %v294 = vld [vmem:[%s29 + $0x58] sm:$0xff]
  %v295 = vld [vmem:[%s29 + $0x60] sm:$0xff]
  %v296 = vld [vmem:[%s29 + $0x68] sm:$0xff]
  %v297 = vld [vmem:[%s29 + $0x70] sm:$0xff]
  %v298 = vld [vmem:[%s29 + $0x78] sm:$0xff]
  %v299 = vld [vmem:[%s31] sm:$0x1]
  %v300 = vld [vmem:[%s33] sm:$0x1]
  %v301 = vld [vmem:[%s35] sm:$0x1]
  %v302 = vld [vmem:[%s37] sm:$0xff]
  %v303 = vld [vmem:[%s37 + $0x8] sm:$0xff]
  %v304 = vld [vmem:[%s37 + $0x10] sm:$0xff]
  %v305 = vld [vmem:[%s37 + $0x18] sm:$0xff]
  %v306 = vld [vmem:[%s37 + $0x20] sm:$0xff]
  %v307 = vld [vmem:[%s37 + $0x28] sm:$0xff]
  %v308 = vld [vmem:[%s37 + $0x30] sm:$0xff]
  %v309 = vld [vmem:[%s37 + $0x38] sm:$0xff]
  %v310 = vld [vmem:[%s37 + $0x40] sm:$0xff]
  %v311 = vld [vmem:[%s37 + $0x48] sm:$0xff]
  %v312 = vld [vmem:[%s37 + $0x50] sm:$0xff]
  %v313 = vld [vmem:[%s37 + $0x58] sm:$0xff]
  %v314 = vld [vmem:[%s37 + $0x60] sm:$0xff]
  %v315 = vld [vmem:[%s37 + $0x68] sm:$0xff]
  %v316 = vld [vmem:[%s37 + $0x70] sm:$0xff]
  %v317 = vld [vmem:[%s37 + $0x78] sm:$0xff]
  %v318 = vld [vmem:[%s41] sm:$0xff]
  %v319 = vld [vmem:[%s41 + $0x8] sm:$0xff]
  %v320 = vld [vmem:[%s41 + $0x10] sm:$0xff]
  %v321 = vld [vmem:[%s41 + $0x18] sm:$0xff]
  %v322 = vld [vmem:[%s41 + $0x20] sm:$0xff]
  %v323 = vld [vmem:[%s41 + $0x28] sm:$0xff]
  %v324 = vld [vmem:[%s41 + $0x30] sm:$0xff]
  %v325 = vld [vmem:[%s41 + $0x38] sm:$0xff]
  %v326 = vld [vmem:[%s41 + $0x40] sm:$0xff]
  %v327 = vld [vmem:[%s41 + $0x48] sm:$0xff]
  %v328 = vld [vmem:[%s41 + $0x50] sm:$0xff]
  %v329 = vld [vmem:[%s41 + $0x58] sm:$0xff]
  %v330 = vld [vmem:[%s41 + $0x60] sm:$0xff]
  %v331 = vld [vmem:[%s41 + $0x68] sm:$0xff]
  %v332 = vld [vmem:[%s41 + $0x70] sm:$0xff]
  %v333 = vld [vmem:[%s41 + $0x78] sm:$0xff]
  %v334 = vld [vmem:[%s45] sm:$0xff]
  %v335 = vld [vmem:[%s45 + $0x8] sm:$0xff]
  %v336 = vld [vmem:[%s45 + $0x10] sm:$0xff]
  %v337 = vld [vmem:[%s45 + $0x18] sm:$0xff]
  %v338 = vld [vmem:[%s45 + $0x20] sm:$0xff]
  %v339 = vld [vmem:[%s45 + $0x28] sm:$0xff]
  %v340 = vld [vmem:[%s45 + $0x30] sm:$0xff]
  %v341 = vld [vmem:[%s45 + $0x38] sm:$0xff]
  %v342 = vld [vmem:[%s45 + $0x40] sm:$0xff]
  %v343 = vld [vmem:[%s45 + $0x48] sm:$0xff]
  %v344 = vld [vmem:[%s45 + $0x50] sm:$0xff]
  %v345 = vld [vmem:[%s45 + $0x58] sm:$0xff]
  %v346 = vld [vmem:[%s45 + $0x60] sm:$0xff]
  %v347 = vld [vmem:[%s45 + $0x68] sm:$0xff]
  %v348 = vld [vmem:[%s45 + $0x70] sm:$0xff]
  %v349 = vld [vmem:[%s45 + $0x78] sm:$0xff]
  %v350 = vld [vmem:[%s47] sm:$0xff]
  %v351 = vld [vmem:[%s47 + $0x8] sm:$0xff]
  %v352 = vld [vmem:[%s47 + $0x10] sm:$0xff]
  %v353 = vld [vmem:[%s47 + $0x18] sm:$0xff]
  %v354 = vld [vmem:[%s47 + $0x20] sm:$0xff]
  %v355 = vld [vmem:[%s47 + $0x28] sm:$0xff]
  %v356 = vld [vmem:[%s47 + $0x30] sm:$0xff]
  %v357 = vld [vmem:[%s47 + $0x38] sm:$0xff]
  %v358 = vld [vmem:[%s47 + $0x40] sm:$0xff]
  %v359 = vld [vmem:[%s47 + $0x48] sm:$0xff]
  %v360 = vld [vmem:[%s47 + $0x50] sm:$0xff]
  %v361 = vld [vmem:[%s47 + $0x58] sm:$0xff]
  %v362 = vld [vmem:[%s47 + $0x60] sm:$0xff]
  %v363 = vld [vmem:[%s47 + $0x68] sm:$0xff]
  %v364 = vld [vmem:[%s47 + $0x70] sm:$0xff]
  %v365 = vld [vmem:[%s47 + $0x78] sm:$0xff]
  %v366 = vld [vmem:[%s51] sm:$0x1]
  %v367 = vld [vmem:[%s53] sm:$0x1]
  %v368 = vld [vmem:[%s57] sm:$0xff]
  %v369 = vld [vmem:[%s57 + $0x8] sm:$0xff]
  %v370 = vld [vmem:[%s57 + $0x10] sm:$0xff]
  %v371 = vld [vmem:[%s57 + $0x18] sm:$0xff]
  %v372 = vld [vmem:[%s57 + $0x20] sm:$0xff]
  %v373 = vld [vmem:[%s57 + $0x28] sm:$0xff]
  %v374 = vld [vmem:[%s57 + $0x30] sm:$0xff]
  %v375 = vld [vmem:[%s57 + $0x38] sm:$0xff]
  %v376 = vld [vmem:[%s57 + $0x40] sm:$0xff]
  %v377 = vld [vmem:[%s57 + $0x48] sm:$0xff]
  %v378 = vld [vmem:[%s57 + $0x50] sm:$0xff]
  %v379 = vld [vmem:[%s57 + $0x58] sm:$0xff]
  %v380 = vld [vmem:[%s57 + $0x60] sm:$0xff]
  %v381 = vld [vmem:[%s57 + $0x68] sm:$0xff]
  %v382 = vld [vmem:[%s57 + $0x70] sm:$0xff]
  %v383 = vld [vmem:[%s57 + $0x78] sm:$0xff]
  %v384 = vld [vmem:[%s61] sm:$0xff]
  %v385 = vld [vmem:[%s61 + $0x8] sm:$0xff]
  %v386 = vld [vmem:[%s61 + $0x10] sm:$0xff]
  %v387 = vld [vmem:[%s61 + $0x18] sm:$0xff]
  %v388 = vld [vmem:[%s61 + $0x20] sm:$0xff]
  %v389 = vld [vmem:[%s61 + $0x28] sm:$0xff]
  %v390 = vld [vmem:[%s61 + $0x30] sm:$0xff]
  %v391 = vld [vmem:[%s61 + $0x38] sm:$0xff]
  %v392 = vld [vmem:[%s61 + $0x40] sm:$0xff]
  %v393 = vld [vmem:[%s61 + $0x48] sm:$0xff]
  %v394 = vld [vmem:[%s61 + $0x50] sm:$0xff]
  %v395 = vld [vmem:[%s61 + $0x58] sm:$0xff]
  %v396 = vld [vmem:[%s61 + $0x60] sm:$0xff]
  %v397 = vld [vmem:[%s61 + $0x68] sm:$0xff]
  %v398 = vld [vmem:[%s61 + $0x70] sm:$0xff]
  %v399 = vld [vmem:[%s61 + $0x78] sm:$0xff]
  %v400 = vld [vmem:[%s67] sm:$0x1]
  %v401 = vld [vmem:[%s73] sm:$0xff]
  %v402 = vld [vmem:[%s75] sm:$0xff]
  %v403 = vld [vmem:[%s75 + $0x8] sm:$0xff]
  %v404 = vld [vmem:[%s75 + $0x10] sm:$0xff]
  %v405 = vld [vmem:[%s75 + $0x18] sm:$0xff]
  %v406 = vld [vmem:[%s75 + $0x20] sm:$0xff]
  %v407 = vld [vmem:[%s75 + $0x28] sm:$0xff]
  %v408 = vld [vmem:[%s75 + $0x30] sm:$0xff]
  %v409 = vld [vmem:[%s75 + $0x38] sm:$0xff]
  %v410 = vld [vmem:[%s75 + $0x40] sm:$0xff]
  %v411 = vld [vmem:[%s75 + $0x48] sm:$0xff]
  %v412 = vld [vmem:[%s75 + $0x50] sm:$0xff]
  %v413 = vld [vmem:[%s75 + $0x58] sm:$0xff]
  %v414 = vld [vmem:[%s75 + $0x60] sm:$0xff]
  %v415 = vld [vmem:[%s75 + $0x68] sm:$0xff]
  %v416 = vld [vmem:[%s75 + $0x70] sm:$0xff]
  %v417 = vld [vmem:[%s75 + $0x78] sm:$0xff]
  %v418 = vld [vmem:[%s77] sm:$0xff]
  %v419 = vld [vmem:[%s77 + $0x8] sm:$0xff]
  %v420 = vld [vmem:[%s77 + $0x10] sm:$0xff]
  %v421 = vld [vmem:[%s77 + $0x18] sm:$0xff]
  %v422 = vld [vmem:[%s77 + $0x20] sm:$0xff]
  %v423 = vld [vmem:[%s77 + $0x28] sm:$0xff]
  %v424 = vld [vmem:[%s77 + $0x30] sm:$0xff]
  %v425 = vld [vmem:[%s77 + $0x38] sm:$0xff]
  %v426 = vld [vmem:[%s77 + $0x40] sm:$0xff]
  %v427 = vld [vmem:[%s77 + $0x48] sm:$0xff]
  %v428 = vld [vmem:[%s77 + $0x50] sm:$0xff]
  %v429 = vld [vmem:[%s77 + $0x58] sm:$0xff]
  %v430 = vld [vmem:[%s77 + $0x60] sm:$0xff]
  %v431 = vld [vmem:[%s77 + $0x68] sm:$0xff]
  %v432 = vld [vmem:[%s77 + $0x70] sm:$0xff]
  %v433 = vld [vmem:[%s77 + $0x78] sm:$0xff]
  %v434 = vld [vmem:[%s79] sm:$0x3]
  %v435 = vld [vmem:[%s81] sm:$0xff]
  %v436 = vld [vmem:[%s81 + $0x8] sm:$0xff]
  %v437 = vld [vmem:[%s81 + $0x10] sm:$0xff]
  %v438 = vld [vmem:[%s81 + $0x18] sm:$0xff]
  %v439 = vld [vmem:[%s81 + $0x20] sm:$0xff]
  %v440 = vld [vmem:[%s81 + $0x28] sm:$0xff]
  %v441 = vld [vmem:[%s81 + $0x30] sm:$0xff]
  %v442 = vld [vmem:[%s81 + $0x38] sm:$0xff]
  %v443 = vld [vmem:[%s81 + $0x40] sm:$0xff]
  %v444 = vld [vmem:[%s81 + $0x48] sm:$0xff]
  %v445 = vld [vmem:[%s81 + $0x50] sm:$0xff]
  %v446 = vld [vmem:[%s81 + $0x58] sm:$0xff]
  %v447 = vld [vmem:[%s81 + $0x60] sm:$0xff]
  %v448 = vld [vmem:[%s81 + $0x68] sm:$0xff]
  %v449 = vld [vmem:[%s81 + $0x70] sm:$0xff]
  %v450 = vld [vmem:[%s81 + $0x78] sm:$0xff]
  %v451 = vld [vmem:[%s81 + $0x80] sm:$0xff]
  %v452 = vld [vmem:[%s81 + $0x88] sm:$0xff]
  %v453 = vld [vmem:[%s81 + $0x90] sm:$0xff]
  %v454 = vld [vmem:[%s81 + $0x98] sm:$0xff]
  %v455 = vld [vmem:[%s81 + $0xa0] sm:$0xff]
  %v456 = vld [vmem:[%s81 + $0xa8] sm:$0xff]
  %v457 = vld [vmem:[%s81 + $0xb0] sm:$0xff]
  %v458 = vld [vmem:[%s81 + $0xb8] sm:$0xff]
  %v459 = vld [vmem:[%s81 + $0xc0] sm:$0xff]
  %v460 = vld [vmem:[%s81 + $0xc8] sm:$0xff]
  %v461 = vld [vmem:[%s81 + $0xd0] sm:$0xff]
  %v462 = vld [vmem:[%s81 + $0xd8] sm:$0xff]
  %v463 = vld [vmem:[%s81 + $0xe0] sm:$0xff]
  %v464 = vld [vmem:[%s81 + $0xe8] sm:$0xff]
  %v465 = vld [vmem:[%s81 + $0xf0] sm:$0xff]
  %v466 = vld [vmem:[%s81 + $0xf8] sm:$0xff]
  %v467 = vld [vmem:[%s81 + $0x100] sm:$0xff]
  %v468 = vld [vmem:[%s81 + $0x108] sm:$0xff]
  %v469 = vld [vmem:[%s81 + $0x110] sm:$0xff]
  %v470 = vld [vmem:[%s81 + $0x118] sm:$0xff]
  %v471 = vld [vmem:[%s81 + $0x120] sm:$0xff]
  %v472 = vld [vmem:[%s81 + $0x128] sm:$0xff]
  %v473 = vld [vmem:[%s81 + $0x130] sm:$0xff]
  %v474 = vld [vmem:[%s81 + $0x138] sm:$0xff]
  %v475 = vld [vmem:[%s81 + $0x140] sm:$0xff]
  %v476 = vld [vmem:[%s81 + $0x148] sm:$0xff]
  %v477 = vld [vmem:[%s81 + $0x150] sm:$0xff]
  %v478 = vld [vmem:[%s81 + $0x158] sm:$0xff]
  %v479 = vld [vmem:[%s81 + $0x160] sm:$0xff]
  %v480 = vld [vmem:[%s81 + $0x168] sm:$0xff]
  %v481 = vld [vmem:[%s81 + $0x170] sm:$0xff]
  %v482 = vld [vmem:[%s81 + $0x178] sm:$0xff]
  %v483 = vld [vmem:[%s81 + $0x180] sm:$0xff]
  %v484 = vld [vmem:[%s81 + $0x188] sm:$0xff]
  %v485 = vld [vmem:[%s81 + $0x190] sm:$0xff]
  %v486 = vld [vmem:[%s81 + $0x198] sm:$0xff]
  %v487 = vld [vmem:[%s81 + $0x1a0] sm:$0xff]
  %v488 = vld [vmem:[%s81 + $0x1a8] sm:$0xff]
  %v489 = vld [vmem:[%s81 + $0x1b0] sm:$0xff]
  %v490 = vld [vmem:[%s81 + $0x1b8] sm:$0xff]
  %v491 = vld [vmem:[%s81 + $0x1c0] sm:$0xff]
  %v492 = vld [vmem:[%s81 + $0x1c8] sm:$0xff]
  %v493 = vld [vmem:[%s81 + $0x1d0] sm:$0xff]
  %v494 = vld [vmem:[%s81 + $0x1d8] sm:$0xff]
  %v495 = vld [vmem:[%s81 + $0x1e0] sm:$0xff]
  %v496 = vld [vmem:[%s81 + $0x1e8] sm:$0xff]
  %v497 = vld [vmem:[%s81 + $0x1f0] sm:$0xff]
  %v498 = vld [vmem:[%s81 + $0x1f8] sm:$0xff]
  %v499 = vld [vmem:[%s83] sm:$0xf]
  %v500 = vld [vmem:[%s85] sm:$0xff]
  %v501 = vld [vmem:[%s85 + $0x8] sm:$0xff]
  %v502 = vld [vmem:[%s85 + $0x10] sm:$0xff]
  %v503 = vld [vmem:[%s85 + $0x18] sm:$0xff]
  %v504 = vld [vmem:[%s85 + $0x20] sm:$0xff]
  %v505 = vld [vmem:[%s85 + $0x28] sm:$0xff]
  %v506 = vld [vmem:[%s85 + $0x30] sm:$0xff]
  %v507 = vld [vmem:[%s85 + $0x38] sm:$0xff]
  %v508 = vld [vmem:[%s85 + $0x40] sm:$0xff]
  %v509 = vld [vmem:[%s85 + $0x48] sm:$0xff]
  %v510 = vld [vmem:[%s85 + $0x50] sm:$0xff]
  %v511 = vld [vmem:[%s85 + $0x58] sm:$0xff]
  %v512 = vld [vmem:[%s85 + $0x60] sm:$0xff]
  %v513 = vld [vmem:[%s85 + $0x68] sm:$0xff]
  %v514 = vld [vmem:[%s85 + $0x70] sm:$0xff]
  %v515 = vld [vmem:[%s85 + $0x78] sm:$0xff]
  %v516 = vld [vmem:[%s85 + $0x80] sm:$0xff]
  %v517 = vld [vmem:[%s85 + $0x88] sm:$0xff]
  %v518 = vld [vmem:[%s85 + $0x90] sm:$0xff]
  %v519 = vld [vmem:[%s85 + $0x98] sm:$0xff]
  %v520 = vld [vmem:[%s85 + $0xa0] sm:$0xff]
  %v521 = vld [vmem:[%s85 + $0xa8] sm:$0xff]
  %v522 = vld [vmem:[%s85 + $0xb0] sm:$0xff]
  %v523 = vld [vmem:[%s85 + $0xb8] sm:$0xff]
  %v524 = vld [vmem:[%s85 + $0xc0] sm:$0xff]
  %v525 = vld [vmem:[%s85 + $0xc8] sm:$0xff]
  %v526 = vld [vmem:[%s85 + $0xd0] sm:$0xff]
  %v527 = vld [vmem:[%s85 + $0xd8] sm:$0xff]
  %v528 = vld [vmem:[%s85 + $0xe0] sm:$0xff]
  %v529 = vld [vmem:[%s85 + $0xe8] sm:$0xff]
  %v530 = vld [vmem:[%s85 + $0xf0] sm:$0xff]
  %v531 = vld [vmem:[%s85 + $0xf8] sm:$0xff]
  %v532 = vld [vmem:[%s85 + $0x100] sm:$0xff]
  %v533 = vld [vmem:[%s85 + $0x108] sm:$0xff]
  %v534 = vld [vmem:[%s85 + $0x110] sm:$0xff]
  %v535 = vld [vmem:[%s85 + $0x118] sm:$0xff]
  %v536 = vld [vmem:[%s85 + $0x120] sm:$0xff]
  %v537 = vld [vmem:[%s85 + $0x128] sm:$0xff]
  %v538 = vld [vmem:[%s85 + $0x130] sm:$0xff]
  %v539 = vld [vmem:[%s85 + $0x138] sm:$0xff]
  %v540 = vld [vmem:[%s85 + $0x140] sm:$0xff]
  %v541 = vld [vmem:[%s85 + $0x148] sm:$0xff]
  %v542 = vld [vmem:[%s85 + $0x150] sm:$0xff]
  %v543 = vld [vmem:[%s85 + $0x158] sm:$0xff]
  %v544 = vld [vmem:[%s85 + $0x160] sm:$0xff]
  %v545 = vld [vmem:[%s85 + $0x168] sm:$0xff]
  %v546 = vld [vmem:[%s85 + $0x170] sm:$0xff]
  %v547 = vld [vmem:[%s85 + $0x178] sm:$0xff]
  %v548 = vld [vmem:[%s85 + $0x180] sm:$0xff]
  %v549 = vld [vmem:[%s85 + $0x188] sm:$0xff]
  %v550 = vld [vmem:[%s85 + $0x190] sm:$0xff]
  %v551 = vld [vmem:[%s85 + $0x198] sm:$0xff]
  %v552 = vld [vmem:[%s85 + $0x1a0] sm:$0xff]
  %v553 = vld [vmem:[%s85 + $0x1a8] sm:$0xff]
  %v554 = vld [vmem:[%s85 + $0x1b0] sm:$0xff]
  %v555 = vld [vmem:[%s85 + $0x1b8] sm:$0xff]
  %v556 = vld [vmem:[%s85 + $0x1c0] sm:$0xff]
  %v557 = vld [vmem:[%s85 + $0x1c8] sm:$0xff]
  %v558 = vld [vmem:[%s85 + $0x1d0] sm:$0xff]
  %v559 = vld [vmem:[%s85 + $0x1d8] sm:$0xff]
  %v560 = vld [vmem:[%s85 + $0x1e0] sm:$0xff]
  %v561 = vld [vmem:[%s85 + $0x1e8] sm:$0xff]
  %v562 = vld [vmem:[%s85 + $0x1f0] sm:$0xff]
  %v563 = vld [vmem:[%s85 + $0x1f8] sm:$0xff]
  %v564 = vld [vmem:[%s85 + $0x200] sm:$0xff]
  %v565 = vld [vmem:[%s85 + $0x208] sm:$0xff]
  %v566 = vld [vmem:[%s85 + $0x210] sm:$0xff]
  %v567 = vld [vmem:[%s85 + $0x218] sm:$0xff]
  %v568 = vld [vmem:[%s85 + $0x220] sm:$0xff]
  %v569 = vld [vmem:[%s85 + $0x228] sm:$0xff]
  %v570 = vld [vmem:[%s85 + $0x230] sm:$0xff]
  %v571 = vld [vmem:[%s85 + $0x238] sm:$0xff]
  %v572 = vld [vmem:[%s85 + $0x240] sm:$0xff]
  %v573 = vld [vmem:[%s85 + $0x248] sm:$0xff]
  %v574 = vld [vmem:[%s85 + $0x250] sm:$0xff]
  %v575 = vld [vmem:[%s85 + $0x258] sm:$0xff]
  %v576 = vld [vmem:[%s85 + $0x260] sm:$0xff]
  %v577 = vld [vmem:[%s85 + $0x268] sm:$0xff]
  %v578 = vld [vmem:[%s85 + $0x270] sm:$0xff]
  %v579 = vld [vmem:[%s85 + $0x278] sm:$0xff]
  %v580 = vld [vmem:[%s85 + $0x280] sm:$0xff]
  %v581 = vld [vmem:[%s85 + $0x288] sm:$0xff]
  %v582 = vld [vmem:[%s85 + $0x290] sm:$0xff]
  %v583 = vld [vmem:[%s85 + $0x298] sm:$0xff]
  %v584 = vld [vmem:[%s85 + $0x2a0] sm:$0xff]
  %v585 = vld [vmem:[%s85 + $0x2a8] sm:$0xff]
  %v586 = vld [vmem:[%s85 + $0x2b0] sm:$0xff]
  %v587 = vld [vmem:[%s85 + $0x2b8] sm:$0xff]
  %v588 = vld [vmem:[%s85 + $0x2c0] sm:$0xff]
  %v589 = vld [vmem:[%s85 + $0x2c8] sm:$0xff]
  %v590 = vld [vmem:[%s85 + $0x2d0] sm:$0xff]
  %v591 = vld [vmem:[%s85 + $0x2d8] sm:$0xff]
  %v592 = vld [vmem:[%s85 + $0x2e0] sm:$0xff]
  %v593 = vld [vmem:[%s85 + $0x2e8] sm:$0xff]
  %v594 = vld [vmem:[%s85 + $0x2f0] sm:$0xff]
  %v595 = vld [vmem:[%s85 + $0x2f8] sm:$0xff]
  %v596 = vld [vmem:[%s85 + $0x300] sm:$0xff]
  %v597 = vld [vmem:[%s85 + $0x308] sm:$0xff]
  %v598 = vld [vmem:[%s85 + $0x310] sm:$0xff]
  %v599 = vld [vmem:[%s85 + $0x318] sm:$0xff]
  %v600 = vld [vmem:[%s85 + $0x320] sm:$0xff]
  %v601 = vld [vmem:[%s85 + $0x328] sm:$0xff]
  %v602 = vld [vmem:[%s85 + $0x330] sm:$0xff]
  %v603 = vld [vmem:[%s85 + $0x338] sm:$0xff]
  %v604 = vld [vmem:[%s85 + $0x340] sm:$0xff]
  %v605 = vld [vmem:[%s85 + $0x348] sm:$0xff]
  %v606 = vld [vmem:[%s85 + $0x350] sm:$0xff]
  %v607 = vld [vmem:[%s85 + $0x358] sm:$0xff]
  %v608 = vld [vmem:[%s85 + $0x360] sm:$0xff]
  %v609 = vld [vmem:[%s85 + $0x368] sm:$0xff]
  %v610 = vld [vmem:[%s85 + $0x370] sm:$0xff]
  %v611 = vld [vmem:[%s85 + $0x378] sm:$0xff]
  %v612 = vld [vmem:[%s85 + $0x380] sm:$0xff]
  %v613 = vld [vmem:[%s85 + $0x388] sm:$0xff]
  %v614 = vld [vmem:[%s85 + $0x390] sm:$0xff]
  %v615 = vld [vmem:[%s85 + $0x398] sm:$0xff]
  %v616 = vld [vmem:[%s85 + $0x3a0] sm:$0xff]
  %v617 = vld [vmem:[%s85 + $0x3a8] sm:$0xff]
  %v618 = vld [vmem:[%s85 + $0x3b0] sm:$0xff]
  %v619 = vld [vmem:[%s85 + $0x3b8] sm:$0xff]
  %v620 = vld [vmem:[%s85 + $0x3c0] sm:$0xff]
  %v621 = vld [vmem:[%s85 + $0x3c8] sm:$0xff]
  %v622 = vld [vmem:[%s85 + $0x3d0] sm:$0xff]
  %v623 = vld [vmem:[%s85 + $0x3d8] sm:$0xff]
  %v624 = vld [vmem:[%s85 + $0x3e0] sm:$0xff]
  %v625 = vld [vmem:[%s85 + $0x3e8] sm:$0xff]
  %v626 = vld [vmem:[%s85 + $0x3f0] sm:$0xff]
  %v627 = vld [vmem:[%s85 + $0x3f8] sm:$0xff]
  %v628 = vld [vmem:[%s85 + $0x400] sm:$0xff]
  %v629 = vld [vmem:[%s85 + $0x408] sm:$0xff]
  %v630 = vld [vmem:[%s85 + $0x410] sm:$0xff]
  %v631 = vld [vmem:[%s85 + $0x418] sm:$0xff]
  %v632 = vld [vmem:[%s85 + $0x420] sm:$0xff]
  %v633 = vld [vmem:[%s85 + $0x428] sm:$0xff]
  %v634 = vld [vmem:[%s85 + $0x430] sm:$0xff]
  %v635 = vld [vmem:[%s85 + $0x438] sm:$0xff]
  %v636 = vld [vmem:[%s85 + $0x440] sm:$0xff]
  %v637 = vld [vmem:[%s85 + $0x448] sm:$0xff]
  %v638 = vld [vmem:[%s85 + $0x450] sm:$0xff]
  %v639 = vld [vmem:[%s85 + $0x458] sm:$0xff]
  %v640 = vld [vmem:[%s85 + $0x460] sm:$0xff]
  %v641 = vld [vmem:[%s85 + $0x468] sm:$0xff]
  %v642 = vld [vmem:[%s85 + $0x470] sm:$0xff]
  %v643 = vld [vmem:[%s85 + $0x478] sm:$0xff]
  %v644 = vld [vmem:[%s85 + $0x480] sm:$0xff]
  %v645 = vld [vmem:[%s85 + $0x488] sm:$0xff]
  %v646 = vld [vmem:[%s85 + $0x490] sm:$0xff]
  %v647 = vld [vmem:[%s85 + $0x498] sm:$0xff]
  %v648 = vld [vmem:[%s85 + $0x4a0] sm:$0xff]
  %v649 = vld [vmem:[%s85 + $0x4a8] sm:$0xff]
  %v650 = vld [vmem:[%s85 + $0x4b0] sm:$0xff]
  %v651 = vld [vmem:[%s85 + $0x4b8] sm:$0xff]
  %v652 = vld [vmem:[%s85 + $0x4c0] sm:$0xff]
  %v653 = vld [vmem:[%s85 + $0x4c8] sm:$0xff]
  %v654 = vld [vmem:[%s85 + $0x4d0] sm:$0xff]
  %v655 = vld [vmem:[%s85 + $0x4d8] sm:$0xff]
  %v656 = vld [vmem:[%s85 + $0x4e0] sm:$0xff]
  %v657 = vld [vmem:[%s85 + $0x4e8] sm:$0xff]
  %v658 = vld [vmem:[%s85 + $0x4f0] sm:$0xff]
  %v659 = vld [vmem:[%s85 + $0x4f8] sm:$0xff]
  %v660 = vld [vmem:[%s85 + $0x500] sm:$0xff]
  %v661 = vld [vmem:[%s85 + $0x508] sm:$0xff]
  %v662 = vld [vmem:[%s85 + $0x510] sm:$0xff]
  %v663 = vld [vmem:[%s85 + $0x518] sm:$0xff]
  %v664 = vld [vmem:[%s85 + $0x520] sm:$0xff]
  %v665 = vld [vmem:[%s85 + $0x528] sm:$0xff]
  %v666 = vld [vmem:[%s85 + $0x530] sm:$0xff]
  %v667 = vld [vmem:[%s85 + $0x538] sm:$0xff]
  %v668 = vld [vmem:[%s85 + $0x540] sm:$0xff]
  %v669 = vld [vmem:[%s85 + $0x548] sm:$0xff]
  %v670 = vld [vmem:[%s85 + $0x550] sm:$0xff]
  %v671 = vld [vmem:[%s85 + $0x558] sm:$0xff]
  %v672 = vld [vmem:[%s85 + $0x560] sm:$0xff]
  %v673 = vld [vmem:[%s85 + $0x568] sm:$0xff]
  %v674 = vld [vmem:[%s85 + $0x570] sm:$0xff]
  %v675 = vld [vmem:[%s85 + $0x578] sm:$0xff]
  %v676 = vld [vmem:[%s85 + $0x580] sm:$0xff]
  %v677 = vld [vmem:[%s85 + $0x588] sm:$0xff]
  %v678 = vld [vmem:[%s85 + $0x590] sm:$0xff]
  %v679 = vld [vmem:[%s85 + $0x598] sm:$0xff]
  %v680 = vld [vmem:[%s85 + $0x5a0] sm:$0xff]
  %v681 = vld [vmem:[%s85 + $0x5a8] sm:$0xff]
  %v682 = vld [vmem:[%s85 + $0x5b0] sm:$0xff]
  %v683 = vld [vmem:[%s85 + $0x5b8] sm:$0xff]
  %v684 = vld [vmem:[%s85 + $0x5c0] sm:$0xff]
  %v685 = vld [vmem:[%s85 + $0x5c8] sm:$0xff]
  %v686 = vld [vmem:[%s85 + $0x5d0] sm:$0xff]
  %v687 = vld [vmem:[%s85 + $0x5d8] sm:$0xff]
  %v688 = vld [vmem:[%s85 + $0x5e0] sm:$0xff]
  %v689 = vld [vmem:[%s85 + $0x5e8] sm:$0xff]
  %v690 = vld [vmem:[%s85 + $0x5f0] sm:$0xff]
  %v691 = vld [vmem:[%s85 + $0x5f8] sm:$0xff]
  %v692 = vld [vmem:[%s85 + $0x600] sm:$0xff]
  %v693 = vld [vmem:[%s85 + $0x608] sm:$0xff]
  %v694 = vld [vmem:[%s85 + $0x610] sm:$0xff]
  %v695 = vld [vmem:[%s85 + $0x618] sm:$0xff]
  %v696 = vld [vmem:[%s85 + $0x620] sm:$0xff]
  %v697 = vld [vmem:[%s85 + $0x628] sm:$0xff]
  %v698 = vld [vmem:[%s85 + $0x630] sm:$0xff]
  %v699 = vld [vmem:[%s85 + $0x638] sm:$0xff]
  %v700 = vld [vmem:[%s85 + $0x640] sm:$0xff]
  %v701 = vld [vmem:[%s85 + $0x648] sm:$0xff]
  %v702 = vld [vmem:[%s85 + $0x650] sm:$0xff]
  %v703 = vld [vmem:[%s85 + $0x658] sm:$0xff]
  %v704 = vld [vmem:[%s85 + $0x660] sm:$0xff]
  %v705 = vld [vmem:[%s85 + $0x668] sm:$0xff]
  %v706 = vld [vmem:[%s85 + $0x670] sm:$0xff]
  %v707 = vld [vmem:[%s85 + $0x678] sm:$0xff]
  %v708 = vld [vmem:[%s85 + $0x680] sm:$0xff]
  %v709 = vld [vmem:[%s85 + $0x688] sm:$0xff]
  %v710 = vld [vmem:[%s85 + $0x690] sm:$0xff]
  %v711 = vld [vmem:[%s85 + $0x698] sm:$0xff]
  %v712 = vld [vmem:[%s85 + $0x6a0] sm:$0xff]
  %v713 = vld [vmem:[%s85 + $0x6a8] sm:$0xff]
  %v714 = vld [vmem:[%s85 + $0x6b0] sm:$0xff]
  %v715 = vld [vmem:[%s85 + $0x6b8] sm:$0xff]
  %v716 = vld [vmem:[%s85 + $0x6c0] sm:$0xff]
  %v717 = vld [vmem:[%s85 + $0x6c8] sm:$0xff]
  %v718 = vld [vmem:[%s85 + $0x6d0] sm:$0xff]
  %v719 = vld [vmem:[%s85 + $0x6d8] sm:$0xff]
  %v720 = vld [vmem:[%s85 + $0x6e0] sm:$0xff]
  %v721 = vld [vmem:[%s85 + $0x6e8] sm:$0xff]
  %v722 = vld [vmem:[%s85 + $0x6f0] sm:$0xff]
  %v723 = vld [vmem:[%s85 + $0x6f8] sm:$0xff]
  %v724 = vld [vmem:[%s85 + $0x700] sm:$0xff]
  %v725 = vld [vmem:[%s85 + $0x708] sm:$0xff]
  %v726 = vld [vmem:[%s85 + $0x710] sm:$0xff]
  %v727 = vld [vmem:[%s85 + $0x718] sm:$0xff]
  %v728 = vld [vmem:[%s85 + $0x720] sm:$0xff]
  %v729 = vld [vmem:[%s85 + $0x728] sm:$0xff]
  %v730 = vld [vmem:[%s85 + $0x730] sm:$0xff]
  %v731 = vld [vmem:[%s85 + $0x738] sm:$0xff]
  %v732 = vld [vmem:[%s85 + $0x740] sm:$0xff]
  %v733 = vld [vmem:[%s85 + $0x748] sm:$0xff]
  %v734 = vld [vmem:[%s85 + $0x750] sm:$0xff]
  %v735 = vld [vmem:[%s85 + $0x758] sm:$0xff]
  %v736 = vld [vmem:[%s85 + $0x760] sm:$0xff]
  %v737 = vld [vmem:[%s85 + $0x768] sm:$0xff]
  %v738 = vld [vmem:[%s85 + $0x770] sm:$0xff]
  %v739 = vld [vmem:[%s85 + $0x778] sm:$0xff]
  %v740 = vld [vmem:[%s85 + $0x780] sm:$0xff]
  %v741 = vld [vmem:[%s85 + $0x788] sm:$0xff]
  %v742 = vld [vmem:[%s85 + $0x790] sm:$0xff]
  %v743 = vld [vmem:[%s85 + $0x798] sm:$0xff]
  %v744 = vld [vmem:[%s85 + $0x7a0] sm:$0xff]
  %v745 = vld [vmem:[%s85 + $0x7a8] sm:$0xff]
  %v746 = vld [vmem:[%s85 + $0x7b0] sm:$0xff]
  %v747 = vld [vmem:[%s85 + $0x7b8] sm:$0xff]
  %v748 = vld [vmem:[%s85 + $0x7c0] sm:$0xff]
  %v749 = vld [vmem:[%s85 + $0x7c8] sm:$0xff]
  %v750 = vld [vmem:[%s85 + $0x7d0] sm:$0xff]
  %v751 = vld [vmem:[%s85 + $0x7d8] sm:$0xff]
  %v752 = vld [vmem:[%s85 + $0x7e0] sm:$0xff]
  %v753 = vld [vmem:[%s85 + $0x7e8] sm:$0xff]
  %v754 = vld [vmem:[%s85 + $0x7f0] sm:$0xff]
  %v755 = vld [vmem:[%s85 + $0x7f8] sm:$0xff]
  %v756 = vld [vmem:[%s87] sm:$0xff]
  %v757 = vld [vmem:[%s89] sm:$0xf]
  %v758 = vld [vmem:[%s89 + $0x4] sm:$0xf]
  %v759 = vld [vmem:[%s89 + $0x8] sm:$0xf]
  %v760 = vld [vmem:[%s89 + $0xc] sm:$0xf]
  %v761 = vld [vmem:[%s89 + $0x10] sm:$0xf]
  %v762 = vld [vmem:[%s89 + $0x14] sm:$0xf]
  %v763 = vld [vmem:[%s89 + $0x18] sm:$0xf]
  %v764 = vld [vmem:[%s89 + $0x1c] sm:$0xf]
  %v765 = vld [vmem:[%s89 + $0x20] sm:$0xf]
  %v766 = vld [vmem:[%s89 + $0x24] sm:$0xf]
  %v767 = vld [vmem:[%s89 + $0x28] sm:$0xf]
  %v768 = vld [vmem:[%s89 + $0x2c] sm:$0xf]
  %v769 = vld [vmem:[%s89 + $0x30] sm:$0xf]
  %v770 = vld [vmem:[%s89 + $0x34] sm:$0xf]
  %v771 = vld [vmem:[%s89 + $0x38] sm:$0xf]
  %v772 = vld [vmem:[%s89 + $0x3c] sm:$0xf]
  %v773 = vld [vmem:[%s89 + $0x40] sm:$0xf]
  %v774 = vld [vmem:[%s89 + $0x44] sm:$0xf]
  %v775 = vld [vmem:[%s89 + $0x48] sm:$0xf]
  %v776 = vld [vmem:[%s89 + $0x4c] sm:$0xf]
  %v777 = vld [vmem:[%s89 + $0x50] sm:$0xf]
  %v778 = vld [vmem:[%s89 + $0x54] sm:$0xf]
  %v779 = vld [vmem:[%s89 + $0x58] sm:$0xf]
  %v780 = vld [vmem:[%s89 + $0x5c] sm:$0xf]
  %v781 = vld [vmem:[%s89 + $0x60] sm:$0xf]
  %v782 = vld [vmem:[%s89 + $0x64] sm:$0xf]
  %v783 = vld [vmem:[%s89 + $0x68] sm:$0xf]
  %v784 = vld [vmem:[%s89 + $0x6c] sm:$0xf]
  %v785 = vld [vmem:[%s89 + $0x70] sm:$0xf]
  %v786 = vld [vmem:[%s89 + $0x74] sm:$0xf]
  %v787 = vld [vmem:[%s89 + $0x78] sm:$0xf]
  %v788 = vld [vmem:[%s89 + $0x7c] sm:$0xf]
  %v789 = vld [vmem:[%s89 + $0x80] sm:$0xf]
  %v790 = vld [vmem:[%s89 + $0x84] sm:$0xf]
  %v791 = vld [vmem:[%s89 + $0x88] sm:$0xf]
  %v792 = vld [vmem:[%s89 + $0x8c] sm:$0xf]
  %v793 = vld [vmem:[%s89 + $0x90] sm:$0xf]
  %v794 = vld [vmem:[%s89 + $0x94] sm:$0xf]
  %v795 = vld [vmem:[%s89 + $0x98] sm:$0xf]
  %v796 = vld [vmem:[%s89 + $0x9c] sm:$0xf]
  %v797 = vld [vmem:[%s89 + $0xa0] sm:$0xf]
  %v798 = vld [vmem:[%s89 + $0xa4] sm:$0xf]
  %v799 = vld [vmem:[%s89 + $0xa8] sm:$0xf]
  %v800 = vld [vmem:[%s89 + $0xac] sm:$0xf]
  %v801 = vld [vmem:[%s89 + $0xb0] sm:$0xf]
  %v802 = vld [vmem:[%s89 + $0xb4] sm:$0xf]
  %v803 = vld [vmem:[%s89 + $0xb8] sm:$0xf]
  %v804 = vld [vmem:[%s89 + $0xbc] sm:$0xf]
  %v805 = vld [vmem:[%s89 + $0xc0] sm:$0xf]
  %v806 = vld [vmem:[%s89 + $0xc4] sm:$0xf]
  %v807 = vld [vmem:[%s89 + $0xc8] sm:$0xf]
  %v808 = vld [vmem:[%s89 + $0xcc] sm:$0xf]
  %v809 = vld [vmem:[%s89 + $0xd0] sm:$0xf]
  %v810 = vld [vmem:[%s89 + $0xd4] sm:$0xf]
  %v811 = vld [vmem:[%s89 + $0xd8] sm:$0xf]
  %v812 = vld [vmem:[%s89 + $0xdc] sm:$0xf]
  %v813 = vld [vmem:[%s89 + $0xe0] sm:$0xf]
  %v814 = vld [vmem:[%s89 + $0xe4] sm:$0xf]
  %v815 = vld [vmem:[%s89 + $0xe8] sm:$0xf]
  %v816 = vld [vmem:[%s89 + $0xec] sm:$0xf]
  %v817 = vld [vmem:[%s89 + $0xf0] sm:$0xf]
  %v818 = vld [vmem:[%s89 + $0xf4] sm:$0xf]
  %v819 = vld [vmem:[%s89 + $0xf8] sm:$0xf]
  %v820 = vld [vmem:[%s89 + $0xfc] sm:$0xf]
  %v821 = vld [vmem:[%s89 + $0x100] sm:$0xf]
  %v822 = vld [vmem:[%s89 + $0x104] sm:$0xf]
  %v823 = vld [vmem:[%s89 + $0x108] sm:$0xf]
  %v824 = vld [vmem:[%s89 + $0x10c] sm:$0xf]
  %v825 = vld [vmem:[%s89 + $0x110] sm:$0xf]
  %v826 = vld [vmem:[%s89 + $0x114] sm:$0xf]
  %v827 = vld [vmem:[%s89 + $0x118] sm:$0xf]
  %v828 = vld [vmem:[%s89 + $0x11c] sm:$0xf]
  %v829 = vld [vmem:[%s89 + $0x120] sm:$0xf]
  %v830 = vld [vmem:[%s89 + $0x124] sm:$0xf]
  %v831 = vld [vmem:[%s89 + $0x128] sm:$0xf]
  %v832 = vld [vmem:[%s89 + $0x12c] sm:$0xf]
  %v833 = vld [vmem:[%s89 + $0x130] sm:$0xf]
  %v834 = vld [vmem:[%s89 + $0x134] sm:$0xf]
  %v835 = vld [vmem:[%s89 + $0x138] sm:$0xf]
  %v836 = vld [vmem:[%s89 + $0x13c] sm:$0xf]
  %v837 = vld [vmem:[%s89 + $0x140] sm:$0xf]
  %v838 = vld [vmem:[%s89 + $0x144] sm:$0xf]
  %v839 = vld [vmem:[%s89 + $0x148] sm:$0xf]
  %v840 = vld [vmem:[%s89 + $0x14c] sm:$0xf]
  %v841 = vld [vmem:[%s89 + $0x150] sm:$0xf]
  %v842 = vld [vmem:[%s89 + $0x154] sm:$0xf]
  %v843 = vld [vmem:[%s89 + $0x158] sm:$0xf]
  %v844 = vld [vmem:[%s89 + $0x15c] sm:$0xf]
  %v845 = vld [vmem:[%s89 + $0x160] sm:$0xf]
  %v846 = vld [vmem:[%s89 + $0x164] sm:$0xf]
  %v847 = vld [vmem:[%s89 + $0x168] sm:$0xf]
  %v848 = vld [vmem:[%s89 + $0x16c] sm:$0xf]
  %v849 = vld [vmem:[%s89 + $0x170] sm:$0xf]
  %v850 = vld [vmem:[%s89 + $0x174] sm:$0xf]
  %v851 = vld [vmem:[%s89 + $0x178] sm:$0xf]
  %v852 = vld [vmem:[%s89 + $0x17c] sm:$0xf]
  %v853 = vld [vmem:[%s89 + $0x180] sm:$0xf]
  %v854 = vld [vmem:[%s89 + $0x184] sm:$0xf]
  %v855 = vld [vmem:[%s89 + $0x188] sm:$0xf]
  %v856 = vld [vmem:[%s89 + $0x18c] sm:$0xf]
  %v857 = vld [vmem:[%s89 + $0x190] sm:$0xf]
  %v858 = vld [vmem:[%s89 + $0x194] sm:$0xf]
  %v859 = vld [vmem:[%s89 + $0x198] sm:$0xf]
  %v860 = vld [vmem:[%s89 + $0x19c] sm:$0xf]
  %v861 = vld [vmem:[%s89 + $0x1a0] sm:$0xf]
  %v862 = vld [vmem:[%s89 + $0x1a4] sm:$0xf]
  %v863 = vld [vmem:[%s89 + $0x1a8] sm:$0xf]
  %v864 = vld [vmem:[%s89 + $0x1ac] sm:$0xf]
  %v865 = vld [vmem:[%s89 + $0x1b0] sm:$0xf]
  %v866 = vld [vmem:[%s89 + $0x1b4] sm:$0xf]
  %v867 = vld [vmem:[%s89 + $0x1b8] sm:$0xf]
  %v868 = vld [vmem:[%s89 + $0x1bc] sm:$0xf]
  %v869 = vld [vmem:[%s89 + $0x1c0] sm:$0xf]
  %v870 = vld [vmem:[%s89 + $0x1c4] sm:$0xf]
  %v871 = vld [vmem:[%s89 + $0x1c8] sm:$0xf]
  %v872 = vld [vmem:[%s89 + $0x1cc] sm:$0xf]
  %v873 = vld [vmem:[%s89 + $0x1d0] sm:$0xf]
  %v874 = vld [vmem:[%s89 + $0x1d4] sm:$0xf]
  %v875 = vld [vmem:[%s89 + $0x1d8] sm:$0xf]
  %v876 = vld [vmem:[%s89 + $0x1dc] sm:$0xf]
  %v877 = vld [vmem:[%s89 + $0x1e0] sm:$0xf]
  %v878 = vld [vmem:[%s89 + $0x1e4] sm:$0xf]
  %v879 = vld [vmem:[%s89 + $0x1e8] sm:$0xf]
  %v880 = vld [vmem:[%s89 + $0x1ec] sm:$0xf]
  %v881 = vld [vmem:[%s89 + $0x1f0] sm:$0xf]
  %v882 = vld [vmem:[%s89 + $0x1f4] sm:$0xf]
  %v883 = vld [vmem:[%s89 + $0x1f8] sm:$0xf]
  %v884 = vld [vmem:[%s89 + $0x1fc] sm:$0xf]
  %v885 = vld [vmem:[%s91] sm:$0x1]
  %886 = vmatprep.subr.mxu0 0.0
  %887 = vmatpush1.msra.mxu0 %v219
  %888 = vmatprep.subr.mxu0 0.0
  %889 = vmatpush1.msra.mxu0 %v220
  %890 = vmatprep.subr.mxu0 0.0
  %891 = vmatpush1.msra.mxu0 %v221
  %892 = vmatprep.subr.mxu0 0.0
  %893 = vmatpush1.msra.mxu0 %v222
  %894 = vmatprep.subr.mxu0 0.0
  %895 = vmatpush1.msra.mxu0 %v223
  %896 = vmatprep.subr.mxu0 0.0
  %897 = vmatpush1.msra.mxu0 %v224
  %898 = vmatprep.subr.mxu0 0.0
  %899 = vmatpush1.msra.mxu0 %v225
  %900 = vmatprep.subr.mxu0 0.0
  %901 = vmatpush1.msra.mxu0 %v226
  %902 = vmatprep.subr.mxu0 0.0
  %903 = vmatpush1.msra.mxu0 %v227
  %904 = vmatprep.subr.mxu0 0.0
  %905 = vmatpush1.msra.mxu0 %v228
  %906 = vmatprep.subr.mxu0 0.0
  %907 = vmatpush1.msra.mxu0 %v229
  %908 = vmatprep.subr.mxu0 0.0
  %909 = vmatpush1.msra.mxu0 %v230
  %910 = vmatprep.subr.mxu0 0.0
  %911 = vmatpush1.msra.mxu0 %v231
  %912 = vmatprep.subr.mxu0 0.0
  %913 = vmatpush1.msra.mxu0 %v232
  %914 = vmatprep.subr.mxu0 0.0
  %915 = vmatpush1.msra.mxu0 %v233
  %916 = vmatprep.subr.mxu0 0.0
  %917 = vmatpush1.msra.mxu0 %v234
  %918 = vmatprep.subr.mxu0 0.0
  %919 = vmatpush1.msra.mxu0 0.0
  %920 = vmatprep.subr.mxu0 0.0
  %921 = vmatpush1.msra.mxu0 0.0
  %922 = vmatprep.subr.mxu0 0.0
  %923 = vmatpush1.msra.mxu0 0.0
  %924 = vmatprep.subr.mxu0 0.0
  %925 = vmatpush1.msra.mxu0 0.0
  %926 = vmatprep.subr.mxu0 0.0
  %927 = vmatpush1.msra.mxu0 0.0
  %928 = vmatprep.subr.mxu0 0.0
  %929 = vmatpush1.msra.mxu0 0.0
  %930 = vmatprep.subr.mxu0 0.0
  %931 = vmatpush1.msra.mxu0 0.0
  %932 = vmatprep.subr.mxu0 0.0
  %933 = vmatpush1.msra.mxu0 0.0
  %934 = vmatprep.subr.mxu0 0.0
  %935 = vmatpush1.msra.mxu0 0.0
  %936 = vmatprep.subr.mxu0 0.0
  %937 = vmatpush1.msra.mxu0 0.0
  %938 = vmatprep.subr.mxu0 0.0
  %939 = vmatpush1.msra.mxu0 0.0
  %940 = vmatprep.subr.mxu0 0.0
  %941 = vmatpush1.msra.mxu0 0.0
  %942 = vmatprep.subr.mxu0 0.0
  %943 = vmatpush1.msra.mxu0 0.0
  %944 = vmatprep.subr.mxu0 0.0
  %945 = vmatpush1.msra.mxu0 0.0
  %946 = vmatprep.subr.mxu0 0.0
  %947 = vmatpush1.msra.mxu0 0.0
  %948 = vmatprep.subr.mxu0 0.0
  %949 = vmatpush1.msra.mxu0 0.0
  %950 = vmatprep.mubr.f32.mxu0 0.0
  %951 = vmatmul.mubr.f32.gmra.mrb[0].mxu0 %v201
  %v952 = vpop.f32.mrb[0].mxu0
  %v953 = vadd.f32 0.0, %v952
  %v954 = vpop.f32.mrb[0].mxu0
  %955 = vdwg.mxu0
  %956 = vmatprep.subr.mxu0 0.0
  %957 = vmatpush1.msra.mxu0 %v251
  %958 = vmatprep.subr.mxu0 0.0
  %959 = vmatpush1.msra.mxu0 %v252
  %960 = vmatprep.subr.mxu0 0.0
  %961 = vmatpush1.msra.mxu0 %v253
  %962 = vmatprep.subr.mxu0 0.0
  %963 = vmatpush1.msra.mxu0 %v254
  %964 = vmatprep.subr.mxu0 0.0
  %965 = vmatpush1.msra.mxu0 %v255
  %966 = vmatprep.subr.mxu0 0.0
  %967 = vmatpush1.msra.mxu0 %v256
  %968 = vmatprep.subr.mxu0 0.0
  %969 = vmatpush1.msra.mxu0 %v257
  %970 = vmatprep.subr.mxu0 0.0
  %971 = vmatpush1.msra.mxu0 %v258
  %972 = vmatprep.subr.mxu0 0.0
  %973 = vmatpush1.msra.mxu0 %v259
  %974 = vmatprep.subr.mxu0 0.0
  %975 = vmatpush1.msra.mxu0 %v260
  %976 = vmatprep.subr.mxu0 0.0
  %977 = vmatpush1.msra.mxu0 %v261
  %978 = vmatprep.subr.mxu0 0.0
  %979 = vmatpush1.msra.mxu0 %v262
  %980 = vmatprep.subr.mxu0 0.0
  %981 = vmatpush1.msra.mxu0 %v263
  %982 = vmatprep.subr.mxu0 0.0
  %983 = vmatpush1.msra.mxu0 %v264
  %984 = vmatprep.subr.mxu0 0.0
  %985 = vmatpush1.msra.mxu0 %v265
  %986 = vmatprep.subr.mxu0 0.0
  %987 = vmatpush1.msra.mxu0 %v266
  %988 = vmatprep.subr.mxu0 0.0
  %989 = vmatpush1.msra.mxu0 0.0
  %990 = vmatprep.subr.mxu0 0.0
  %991 = vmatpush1.msra.mxu0 0.0
  %992 = vmatprep.subr.mxu0 0.0
  %993 = vmatpush1.msra.mxu0 0.0
  %994 = vmatprep.subr.mxu0 0.0
  %995 = vmatpush1.msra.mxu0 0.0
  %996 = vmatprep.subr.mxu0 0.0
  %997 = vmatpush1.msra.mxu0 0.0
  %998 = vmatprep.subr.mxu0 0.0
  %999 = vmatpush1.msra.mxu0 0.0
  %1000 = vmatprep.subr.mxu0 0.0
  %1001 = vmatpush1.msra.mxu0 0.0
  %1002 = vmatprep.subr.mxu0 0.0
  %1003 = vmatpush1.msra.mxu0 0.0
  %1004 = vmatprep.subr.mxu0 0.0
  %1005 = vmatpush1.msra.mxu0 0.0
  %1006 = vmatprep.subr.mxu0 0.0
  %1007 = vmatpush1.msra.mxu0 0.0
  %1008 = vmatprep.subr.mxu0 0.0
  %1009 = vmatpush1.msra.mxu0 0.0
  %1010 = vmatprep.subr.mxu0 0.0
  %1011 = vmatpush1.msra.mxu0 0.0
  %1012 = vmatprep.subr.mxu0 0.0
  %1013 = vmatpush1.msra.mxu0 0.0
  %1014 = vmatprep.subr.mxu0 0.0
  %1015 = vmatpush1.msra.mxu0 0.0
  %1016 = vmatprep.subr.mxu0 0.0
  %1017 = vmatpush1.msra.mxu0 0.0
  %1018 = vmatprep.subr.mxu0 0.0
  %1019 = vmatpush1.msra.mxu0 0.0
  %1020 = vmatprep.mubr.f32.mxu0 0.0
  %1021 = vmatmul.mubr.f32.gmra.mrb[0].mxu0 %v202
  %v1022 = vpop.f32.mrb[0].mxu0
  %v1023 = vadd.f32 0.0, %v1022
  %v1024 = vpop.f32.mrb[0].mxu0
  %1025 = vdwg.mxu0
  %vm1026 = vcmask 64512
  %v1028 = vsel %vm1026, %v197, 0
  %1030 = vmatprep.subr.mxu0 0.0
  %1031 = vmatpush1.msra.mxu0 %v1023
  %1032 = vmatprep.subr.mxu0 0.0
  %1033 = vmatpush1.msra.mxu0 0.0
  %1034 = vmatprep.subr.mxu0 0.0
  %1035 = vmatpush1.msra.mxu0 0.0
  %1036 = vmatprep.subr.mxu0 0.0
  %1037 = vmatpush1.msra.mxu0 0.0
  %1038 = vmatprep.subr.mxu0 0.0
  %1039 = vmatpush1.msra.mxu0 0.0
  %1040 = vmatprep.subr.mxu0 0.0
  %1041 = vmatpush1.msra.mxu0 0.0
  %1042 = vmatprep.subr.mxu0 0.0
  %1043 = vmatpush1.msra.mxu0 0.0
  %1044 = vmatprep.subr.mxu0 0.0
  %1045 = vmatpush1.msra.mxu0 0.0
  %1046 = vmatprep.subr.mxu0 0.0
  %1047 = vmatpush1.msra.mxu0 0.0
  %1048 = vmatprep.subr.mxu0 0.0
  %1049 = vmatpush1.msra.mxu0 0.0
  %1050 = vmatprep.subr.mxu0 0.0
  %1051 = vmatpush1.msra.mxu0 0.0
  %1052 = vmatprep.subr.mxu0 0.0
  %1053 = vmatpush1.msra.mxu0 0.0
  %1054 = vmatprep.subr.mxu0 0.0
  %1055 = vmatpush1.msra.mxu0 0.0
  %1056 = vmatprep.subr.mxu0 0.0
  %1057 = vmatpush1.msra.mxu0 0.0
  %1058 = vmatprep.subr.mxu0 0.0
  %1059 = vmatpush1.msra.mxu0 0.0
  %1060 = vmatprep.subr.mxu0 0.0
  %1061 = vmatpush1.msra.mxu0 0.0
  %1062 = vmatprep.subr.mxu0 0.0
  %1063 = vmatpush1.msra.mxu0 0.0
  %1064 = vmatprep.subr.mxu0 0.0
  %1065 = vmatpush1.msra.mxu0 0.0
  %1066 = vmatprep.subr.mxu0 0.0
  %1067 = vmatpush1.msra.mxu0 0.0
  %1068 = vmatprep.subr.mxu0 0.0
  %1069 = vmatpush1.msra.mxu0 0.0
  %1070 = vmatprep.subr.mxu0 0.0
  %1071 = vmatpush1.msra.mxu0 0.0
  %1072 = vmatprep.subr.mxu0 0.0
  %1073 = vmatpush1.msra.mxu0 0.0
  %1074 = vmatprep.subr.mxu0 0.0
  %1075 = vmatpush1.msra.mxu0 0.0
  %1076 = vmatprep.subr.mxu0 0.0
  %1077 = vmatpush1.msra.mxu0 0.0
  %1078 = vmatprep.subr.mxu0 0.0
  %1079 = vmatpush1.msra.mxu0 0.0
  %1080 = vmatprep.subr.mxu0 0.0
  %1081 = vmatpush1.msra.mxu0 0.0
  %1082 = vmatprep.subr.mxu0 0.0
  %1083 = vmatpush1.msra.mxu0 0.0
  %1084 = vmatprep.subr.mxu0 0.0
  %1085 = vmatpush1.msra.mxu0 0.0
  %1086 = vmatprep.subr.mxu0 0.0
  %1087 = vmatpush1.msra.mxu0 0.0
  %1088 = vmatprep.subr.mxu0 0.0
  %1089 = vmatpush1.msra.mxu0 0.0
  %1090 = vmatprep.subr.mxu0 0.0
  %1091 = vmatpush1.msra.mxu0 0.0
  %1092 = vmatprep.subr.mxu0 0.0
  %1093 = vmatpush1.msra.mxu0 0.0
  %1094 = vmatprep.mubr.f32.mxu0 0.0
  %1095 = vmatmul.mubr.f32.gmra.mrb[0].mxu0 %v1028
  %v1096 = vpop.f32.mrb[0].mxu0
  %v1097 = vadd.f32 0.0, %v1096
  %v1098 = vpop.f32.mrb[0].mxu0
  %1099 = vdwg.mxu0
  %v1101 = vsel %vm1026, %v195, 0
  %1103 = vmatprep.subr.mxu0 0.0
  %1104 = vmatpush1.msra.mxu0 %v953
  %1105 = vmatprep.subr.mxu0 0.0
  %1106 = vmatpush1.msra.mxu0 0.0
  %1107 = vmatprep.subr.mxu0 0.0
  %1108 = vmatpush1.msra.mxu0 0.0
  %1109 = vmatprep.subr.mxu0 0.0
  %1110 = vmatpush1.msra.mxu0 0.0
  %1111 = vmatprep.subr.mxu0 0.0
  %1112 = vmatpush1.msra.mxu0 0.0
  %1113 = vmatprep.subr.mxu0 0.0
  %1114 = vmatpush1.msra.mxu0 0.0
  %1115 = vmatprep.subr.mxu0 0.0
  %1116 = vmatpush1.msra.mxu0 0.0
  %1117 = vmatprep.subr.mxu0 0.0
  %1118 = vmatpush1.msra.mxu0 0.0
  %1119 = vmatprep.subr.mxu0 0.0
  %1120 = vmatpush1.msra.mxu0 0.0
  %1121 = vmatprep.subr.mxu0 0.0
  %1122 = vmatpush1.msra.mxu0 0.0
  %1123 = vmatprep.subr.mxu0 0.0
  %1124 = vmatpush1.msra.mxu0 0.0
  %1125 = vmatprep.subr.mxu0 0.0
  %1126 = vmatpush1.msra.mxu0 0.0
  %1127 = vmatprep.subr.mxu0 0.0
  %1128 = vmatpush1.msra.mxu0 0.0
  %1129 = vmatprep.subr.mxu0 0.0
  %1130 = vmatpush1.msra.mxu0 0.0
  %1131 = vmatprep.subr.mxu0 0.0
  %1132 = vmatpush1.msra.mxu0 0.0
  %1133 = vmatprep.subr.mxu0 0.0
  %1134 = vmatpush1.msra.mxu0 0.0
  %1135 = vmatprep.subr.mxu0 0.0
  %1136 = vmatpush1.msra.mxu0 0.0
  %1137 = vmatprep.subr.mxu0 0.0
  %1138 = vmatpush1.msra.mxu0 0.0
  %1139 = vmatprep.subr.mxu0 0.0
  %1140 = vmatpush1.msra.mxu0 0.0
  %1141 = vmatprep.subr.mxu0 0.0
  %1142 = vmatpush1.msra.mxu0 0.0
  %1143 = vmatprep.subr.mxu0 0.0
  %1144 = vmatpush1.msra.mxu0 0.0
  %1145 = vmatprep.subr.mxu0 0.0
  %1146 = vmatpush1.msra.mxu0 0.0
  %1147 = vmatprep.subr.mxu0 0.0
  %1148 = vmatpush1.msra.mxu0 0.0
  %1149 = vmatprep.subr.mxu0 0.0
  %1150 = vmatpush1.msra.mxu0 0.0
  %1151 = vmatprep.subr.mxu0 0.0
  %1152 = vmatpush1.msra.mxu0 0.0
  %1153 = vmatprep.subr.mxu0 0.0
  %1154 = vmatpush1.msra.mxu0 0.0
  %1155 = vmatprep.subr.mxu0 0.0
  %1156 = vmatpush1.msra.mxu0 0.0
  %1157 = vmatprep.subr.mxu0 0.0
  %1158 = vmatpush1.msra.mxu0 0.0
  %1159 = vmatprep.subr.mxu0 0.0
  %1160 = vmatpush1.msra.mxu0 0.0
  %1161 = vmatprep.subr.mxu0 0.0
  %1162 = vmatpush1.msra.mxu0 0.0
  %1163 = vmatprep.subr.mxu0 0.0
  %1164 = vmatpush1.msra.mxu0 0.0
  %1165 = vmatprep.subr.mxu0 0.0
  %1166 = vmatpush1.msra.mxu0 0.0
  %1167 = vmatprep.mubr.f32.mxu0 0.0
  %1168 = vmatmul.mubr.f32.gmra.mrb[0].mxu0 %v1101
  %v1169 = vpop.f32.mrb[0].mxu0
  %v1170 = vadd.f32 %v1097, %v1169
  %v1171 = vpop.f32.mrb[0].mxu0
  %1172 = vdwg.mxu0
  %v1174 = vlaneseq
  %v1175 = vshrl.u32 %v1174, 7
  %v1176 = vsub.s32 0, %v1175
  %v1177 = vrot.slane %v299, %v1176
  %v1179 = vadd.f32 %v1170, %v1177
  %1180 = vmatprep.subr.mxu0 0.0
  %1181 = vmatpush1.msra.mxu0 %v203
  %1182 = vmatprep.subr.mxu0 0.0
  %1183 = vmatpush1.msra.mxu0 %v204
  %1184 = vmatprep.subr.mxu0 0.0
  %1185 = vmatpush1.msra.mxu0 %v205
  %1186 = vmatprep.subr.mxu0 0.0
  %1187 = vmatpush1.msra.mxu0 %v206
  %1188 = vmatprep.subr.mxu0 0.0
  %1189 = vmatpush1.msra.mxu0 %v207
  %1190 = vmatprep.subr.mxu0 0.0
  %1191 = vmatpush1.msra.mxu0 %v208
  %1192 = vmatprep.subr.mxu0 0.0
  %1193 = vmatpush1.msra.mxu0 %v209
  %1194 = vmatprep.subr.mxu0 0.0
  %1195 = vmatpush1.msra.mxu0 %v210
  %1196 = vmatprep.subr.mxu0 0.0
  %1197 = vmatpush1.msra.mxu0 %v211
  %1198 = vmatprep.subr.mxu0 0.0
  %1199 = vmatpush1.msra.mxu0 %v212
  %1200 = vmatprep.subr.mxu0 0.0
  %1201 = vmatpush1.msra.mxu0 %v213
  %1202 = vmatprep.subr.mxu0 0.0
  %1203 = vmatpush1.msra.mxu0 %v214
  %1204 = vmatprep.subr.mxu0 0.0
  %1205 = vmatpush1.msra.mxu0 %v215
  %1206 = vmatprep.subr.mxu0 0.0
  %1207 = vmatpush1.msra.mxu0 %v216
  %1208 = vmatprep.subr.mxu0 0.0
  %1209 = vmatpush1.msra.mxu0 %v217
  %1210 = vmatprep.subr.mxu0 0.0
  %1211 = vmatpush1.msra.mxu0 %v218
  %1212 = vmatprep.subr.mxu0 0.0
  %1213 = vmatpush1.msra.mxu0 0.0
  %1214 = vmatprep.subr.mxu0 0.0
  %1215 = vmatpush1.msra.mxu0 0.0
  %1216 = vmatprep.subr.mxu0 0.0
  %1217 = vmatpush1.msra.mxu0 0.0
  %1218 = vmatprep.subr.mxu0 0.0
  %1219 = vmatpush1.msra.mxu0 0.0
  %1220 = vmatprep.subr.mxu0 0.0
  %1221 = vmatpush1.msra.mxu0 0.0
  %1222 = vmatprep.subr.mxu0 0.0
  %1223 = vmatpush1.msra.mxu0 0.0
  %1224 = vmatprep.subr.mxu0 0.0
  %1225 = vmatpush1.msra.mxu0 0.0
  %1226 = vmatprep.subr.mxu0 0.0
  %1227 = vmatpush1.msra.mxu0 0.0
  %1228 = vmatprep.subr.mxu0 0.0
  %1229 = vmatpush1.msra.mxu0 0.0
  %1230 = vmatprep.subr.mxu0 0.0
  %1231 = vmatpush1.msra.mxu0 0.0
  %1232 = vmatprep.subr.mxu0 0.0
  %1233 = vmatpush1.msra.mxu0 0.0
  %1234 = vmatprep.subr.mxu0 0.0
  %1235 = vmatpush1.msra.mxu0 0.0
  %1236 = vmatprep.subr.mxu0 0.0
  %1237 = vmatpush1.msra.mxu0 0.0
  %1238 = vmatprep.subr.mxu0 0.0
  %1239 = vmatpush1.msra.mxu0 0.0
  %1240 = vmatprep.subr.mxu0 0.0
  %1241 = vmatpush1.msra.mxu0 0.0
  %1242 = vmatprep.subr.mxu0 0.0
  %1243 = vmatpush1.msra.mxu0 0.0
  %1244 = vmatprep.mubr.f32.mxu0 0.0
  %1245 = vmatmul.mubr.f32.gmra.mrb[0].mxu0 %v200
  %v1246 = vpop.f32.mrb[0].mxu0
  %v1247 = vadd.f32 0.0, %v1246
  %v1248 = vpop.f32.mrb[0].mxu0
  %1249 = vdwg.mxu0
  %1250 = vmatprep.subr.mxu0 0.0
  %1251 = vmatpush1.msra.mxu0 %v267
  %1252 = vmatprep.subr.mxu0 0.0
  %1253 = vmatpush1.msra.mxu0 %v268
  %1254 = vmatprep.subr.mxu0 0.0
  %1255 = vmatpush1.msra.mxu0 %v269
  %1256 = vmatprep.subr.mxu0 0.0
  %1257 = vmatpush1.msra.mxu0 %v270
  %1258 = vmatprep.subr.mxu0 0.0
  %1259 = vmatpush1.msra.mxu0 %v271
  %1260 = vmatprep.subr.mxu0 0.0
  %1261 = vmatpush1.msra.mxu0 %v272
  %1262 = vmatprep.subr.mxu0 0.0
  %1263 = vmatpush1.msra.mxu0 %v273
  %1264 = vmatprep.subr.mxu0 0.0
  %1265 = vmatpush1.msra.mxu0 %v274
  %1266 = vmatprep.subr.mxu0 0.0
  %1267 = vmatpush1.msra.mxu0 %v275
  %1268 = vmatprep.subr.mxu0 0.0
  %1269 = vmatpush1.msra.mxu0 %v276
  %1270 = vmatprep.subr.mxu0 0.0
  %1271 = vmatpush1.msra.mxu0 %v277
  %1272 = vmatprep.subr.mxu0 0.0
  %1273 = vmatpush1.msra.mxu0 %v278
  %1274 = vmatprep.subr.mxu0 0.0
  %1275 = vmatpush1.msra.mxu0 %v279
  %1276 = vmatprep.subr.mxu0 0.0
  %1277 = vmatpush1.msra.mxu0 %v280
  %1278 = vmatprep.subr.mxu0 0.0
  %1279 = vmatpush1.msra.mxu0 %v281
  %1280 = vmatprep.subr.mxu0 0.0
  %1281 = vmatpush1.msra.mxu0 %v282
  %1282 = vmatprep.subr.mxu0 0.0
  %1283 = vmatpush1.msra.mxu0 0.0
  %1284 = vmatprep.subr.mxu0 0.0
  %1285 = vmatpush1.msra.mxu0 0.0
  %1286 = vmatprep.subr.mxu0 0.0
  %1287 = vmatpush1.msra.mxu0 0.0
  %1288 = vmatprep.subr.mxu0 0.0
  %1289 = vmatpush1.msra.mxu0 0.0
  %1290 = vmatprep.subr.mxu0 0.0
  %1291 = vmatpush1.msra.mxu0 0.0
  %1292 = vmatprep.subr.mxu0 0.0
  %1293 = vmatpush1.msra.mxu0 0.0
  %1294 = vmatprep.subr.mxu0 0.0
  %1295 = vmatpush1.msra.mxu0 0.0
  %1296 = vmatprep.subr.mxu0 0.0
  %1297 = vmatpush1.msra.mxu0 0.0
  %1298 = vmatprep.subr.mxu0 0.0
  %1299 = vmatpush1.msra.mxu0 0.0
  %1300 = vmatprep.subr.mxu0 0.0
  %1301 = vmatpush1.msra.mxu0 0.0
  %1302 = vmatprep.subr.mxu0 0.0
  %1303 = vmatpush1.msra.mxu0 0.0
  %1304 = vmatprep.subr.mxu0 0.0
  %1305 = vmatpush1.msra.mxu0 0.0
  %1306 = vmatprep.subr.mxu0 0.0
  %1307 = vmatpush1.msra.mxu0 0.0
  %1308 = vmatprep.subr.mxu0 0.0
  %1309 = vmatpush1.msra.mxu0 0.0
  %1310 = vmatprep.subr.mxu0 0.0
  %1311 = vmatpush1.msra.mxu0 0.0
  %1312 = vmatprep.subr.mxu0 0.0
  %1313 = vmatpush1.msra.mxu0 0.0
  %1314 = vmatprep.mubr.f32.mxu0 0.0
  %1315 = vmatmul.mubr.f32.gmra.mrb[0].mxu0 %v202
  %v1316 = vpop.f32.mrb[0].mxu0
  %v1317 = vadd.f32 0.0, %v1316
  %v1318 = vpop.f32.mrb[0].mxu0
  %1319 = vdwg.mxu0
  %v1321 = vsel %vm1026, %v198, 0
  %1323 = vmatprep.subr.mxu0 0.0
  %1324 = vmatpush1.msra.mxu0 %v1317
  %1325 = vmatprep.subr.mxu0 0.0
  %1326 = vmatpush1.msra.mxu0 0.0
  %1327 = vmatprep.subr.mxu0 0.0
  %1328 = vmatpush1.msra.mxu0 0.0
  %1329 = vmatprep.subr.mxu0 0.0
  %1330 = vmatpush1.msra.mxu0 0.0
  %1331 = vmatprep.subr.mxu0 0.0
  %1332 = vmatpush1.msra.mxu0 0.0
  %1333 = vmatprep.subr.mxu0 0.0
  %1334 = vmatpush1.msra.mxu0 0.0
  %1335 = vmatprep.subr.mxu0 0.0
  %1336 = vmatpush1.msra.mxu0 0.0
  %1337 = vmatprep.subr.mxu0 0.0
  %1338 = vmatpush1.msra.mxu0 0.0
  %1339 = vmatprep.subr.mxu0 0.0
  %1340 = vmatpush1.msra.mxu0 0.0
  %1341 = vmatprep.subr.mxu0 0.0
  %1342 = vmatpush1.msra.mxu0 0.0
  %1343 = vmatprep.subr.mxu0 0.0
  %1344 = vmatpush1.msra.mxu0 0.0
  %1345 = vmatprep.subr.mxu0 0.0
  %1346 = vmatpush1.msra.mxu0 0.0
  %1347 = vmatprep.subr.mxu0 0.0
  %1348 = vmatpush1.msra.mxu0 0.0
  %1349 = vmatprep.subr.mxu0 0.0
  %1350 = vmatpush1.msra.mxu0 0.0
  %1351 = vmatprep.subr.mxu0 0.0
  %1352 = vmatpush1.msra.mxu0 0.0
  %1353 = vmatprep.subr.mxu0 0.0
  %1354 = vmatpush1.msra.mxu0 0.0
  %1355 = vmatprep.subr.mxu0 0.0
  %1356 = vmatpush1.msra.mxu0 0.0
  %1357 = vmatprep.subr.mxu0 0.0
  %1358 = vmatpush1.msra.mxu0 0.0
  %1359 = vmatprep.subr.mxu0 0.0
  %1360 = vmatpush1.msra.mxu0 0.0
  %1361 = vmatprep.subr.mxu0 0.0
  %1362 = vmatpush1.msra.mxu0 0.0
  %1363 = vmatprep.subr.mxu0 0.0
  %1364 = vmatpush1.msra.mxu0 0.0
  %1365 = vmatprep.subr.mxu0 0.0
  %1366 = vmatpush1.msra.mxu0 0.0
  %1367 = vmatprep.subr.mxu0 0.0
  %1368 = vmatpush1.msra.mxu0 0.0
  %1369 = vmatprep.subr.mxu0 0.0
  %1370 = vmatpush1.msra.mxu0 0.0
  %1371 = vmatprep.subr.mxu0 0.0
  %1372 = vmatpush1.msra.mxu0 0.0
  %1373 = vmatprep.subr.mxu0 0.0
  %1374 = vmatpush1.msra.mxu0 0.0
  %1375 = vmatprep.subr.mxu0 0.0
  %1376 = vmatpush1.msra.mxu0 0.0
  %1377 = vmatprep.subr.mxu0 0.0
  %1378 = vmatpush1.msra.mxu0 0.0
  %1379 = vmatprep.subr.mxu0 0.0
  %1380 = vmatpush1.msra.mxu0 0.0
  %1381 = vmatprep.subr.mxu0 0.0
  %1382 = vmatpush1.msra.mxu0 0.0
  %1383 = vmatprep.subr.mxu0 0.0
  %1384 = vmatpush1.msra.mxu0 0.0
  %1385 = vmatprep.subr.mxu0 0.0
  %1386 = vmatpush1.msra.mxu0 0.0
  %1387 = vmatprep.mubr.f32.mxu0 0.0
  %1388 = vmatmul.mubr.f32.gmra.mrb[0].mxu0 %v1321
  %v1389 = vpop.f32.mrb[0].mxu0
  %v1390 = vadd.f32 0.0, %v1389
  %v1391 = vpop.f32.mrb[0].mxu0
  %1392 = vdwg.mxu0
  %v1394 = vsel %vm1026, %v194, 0
  %1396 = vmatprep.subr.mxu0 0.0
  %1397 = vmatpush1.msra.mxu0 %v1247
  %1398 = vmatprep.subr.mxu0 0.0
  %1399 = vmatpush1.msra.mxu0 0.0
  %1400 = vmatprep.subr.mxu0 0.0
  %1401 = vmatpush1.msra.mxu0 0.0
  %1402 = vmatprep.subr.mxu0 0.0
  %1403 = vmatpush1.msra.mxu0 0.0
  %1404 = vmatprep.subr.mxu0 0.0
  %1405 = vmatpush1.msra.mxu0 0.0
  %1406 = vmatprep.subr.mxu0 0.0
  %1407 = vmatpush1.msra.mxu0 0.0
  %1408 = vmatprep.subr.mxu0 0.0
  %1409 = vmatpush1.msra.mxu0 0.0
  %1410 = vmatprep.subr.mxu0 0.0
  %1411 = vmatpush1.msra.mxu0 0.0
  %1412 = vmatprep.subr.mxu0 0.0
  %1413 = vmatpush1.msra.mxu0 0.0
  %1414 = vmatprep.subr.mxu0 0.0
  %1415 = vmatpush1.msra.mxu0 0.0
  %1416 = vmatprep.subr.mxu0 0.0
  %1417 = vmatpush1.msra.mxu0 0.0
  %1418 = vmatprep.subr.mxu0 0.0
  %1419 = vmatpush1.msra.mxu0 0.0
  %1420 = vmatprep.subr.mxu0 0.0
  %1421 = vmatpush1.msra.mxu0 0.0
  %1422 = vmatprep.subr.mxu0 0.0
  %1423 = vmatpush1.msra.mxu0 0.0
  %1424 = vmatprep.subr.mxu0 0.0
  %1425 = vmatpush1.msra.mxu0 0.0
  %1426 = vmatprep.subr.mxu0 0.0
  %1427 = vmatpush1.msra.mxu0 0.0
  %1428 = vmatprep.subr.mxu0 0.0
  %1429 = vmatpush1.msra.mxu0 0.0
  %1430 = vmatprep.subr.mxu0 0.0
  %1431 = vmatpush1.msra.mxu0 0.0
  %1432 = vmatprep.subr.mxu0 0.0
  %1433 = vmatpush1.msra.mxu0 0.0
  %1434 = vmatprep.subr.mxu0 0.0
  %1435 = vmatpush1.msra.mxu0 0.0
  %1436 = vmatprep.subr.mxu0 0.0
  %1437 = vmatpush1.msra.mxu0 0.0
  %1438 = vmatprep.subr.mxu0 0.0
  %1439 = vmatpush1.msra.mxu0 0.0
  %1440 = vmatprep.subr.mxu0 0.0
  %1441 = vmatpush1.msra.mxu0 0.0
  %1442 = vmatprep.subr.mxu0 0.0
  %1443 = vmatpush1.msra.mxu0 0.0
  %1444 = vmatprep.subr.mxu0 0.0
  %1445 = vmatpush1.msra.mxu0 0.0
  %1446 = vmatprep.subr.mxu0 0.0
  %1447 = vmatpush1.msra.mxu0 0.0
  %1448 = vmatprep.subr.mxu0 0.0
  %1449 = vmatpush1.msra.mxu0 0.0
  %1450 = vmatprep.subr.mxu0 0.0
  %1451 = vmatpush1.msra.mxu0 0.0
  %1452 = vmatprep.subr.mxu0 0.0
  %1453 = vmatpush1.msra.mxu0 0.0
  %1454 = vmatprep.subr.mxu0 0.0
  %1455 = vmatpush1.msra.mxu0 0.0
  %1456 = vmatprep.subr.mxu0 0.0
  %1457 = vmatpush1.msra.mxu0 0.0
  %1458 = vmatprep.subr.mxu0 0.0
  %1459 = vmatpush1.msra.mxu0 0.0
  %1460 = vmatprep.mubr.f32.mxu0 0.0
  %1461 = vmatmul.mubr.f32.gmra.mrb[0].mxu0 %v1394
  %v1462 = vpop.f32.mrb[0].mxu0
  %v1463 = vadd.f32 %v1390, %v1462
  %v1464 = vpop.f32.mrb[0].mxu0
  %1465 = vdwg.mxu0
  %v1467 = vlaneseq
  %v1468 = vshrl.u32 %v1467, 7
  %v1469 = vsub.s32 0, %v1468
  %v1470 = vrot.slane %v300, %v1469
  %v1472 = vadd.f32 %v1463, %v1470
  %1473 = vmatprep.subr.mxu0 0.0
  %1474 = vmatpush1.msra.mxu0 %v235
  %1475 = vmatprep.subr.mxu0 0.0
  %1476 = vmatpush1.msra.mxu0 %v236
  %1477 = vmatprep.subr.mxu0 0.0
  %1478 = vmatpush1.msra.mxu0 %v237
  %1479 = vmatprep.subr.mxu0 0.0
  %1480 = vmatpush1.msra.mxu0 %v238
  %1481 = vmatprep.subr.mxu0 0.0
  %1482 = vmatpush1.msra.mxu0 %v239
  %1483 = vmatprep.subr.mxu0 0.0
  %1484 = vmatpush1.msra.mxu0 %v240
  %1485 = vmatprep.subr.mxu0 0.0
  %1486 = vmatpush1.msra.mxu0 %v241
  %1487 = vmatprep.subr.mxu0 0.0
  %1488 = vmatpush1.msra.mxu0 %v242
  %1489 = vmatprep.subr.mxu0 0.0
  %1490 = vmatpush1.msra.mxu0 %v243
  %1491 = vmatprep.subr.mxu0 0.0
  %1492 = vmatpush1.msra.mxu0 %v244
  %1493 = vmatprep.subr.mxu0 0.0
  %1494 = vmatpush1.msra.mxu0 %v245
  %1495 = vmatprep.subr.mxu0 0.0
  %1496 = vmatpush1.msra.mxu0 %v246
  %1497 = vmatprep.subr.mxu0 0.0
  %1498 = vmatpush1.msra.mxu0 %v247
  %1499 = vmatprep.subr.mxu0 0.0
  %1500 = vmatpush1.msra.mxu0 %v248
  %1501 = vmatprep.subr.mxu0 0.0
  %1502 = vmatpush1.msra.mxu0 %v249
  %1503 = vmatprep.subr.mxu0 0.0
  %1504 = vmatpush1.msra.mxu0 %v250
  %1505 = vmatprep.subr.mxu0 0.0
  %1506 = vmatpush1.msra.mxu0 0.0
  %1507 = vmatprep.subr.mxu0 0.0
  %1508 = vmatpush1.msra.mxu0 0.0
  %1509 = vmatprep.subr.mxu0 0.0
  %1510 = vmatpush1.msra.mxu0 0.0
  %1511 = vmatprep.subr.mxu0 0.0
  %1512 = vmatpush1.msra.mxu0 0.0
  %1513 = vmatprep.subr.mxu0 0.0
  %1514 = vmatpush1.msra.mxu0 0.0
  %1515 = vmatprep.subr.mxu0 0.0
  %1516 = vmatpush1.msra.mxu0 0.0
  %1517 = vmatprep.subr.mxu0 0.0
  %1518 = vmatpush1.msra.mxu0 0.0
  %1519 = vmatprep.subr.mxu0 0.0
  %1520 = vmatpush1.msra.mxu0 0.0
  %1521 = vmatprep.subr.mxu0 0.0
  %1522 = vmatpush1.msra.mxu0 0.0
  %1523 = vmatprep.subr.mxu0 0.0
  %1524 = vmatpush1.msra.mxu0 0.0
  %1525 = vmatprep.subr.mxu0 0.0
  %1526 = vmatpush1.msra.mxu0 0.0
  %1527 = vmatprep.subr.mxu0 0.0
  %1528 = vmatpush1.msra.mxu0 0.0
  %1529 = vmatprep.subr.mxu0 0.0
  %1530 = vmatpush1.msra.mxu0 0.0
  %1531 = vmatprep.subr.mxu0 0.0
  %1532 = vmatpush1.msra.mxu0 0.0
  %1533 = vmatprep.subr.mxu0 0.0
  %1534 = vmatpush1.msra.mxu0 0.0
  %1535 = vmatprep.subr.mxu0 0.0
  %1536 = vmatpush1.msra.mxu0 0.0
  %1537 = vmatprep.mubr.f32.mxu0 0.0
  %1538 = vmatmul.mubr.f32.gmra.mrb[0].mxu0 %v200
  %v1539 = vpop.f32.mrb[0].mxu0
  %v1540 = vadd.f32 0.0, %v1539
  %v1541 = vpop.f32.mrb[0].mxu0
  %1542 = vdwg.mxu0
  %1543 = vmatprep.subr.mxu0 0.0
  %1544 = vmatpush1.msra.mxu0 %v283
  %1545 = vmatprep.subr.mxu0 0.0
  %1546 = vmatpush1.msra.mxu0 %v284
  %1547 = vmatprep.subr.mxu0 0.0
  %1548 = vmatpush1.msra.mxu0 %v285
  %1549 = vmatprep.subr.mxu0 0.0
  %1550 = vmatpush1.msra.mxu0 %v286
  %1551 = vmatprep.subr.mxu0 0.0
  %1552 = vmatpush1.msra.mxu0 %v287
  %1553 = vmatprep.subr.mxu0 0.0
  %1554 = vmatpush1.msra.mxu0 %v288
  %1555 = vmatprep.subr.mxu0 0.0
  %1556 = vmatpush1.msra.mxu0 %v289
  %1557 = vmatprep.subr.mxu0 0.0
  %1558 = vmatpush1.msra.mxu0 %v290
  %1559 = vmatprep.subr.mxu0 0.0
  %1560 = vmatpush1.msra.mxu0 %v291
  %1561 = vmatprep.subr.mxu0 0.0
  %1562 = vmatpush1.msra.mxu0 %v292
  %1563 = vmatprep.subr.mxu0 0.0
  %1564 = vmatpush1.msra.mxu0 %v293
  %1565 = vmatprep.subr.mxu0 0.0
  %1566 = vmatpush1.msra.mxu0 %v294
  %1567 = vmatprep.subr.mxu0 0.0
  %1568 = vmatpush1.msra.mxu0 %v295
  %1569 = vmatprep.subr.mxu0 0.0
  %1570 = vmatpush1.msra.mxu0 %v296
  %1571 = vmatprep.subr.mxu0 0.0
  %1572 = vmatpush1.msra.mxu0 %v297
  %1573 = vmatprep.subr.mxu0 0.0
  %1574 = vmatpush1.msra.mxu0 %v298
  %1575 = vmatprep.subr.mxu0 0.0
  %1576 = vmatpush1.msra.mxu0 0.0
  %1577 = vmatprep.subr.mxu0 0.0
  %1578 = vmatpush1.msra.mxu0 0.0
  %1579 = vmatprep.subr.mxu0 0.0
  %1580 = vmatpush1.msra.mxu0 0.0
  %1581 = vmatprep.subr.mxu0 0.0
  %1582 = vmatpush1.msra.mxu0 0.0
  %1583 = vmatprep.subr.mxu0 0.0
  %1584 = vmatpush1.msra.mxu0 0.0
  %1585 = vmatprep.subr.mxu0 0.0
  %1586 = vmatpush1.msra.mxu0 0.0
  %1587 = vmatprep.subr.mxu0 0.0
  %1588 = vmatpush1.msra.mxu0 0.0
  %1589 = vmatprep.subr.mxu0 0.0
  %1590 = vmatpush1.msra.mxu0 0.0
  %1591 = vmatprep.subr.mxu0 0.0
  %1592 = vmatpush1.msra.mxu0 0.0
  %1593 = vmatprep.subr.mxu0 0.0
  %1594 = vmatpush1.msra.mxu0 0.0
  %1595 = vmatprep.subr.mxu0 0.0
  %1596 = vmatpush1.msra.mxu0 0.0
  %1597 = vmatprep.subr.mxu0 0.0
  %1598 = vmatpush1.msra.mxu0 0.0
  %1599 = vmatprep.subr.mxu0 0.0
  %1600 = vmatpush1.msra.mxu0 0.0
  %1601 = vmatprep.subr.mxu0 0.0
  %1602 = vmatpush1.msra.mxu0 0.0
  %1603 = vmatprep.subr.mxu0 0.0
  %1604 = vmatpush1.msra.mxu0 0.0
  %1605 = vmatprep.subr.mxu0 0.0
  %1606 = vmatpush1.msra.mxu0 0.0
  %1607 = vmatprep.mubr.f32.mxu0 0.0
  %1608 = vmatmul.mubr.f32.gmra.mrb[0].mxu0 %v201
  %v1609 = vpop.f32.mrb[0].mxu0
  %v1610 = vadd.f32 0.0, %v1609
  %v1611 = vpop.f32.mrb[0].mxu0
  %1612 = vdwg.mxu0
  %v1614 = vsel %vm1026, %v199, 0
  %1616 = vmatprep.subr.mxu0 0.0
  %1617 = vmatpush1.msra.mxu0 %v1610
  %1618 = vmatprep.subr.mxu0 0.0
  %1619 = vmatpush1.msra.mxu0 0.0
  %1620 = vmatprep.subr.mxu0 0.0
  %1621 = vmatpush1.msra.mxu0 0.0
  %1622 = vmatprep.subr.mxu0 0.0
  %1623 = vmatpush1.msra.mxu0 0.0
  %1624 = vmatprep.subr.mxu0 0.0
  %1625 = vmatpush1.msra.mxu0 0.0
  %1626 = vmatprep.subr.mxu0 0.0
  %1627 = vmatpush1.msra.mxu0 0.0
  %1628 = vmatprep.subr.mxu0 0.0
  %1629 = vmatpush1.msra.mxu0 0.0
  %1630 = vmatprep.subr.mxu0 0.0
  %1631 = vmatpush1.msra.mxu0 0.0
  %1632 = vmatprep.subr.mxu0 0.0
  %1633 = vmatpush1.msra.mxu0 0.0
  %1634 = vmatprep.subr.mxu0 0.0
  %1635 = vmatpush1.msra.mxu0 0.0
  %1636 = vmatprep.subr.mxu0 0.0
  %1637 = vmatpush1.msra.mxu0 0.0
  %1638 = vmatprep.subr.mxu0 0.0
  %1639 = vmatpush1.msra.mxu0 0.0
  %1640 = vmatprep.subr.mxu0 0.0
  %1641 = vmatpush1.msra.mxu0 0.0
  %1642 = vmatprep.subr.mxu0 0.0
  %1643 = vmatpush1.msra.mxu0 0.0
  %1644 = vmatprep.subr.mxu0 0.0
  %1645 = vmatpush1.msra.mxu0 0.0
  %1646 = vmatprep.subr.mxu0 0.0
  %1647 = vmatpush1.msra.mxu0 0.0
  %1648 = vmatprep.subr.mxu0 0.0
  %1649 = vmatpush1.msra.mxu0 0.0
  %1650 = vmatprep.subr.mxu0 0.0
  %1651 = vmatpush1.msra.mxu0 0.0
  %1652 = vmatprep.subr.mxu0 0.0
  %1653 = vmatpush1.msra.mxu0 0.0
  %1654 = vmatprep.subr.mxu0 0.0
  %1655 = vmatpush1.msra.mxu0 0.0
  %1656 = vmatprep.subr.mxu0 0.0
  %1657 = vmatpush1.msra.mxu0 0.0
  %1658 = vmatprep.subr.mxu0 0.0
  %1659 = vmatpush1.msra.mxu0 0.0
  %1660 = vmatprep.subr.mxu0 0.0
  %1661 = vmatpush1.msra.mxu0 0.0
  %1662 = vmatprep.subr.mxu0 0.0
  %1663 = vmatpush1.msra.mxu0 0.0
  %1664 = vmatprep.subr.mxu0 0.0
  %1665 = vmatpush1.msra.mxu0 0.0
  %1666 = vmatprep.subr.mxu0 0.0
  %1667 = vmatpush1.msra.mxu0 0.0
  %1668 = vmatprep.subr.mxu0 0.0
  %1669 = vmatpush1.msra.mxu0 0.0
  %1670 = vmatprep.subr.mxu0 0.0
  %1671 = vmatpush1.msra.mxu0 0.0
  %1672 = vmatprep.subr.mxu0 0.0
  %1673 = vmatpush1.msra.mxu0 0.0
  %1674 = vmatprep.subr.mxu0 0.0
  %1675 = vmatpush1.msra.mxu0 0.0
  %1676 = vmatprep.subr.mxu0 0.0
  %1677 = vmatpush1.msra.mxu0 0.0
  %1678 = vmatprep.subr.mxu0 0.0
  %1679 = vmatpush1.msra.mxu0 0.0
  %1680 = vmatprep.mubr.f32.mxu0 0.0
  %1681 = vmatmul.mubr.f32.gmra.mrb[0].mxu0 %v1614
  %v1682 = vpop.f32.mrb[0].mxu0
  %v1683 = vadd.f32 0.0, %v1682
  %v1684 = vpop.f32.mrb[0].mxu0
  %1685 = vdwg.mxu0
  %v1687 = vsel %vm1026, %v196, 0
  %1689 = vmatprep.subr.mxu0 0.0
  %1690 = vmatpush1.msra.mxu0 %v1540
  %1691 = vmatprep.subr.mxu0 0.0
  %1692 = vmatpush1.msra.mxu0 0.0
  %1693 = vmatprep.subr.mxu0 0.0
  %1694 = vmatpush1.msra.mxu0 0.0
  %1695 = vmatprep.subr.mxu0 0.0
  %1696 = vmatpush1.msra.mxu0 0.0
  %1697 = vmatprep.subr.mxu0 0.0
  %1698 = vmatpush1.msra.mxu0 0.0
  %1699 = vmatprep.subr.mxu0 0.0
  %1700 = vmatpush1.msra.mxu0 0.0
  %1701 = vmatprep.subr.mxu0 0.0
  %1702 = vmatpush1.msra.mxu0 0.0
  %1703 = vmatprep.subr.mxu0 0.0
  %1704 = vmatpush1.msra.mxu0 0.0
  %1705 = vmatprep.subr.mxu0 0.0
  %1706 = vmatpush1.msra.mxu0 0.0
  %1707 = vmatprep.subr.mxu0 0.0
  %1708 = vmatpush1.msra.mxu0 0.0
  %1709 = vmatprep.subr.mxu0 0.0
  %1710 = vmatpush1.msra.mxu0 0.0
  %1711 = vmatprep.subr.mxu0 0.0
  %1712 = vmatpush1.msra.mxu0 0.0
  %1713 = vmatprep.subr.mxu0 0.0
  %1714 = vmatpush1.msra.mxu0 0.0
  %1715 = vmatprep.subr.mxu0 0.0
  %1716 = vmatpush1.msra.mxu0 0.0
  %1717 = vmatprep.subr.mxu0 0.0
  %1718 = vmatpush1.msra.mxu0 0.0
  %1719 = vmatprep.subr.mxu0 0.0
  %1720 = vmatpush1.msra.mxu0 0.0
  %1721 = vmatprep.subr.mxu0 0.0
  %1722 = vmatpush1.msra.mxu0 0.0
  %1723 = vmatprep.subr.mxu0 0.0
  %1724 = vmatpush1.msra.mxu0 0.0
  %1725 = vmatprep.subr.mxu0 0.0
  %1726 = vmatpush1.msra.mxu0 0.0
  %1727 = vmatprep.subr.mxu0 0.0
  %1728 = vmatpush1.msra.mxu0 0.0
  %1729 = vmatprep.subr.mxu0 0.0
  %1730 = vmatpush1.msra.mxu0 0.0
  %1731 = vmatprep.subr.mxu0 0.0
  %1732 = vmatpush1.msra.mxu0 0.0
  %1733 = vmatprep.subr.mxu0 0.0
  %1734 = vmatpush1.msra.mxu0 0.0
  %1735 = vmatprep.subr.mxu0 0.0
  %1736 = vmatpush1.msra.mxu0 0.0
  %1737 = vmatprep.subr.mxu0 0.0
  %1738 = vmatpush1.msra.mxu0 0.0
  %1739 = vmatprep.subr.mxu0 0.0
  %1740 = vmatpush1.msra.mxu0 0.0
  %1741 = vmatprep.subr.mxu0 0.0
  %1742 = vmatpush1.msra.mxu0 0.0
  %1743 = vmatprep.subr.mxu0 0.0
  %1744 = vmatpush1.msra.mxu0 0.0
  %1745 = vmatprep.subr.mxu0 0.0
  %1746 = vmatpush1.msra.mxu0 0.0
  %1747 = vmatprep.subr.mxu0 0.0
  %1748 = vmatpush1.msra.mxu0 0.0
  %1749 = vmatprep.subr.mxu0 0.0
  %1750 = vmatpush1.msra.mxu0 0.0
  %1751 = vmatprep.subr.mxu0 0.0
  %1752 = vmatpush1.msra.mxu0 0.0
  %1753 = vmatprep.mubr.f32.mxu0 0.0
  %1754 = vmatmul.mubr.f32.gmra.mrb[0].mxu0 %v1687
  %v1755 = vpop.f32.mrb[0].mxu0
  %v1756 = vadd.f32 %v1683, %v1755
  %v1757 = vpop.f32.mrb[0].mxu0
  %1758 = vdwg.mxu0
  %v1760 = vlaneseq
  %v1761 = vshrl.u32 %v1760, 7
  %v1762 = vsub.s32 0, %v1761
  %v1763 = vrot.slane %v301, %v1762
  %v1765 = vadd.f32 %v1756, %v1763
  %1766 = vmatprep.subr.mxu0 0.0
  %1767 = vmatpush1.msra.mxu0 %v302
  %1768 = vmatprep.subr.mxu0 0.0
  %1769 = vmatpush1.msra.mxu0 %v303
  %1770 = vmatprep.subr.mxu0 0.0
  %1771 = vmatpush1.msra.mxu0 %v304
  %1772 = vmatprep.subr.mxu0 0.0
  %1773 = vmatpush1.msra.mxu0 %v305
  %1774 = vmatprep.subr.mxu0 0.0
  %1775 = vmatpush1.msra.mxu0 %v306
  %1776 = vmatprep.subr.mxu0 0.0
  %1777 = vmatpush1.msra.mxu0 %v307
  %1778 = vmatprep.subr.mxu0 0.0
  %1779 = vmatpush1.msra.mxu0 %v308
  %1780 = vmatprep.subr.mxu0 0.0
  %1781 = vmatpush1.msra.mxu0 %v309
  %1782 = vmatprep.subr.mxu0 0.0
  %1783 = vmatpush1.msra.mxu0 %v310
  %1784 = vmatprep.subr.mxu0 0.0
  %1785 = vmatpush1.msra.mxu0 %v311
  %1786 = vmatprep.subr.mxu0 0.0
  %1787 = vmatpush1.msra.mxu0 %v312
  %1788 = vmatprep.subr.mxu0 0.0
  %1789 = vmatpush1.msra.mxu0 %v313
  %1790 = vmatprep.subr.mxu0 0.0
  %1791 = vmatpush1.msra.mxu0 %v314
  %1792 = vmatprep.subr.mxu0 0.0
  %1793 = vmatpush1.msra.mxu0 %v315
  %1794 = vmatprep.subr.mxu0 0.0
  %1795 = vmatpush1.msra.mxu0 %v316
  %1796 = vmatprep.subr.mxu0 0.0
  %1797 = vmatpush1.msra.mxu0 %v317
  %1798 = vmatprep.subr.mxu0 0.0
  %1799 = vmatpush1.msra.mxu0 0.0
  %1800 = vmatprep.subr.mxu0 0.0
  %1801 = vmatpush1.msra.mxu0 0.0
  %1802 = vmatprep.subr.mxu0 0.0
  %1803 = vmatpush1.msra.mxu0 0.0
  %1804 = vmatprep.subr.mxu0 0.0
  %1805 = vmatpush1.msra.mxu0 0.0
  %1806 = vmatprep.subr.mxu0 0.0
  %1807 = vmatpush1.msra.mxu0 0.0
  %1808 = vmatprep.subr.mxu0 0.0
  %1809 = vmatpush1.msra.mxu0 0.0
  %1810 = vmatprep.subr.mxu0 0.0
  %1811 = vmatpush1.msra.mxu0 0.0
  %1812 = vmatprep.subr.mxu0 0.0
  %1813 = vmatpush1.msra.mxu0 0.0
  %1814 = vmatprep.subr.mxu0 0.0
  %1815 = vmatpush1.msra.mxu0 0.0
  %1816 = vmatprep.subr.mxu0 0.0
  %1817 = vmatpush1.msra.mxu0 0.0
  %1818 = vmatprep.subr.mxu0 0.0
  %1819 = vmatpush1.msra.mxu0 0.0
  %1820 = vmatprep.subr.mxu0 0.0
  %1821 = vmatpush1.msra.mxu0 0.0
  %1822 = vmatprep.subr.mxu0 0.0
  %1823 = vmatpush1.msra.mxu0 0.0
  %1824 = vmatprep.subr.mxu0 0.0
  %1825 = vmatpush1.msra.mxu0 0.0
  %1826 = vmatprep.subr.mxu0 0.0
  %1827 = vmatpush1.msra.mxu0 0.0
  %1828 = vmatprep.subr.mxu0 0.0
  %1829 = vmatpush1.msra.mxu0 0.0
  %1830 = vmatprep.mubr.f32.mxu0 0.0
  %1831 = vmatmul.mubr.f32.gmra.mrb[0].mxu0 %v1179
  %v1832 = vpop.f32.mrb[0].mxu0
  %v1833 = vadd.f32 0.0, %v1832
  %v1834 = vpop.f32.mrb[0].mxu0
  %1835 = vdwg.mxu0
  %1836 = vmatprep.subr.mxu0 0.0
  %1837 = vmatpush1.msra.mxu0 %v334
  %1838 = vmatprep.subr.mxu0 0.0
  %1839 = vmatpush1.msra.mxu0 %v335
  %1840 = vmatprep.subr.mxu0 0.0
  %1841 = vmatpush1.msra.mxu0 %v336
  %1842 = vmatprep.subr.mxu0 0.0
  %1843 = vmatpush1.msra.mxu0 %v337
  %1844 = vmatprep.subr.mxu0 0.0
  %1845 = vmatpush1.msra.mxu0 %v338
  %1846 = vmatprep.subr.mxu0 0.0
  %1847 = vmatpush1.msra.mxu0 %v339
  %1848 = vmatprep.subr.mxu0 0.0
  %1849 = vmatpush1.msra.mxu0 %v340
  %1850 = vmatprep.subr.mxu0 0.0
  %1851 = vmatpush1.msra.mxu0 %v341
  %1852 = vmatprep.subr.mxu0 0.0
  %1853 = vmatpush1.msra.mxu0 %v342
  %1854 = vmatprep.subr.mxu0 0.0
  %1855 = vmatpush1.msra.mxu0 %v343
  %1856 = vmatprep.subr.mxu0 0.0
  %1857 = vmatpush1.msra.mxu0 %v344
  %1858 = vmatprep.subr.mxu0 0.0
  %1859 = vmatpush1.msra.mxu0 %v345
  %1860 = vmatprep.subr.mxu0 0.0
  %1861 = vmatpush1.msra.mxu0 %v346
  %1862 = vmatprep.subr.mxu0 0.0
  %1863 = vmatpush1.msra.mxu0 %v347
  %1864 = vmatprep.subr.mxu0 0.0
  %1865 = vmatpush1.msra.mxu0 %v348
  %1866 = vmatprep.subr.mxu0 0.0
  %1867 = vmatpush1.msra.mxu0 %v349
  %1868 = vmatprep.subr.mxu0 0.0
  %1869 = vmatpush1.msra.mxu0 0.0
  %1870 = vmatprep.subr.mxu0 0.0
  %1871 = vmatpush1.msra.mxu0 0.0
  %1872 = vmatprep.subr.mxu0 0.0
  %1873 = vmatpush1.msra.mxu0 0.0
  %1874 = vmatprep.subr.mxu0 0.0
  %1875 = vmatpush1.msra.mxu0 0.0
  %1876 = vmatprep.subr.mxu0 0.0
  %1877 = vmatpush1.msra.mxu0 0.0
  %1878 = vmatprep.subr.mxu0 0.0
  %1879 = vmatpush1.msra.mxu0 0.0
  %1880 = vmatprep.subr.mxu0 0.0
  %1881 = vmatpush1.msra.mxu0 0.0
  %1882 = vmatprep.subr.mxu0 0.0
  %1883 = vmatpush1.msra.mxu0 0.0
  %1884 = vmatprep.subr.mxu0 0.0
  %1885 = vmatpush1.msra.mxu0 0.0
  %1886 = vmatprep.subr.mxu0 0.0
  %1887 = vmatpush1.msra.mxu0 0.0
  %1888 = vmatprep.subr.mxu0 0.0
  %1889 = vmatpush1.msra.mxu0 0.0
  %1890 = vmatprep.subr.mxu0 0.0
  %1891 = vmatpush1.msra.mxu0 0.0
  %1892 = vmatprep.subr.mxu0 0.0
  %1893 = vmatpush1.msra.mxu0 0.0
  %1894 = vmatprep.subr.mxu0 0.0
  %1895 = vmatpush1.msra.mxu0 0.0
  %1896 = vmatprep.subr.mxu0 0.0
  %1897 = vmatpush1.msra.mxu0 0.0
  %1898 = vmatprep.subr.mxu0 0.0
  %1899 = vmatpush1.msra.mxu0 0.0
  %1900 = vmatprep.mubr.f32.mxu0 0.0
  %1901 = vmatmul.mubr.f32.gmra.mrb[0].mxu0 %v1765
  %v1902 = vpop.f32.mrb[0].mxu0
  %v1903 = vadd.f32 0.0, %v1902
  %v1904 = vpop.f32.mrb[0].mxu0
  %1905 = vdwg.mxu0
  %1906 = vmatprep.subr.mxu0 0.0
  %1907 = vmatpush1.msra.mxu0 %v1903
  %1908 = vmatprep.subr.mxu0 0.0
  %1909 = vmatpush1.msra.mxu0 0.0
  %1910 = vmatprep.subr.mxu0 0.0
  %1911 = vmatpush1.msra.mxu0 0.0
  %1912 = vmatprep.subr.mxu0 0.0
  %1913 = vmatpush1.msra.mxu0 0.0
  %1914 = vmatprep.subr.mxu0 0.0
  %1915 = vmatpush1.msra.mxu0 0.0
  %1916 = vmatprep.subr.mxu0 0.0
  %1917 = vmatpush1.msra.mxu0 0.0
  %1918 = vmatprep.subr.mxu0 0.0
  %1919 = vmatpush1.msra.mxu0 0.0
  %1920 = vmatprep.subr.mxu0 0.0
  %1921 = vmatpush1.msra.mxu0 0.0
  %1922 = vmatprep.subr.mxu0 0.0
  %1923 = vmatpush1.msra.mxu0 0.0
  %1924 = vmatprep.subr.mxu0 0.0
  %1925 = vmatpush1.msra.mxu0 0.0
  %1926 = vmatprep.subr.mxu0 0.0
  %1927 = vmatpush1.msra.mxu0 0.0
  %1928 = vmatprep.subr.mxu0 0.0
  %1929 = vmatpush1.msra.mxu0 0.0
  %1930 = vmatprep.subr.mxu0 0.0
  %1931 = vmatpush1.msra.mxu0 0.0
  %1932 = vmatprep.subr.mxu0 0.0
  %1933 = vmatpush1.msra.mxu0 0.0
  %1934 = vmatprep.subr.mxu0 0.0
  %1935 = vmatpush1.msra.mxu0 0.0
  %1936 = vmatprep.subr.mxu0 0.0
  %1937 = vmatpush1.msra.mxu0 0.0
  %1938 = vmatprep.subr.mxu0 0.0
  %1939 = vmatpush1.msra.mxu0 0.0
  %1940 = vmatprep.subr.mxu0 0.0
  %1941 = vmatpush1.msra.mxu0 0.0
  %1942 = vmatprep.subr.mxu0 0.0
  %1943 = vmatpush1.msra.mxu0 0.0
  %1944 = vmatprep.subr.mxu0 0.0
  %1945 = vmatpush1.msra.mxu0 0.0
  %1946 = vmatprep.subr.mxu0 0.0
  %1947 = vmatpush1.msra.mxu0 0.0
  %1948 = vmatprep.subr.mxu0 0.0
  %1949 = vmatpush1.msra.mxu0 0.0
  %1950 = vmatprep.subr.mxu0 0.0
  %1951 = vmatpush1.msra.mxu0 0.0
  %1952 = vmatprep.subr.mxu0 0.0
  %1953 = vmatpush1.msra.mxu0 0.0
  %1954 = vmatprep.subr.mxu0 0.0
  %1955 = vmatpush1.msra.mxu0 0.0
  %1956 = vmatprep.subr.mxu0 0.0
  %1957 = vmatpush1.msra.mxu0 0.0
  %1958 = vmatprep.subr.mxu0 0.0
  %1959 = vmatpush1.msra.mxu0 0.0
  %1960 = vmatprep.subr.mxu0 0.0
  %1961 = vmatpush1.msra.mxu0 0.0
  %1962 = vmatprep.subr.mxu0 0.0
  %1963 = vmatpush1.msra.mxu0 0.0
  %1964 = vmatprep.subr.mxu0 0.0
  %1965 = vmatpush1.msra.mxu0 0.0
  %1966 = vmatprep.subr.mxu0 0.0
  %1967 = vmatpush1.msra.mxu0 0.0
  %1968 = vmatprep.subr.mxu0 0.0
  %1969 = vmatpush1.msra.mxu0 0.0
  %1970 = vmatprep.mubr.f32.mxu0 0.0
  %1971 = vmatmul.mubr.f32.gmra.mrb[0].mxu0 %v1321
  %v1972 = vpop.f32.mrb[0].mxu0
  %v1973 = vadd.f32 0.0, %v1972
  %v1974 = vpop.f32.mrb[0].mxu0
  %1975 = vdwg.mxu0
  %1976 = vmatprep.subr.mxu0 0.0
  %1977 = vmatpush1.msra.mxu0 %v1833
  %1978 = vmatprep.subr.mxu0 0.0
  %1979 = vmatpush1.msra.mxu0 0.0
  %1980 = vmatprep.subr.mxu0 0.0
  %1981 = vmatpush1.msra.mxu0 0.0
  %1982 = vmatprep.subr.mxu0 0.0
  %1983 = vmatpush1.msra.mxu0 0.0
  %1984 = vmatprep.subr.mxu0 0.0
  %1985 = vmatpush1.msra.mxu0 0.0
  %1986 = vmatprep.subr.mxu0 0.0
  %1987 = vmatpush1.msra.mxu0 0.0
  %1988 = vmatprep.subr.mxu0 0.0
  %1989 = vmatpush1.msra.mxu0 0.0
  %1990 = vmatprep.subr.mxu0 0.0
  %1991 = vmatpush1.msra.mxu0 0.0
  %1992 = vmatprep.subr.mxu0 0.0
  %1993 = vmatpush1.msra.mxu0 0.0
  %1994 = vmatprep.subr.mxu0 0.0
  %1995 = vmatpush1.msra.mxu0 0.0
  %1996 = vmatprep.subr.mxu0 0.0
  %1997 = vmatpush1.msra.mxu0 0.0
  %1998 = vmatprep.subr.mxu0 0.0
  %1999 = vmatpush1.msra.mxu0 0.0
  %2000 = vmatprep.subr.mxu0 0.0
  %2001 = vmatpush1.msra.mxu0 0.0
  %2002 = vmatprep.subr.mxu0 0.0
  %2003 = vmatpush1.msra.mxu0 0.0
  %2004 = vmatprep.subr.mxu0 0.0
  %2005 = vmatpush1.msra.mxu0 0.0
  %2006 = vmatprep.subr.mxu0 0.0
  %2007 = vmatpush1.msra.mxu0 0.0
  %2008 = vmatprep.subr.mxu0 0.0
  %2009 = vmatpush1.msra.mxu0 0.0
  %2010 = vmatprep.subr.mxu0 0.0
  %2011 = vmatpush1.msra.mxu0 0.0
  %2012 = vmatprep.subr.mxu0 0.0
  %2013 = vmatpush1.msra.mxu0 0.0
  %2014 = vmatprep.subr.mxu0 0.0
  %2015 = vmatpush1.msra.mxu0 0.0
  %2016 = vmatprep.subr.mxu0 0.0
  %2017 = vmatpush1.msra.mxu0 0.0
  %2018 = vmatprep.subr.mxu0 0.0
  %2019 = vmatpush1.msra.mxu0 0.0
  %2020 = vmatprep.subr.mxu0 0.0
  %2021 = vmatpush1.msra.mxu0 0.0
  %2022 = vmatprep.subr.mxu0 0.0
  %2023 = vmatpush1.msra.mxu0 0.0
  %2024 = vmatprep.subr.mxu0 0.0
  %2025 = vmatpush1.msra.mxu0 0.0
  %2026 = vmatprep.subr.mxu0 0.0
  %2027 = vmatpush1.msra.mxu0 0.0
  %2028 = vmatprep.subr.mxu0 0.0
  %2029 = vmatpush1.msra.mxu0 0.0
  %2030 = vmatprep.subr.mxu0 0.0
  %2031 = vmatpush1.msra.mxu0 0.0
  %2032 = vmatprep.subr.mxu0 0.0
  %2033 = vmatpush1.msra.mxu0 0.0
  %2034 = vmatprep.subr.mxu0 0.0
  %2035 = vmatpush1.msra.mxu0 0.0
  %2036 = vmatprep.subr.mxu0 0.0
  %2037 = vmatpush1.msra.mxu0 0.0
  %2038 = vmatprep.subr.mxu0 0.0
  %2039 = vmatpush1.msra.mxu0 0.0
  %2040 = vmatprep.mubr.f32.mxu0 0.0
  %2041 = vmatmul.mubr.f32.gmra.mrb[0].mxu0 %v1394
  %v2042 = vpop.f32.mrb[0].mxu0
  %v2043 = vadd.f32 %v1973, %v2042
  %v2044 = vpop.f32.mrb[0].mxu0
  %2045 = vdwg.mxu0
  %v2047 = vlaneseq
  %v2048 = vshrl.u32 %v2047, 7
  %v2049 = vsub.s32 0, %v2048
  %v2050 = vrot.slane %v366, %v2049
  %v2052 = vadd.f32 %v2043, %v2050
  %2053 = vmatprep.subr.mxu0 0.0
  %2054 = vmatpush1.msra.mxu0 %v318
  %2055 = vmatprep.subr.mxu0 0.0
  %2056 = vmatpush1.msra.mxu0 %v319
  %2057 = vmatprep.subr.mxu0 0.0
  %2058 = vmatpush1.msra.mxu0 %v320
  %2059 = vmatprep.subr.mxu0 0.0
  %2060 = vmatpush1.msra.mxu0 %v321
  %2061 = vmatprep.subr.mxu0 0.0
  %2062 = vmatpush1.msra.mxu0 %v322
  %2063 = vmatprep.subr.mxu0 0.0
  %2064 = vmatpush1.msra.mxu0 %v323
  %2065 = vmatprep.subr.mxu0 0.0
  %2066 = vmatpush1.msra.mxu0 %v324
  %2067 = vmatprep.subr.mxu0 0.0
  %2068 = vmatpush1.msra.mxu0 %v325
  %2069 = vmatprep.subr.mxu0 0.0
  %2070 = vmatpush1.msra.mxu0 %v326
  %2071 = vmatprep.subr.mxu0 0.0
  %2072 = vmatpush1.msra.mxu0 %v327
  %2073 = vmatprep.subr.mxu0 0.0
  %2074 = vmatpush1.msra.mxu0 %v328
  %2075 = vmatprep.subr.mxu0 0.0
  %2076 = vmatpush1.msra.mxu0 %v329
  %2077 = vmatprep.subr.mxu0 0.0
  %2078 = vmatpush1.msra.mxu0 %v330
  %2079 = vmatprep.subr.mxu0 0.0
  %2080 = vmatpush1.msra.mxu0 %v331
  %2081 = vmatprep.subr.mxu0 0.0
  %2082 = vmatpush1.msra.mxu0 %v332
  %2083 = vmatprep.subr.mxu0 0.0
  %2084 = vmatpush1.msra.mxu0 %v333
  %2085 = vmatprep.subr.mxu0 0.0
  %2086 = vmatpush1.msra.mxu0 0.0
  %2087 = vmatprep.subr.mxu0 0.0
  %2088 = vmatpush1.msra.mxu0 0.0
  %2089 = vmatprep.subr.mxu0 0.0
  %2090 = vmatpush1.msra.mxu0 0.0
  %2091 = vmatprep.subr.mxu0 0.0
  %2092 = vmatpush1.msra.mxu0 0.0
  %2093 = vmatprep.subr.mxu0 0.0
  %2094 = vmatpush1.msra.mxu0 0.0
  %2095 = vmatprep.subr.mxu0 0.0
  %2096 = vmatpush1.msra.mxu0 0.0
  %2097 = vmatprep.subr.mxu0 0.0
  %2098 = vmatpush1.msra.mxu0 0.0
  %2099 = vmatprep.subr.mxu0 0.0
  %2100 = vmatpush1.msra.mxu0 0.0
  %2101 = vmatprep.subr.mxu0 0.0
  %2102 = vmatpush1.msra.mxu0 0.0
  %2103 = vmatprep.subr.mxu0 0.0
  %2104 = vmatpush1.msra.mxu0 0.0
  %2105 = vmatprep.subr.mxu0 0.0
  %2106 = vmatpush1.msra.mxu0 0.0
  %2107 = vmatprep.subr.mxu0 0.0
  %2108 = vmatpush1.msra.mxu0 0.0
  %2109 = vmatprep.subr.mxu0 0.0
  %2110 = vmatpush1.msra.mxu0 0.0
  %2111 = vmatprep.subr.mxu0 0.0
  %2112 = vmatpush1.msra.mxu0 0.0
  %2113 = vmatprep.subr.mxu0 0.0
  %2114 = vmatpush1.msra.mxu0 0.0
  %2115 = vmatprep.subr.mxu0 0.0
  %2116 = vmatpush1.msra.mxu0 0.0
  %2117 = vmatprep.mubr.f32.mxu0 0.0
  %2118 = vmatmul.mubr.f32.gmra.mrb[0].mxu0 %v1179
  %v2119 = vpop.f32.mrb[0].mxu0
  %v2120 = vadd.f32 0.0, %v2119
  %v2121 = vpop.f32.mrb[0].mxu0
  %2122 = vdwg.mxu0
  %2123 = vmatprep.subr.mxu0 0.0
  %2124 = vmatpush1.msra.mxu0 %v350
  %2125 = vmatprep.subr.mxu0 0.0
  %2126 = vmatpush1.msra.mxu0 %v351
  %2127 = vmatprep.subr.mxu0 0.0
  %2128 = vmatpush1.msra.mxu0 %v352
  %2129 = vmatprep.subr.mxu0 0.0
  %2130 = vmatpush1.msra.mxu0 %v353
  %2131 = vmatprep.subr.mxu0 0.0
  %2132 = vmatpush1.msra.mxu0 %v354
  %2133 = vmatprep.subr.mxu0 0.0
  %2134 = vmatpush1.msra.mxu0 %v355
  %2135 = vmatprep.subr.mxu0 0.0
  %2136 = vmatpush1.msra.mxu0 %v356
  %2137 = vmatprep.subr.mxu0 0.0
  %2138 = vmatpush1.msra.mxu0 %v357
  %2139 = vmatprep.subr.mxu0 0.0
  %2140 = vmatpush1.msra.mxu0 %v358
  %2141 = vmatprep.subr.mxu0 0.0
  %2142 = vmatpush1.msra.mxu0 %v359
  %2143 = vmatprep.subr.mxu0 0.0
  %2144 = vmatpush1.msra.mxu0 %v360
  %2145 = vmatprep.subr.mxu0 0.0
  %2146 = vmatpush1.msra.mxu0 %v361
  %2147 = vmatprep.subr.mxu0 0.0
  %2148 = vmatpush1.msra.mxu0 %v362
  %2149 = vmatprep.subr.mxu0 0.0
  %2150 = vmatpush1.msra.mxu0 %v363
  %2151 = vmatprep.subr.mxu0 0.0
  %2152 = vmatpush1.msra.mxu0 %v364
  %2153 = vmatprep.subr.mxu0 0.0
  %2154 = vmatpush1.msra.mxu0 %v365
  %2155 = vmatprep.subr.mxu0 0.0
  %2156 = vmatpush1.msra.mxu0 0.0
  %2157 = vmatprep.subr.mxu0 0.0
  %2158 = vmatpush1.msra.mxu0 0.0
  %2159 = vmatprep.subr.mxu0 0.0
  %2160 = vmatpush1.msra.mxu0 0.0
  %2161 = vmatprep.subr.mxu0 0.0
  %2162 = vmatpush1.msra.mxu0 0.0
  %2163 = vmatprep.subr.mxu0 0.0
  %2164 = vmatpush1.msra.mxu0 0.0
  %2165 = vmatprep.subr.mxu0 0.0
  %2166 = vmatpush1.msra.mxu0 0.0
  %2167 = vmatprep.subr.mxu0 0.0
  %2168 = vmatpush1.msra.mxu0 0.0
  %2169 = vmatprep.subr.mxu0 0.0
  %2170 = vmatpush1.msra.mxu0 0.0
  %2171 = vmatprep.subr.mxu0 0.0
  %2172 = vmatpush1.msra.mxu0 0.0
  %2173 = vmatprep.subr.mxu0 0.0
  %2174 = vmatpush1.msra.mxu0 0.0
  %2175 = vmatprep.subr.mxu0 0.0
  %2176 = vmatpush1.msra.mxu0 0.0
  %2177 = vmatprep.subr.mxu0 0.0
  %2178 = vmatpush1.msra.mxu0 0.0
  %2179 = vmatprep.subr.mxu0 0.0
  %2180 = vmatpush1.msra.mxu0 0.0
  %2181 = vmatprep.subr.mxu0 0.0
  %2182 = vmatpush1.msra.mxu0 0.0
  %2183 = vmatprep.subr.mxu0 0.0
  %2184 = vmatpush1.msra.mxu0 0.0
  %2185 = vmatprep.subr.mxu0 0.0
  %2186 = vmatpush1.msra.mxu0 0.0
  %2187 = vmatprep.mubr.f32.mxu0 0.0
  %2188 = vmatmul.mubr.f32.gmra.mrb[0].mxu0 %v1472
  %v2189 = vpop.f32.mrb[0].mxu0
  %v2190 = vadd.f32 0.0, %v2189
  %v2191 = vpop.f32.mrb[0].mxu0
  %2192 = vdwg.mxu0
  %2193 = vmatprep.subr.mxu0 0.0
  %2194 = vmatpush1.msra.mxu0 %v2190
  %2195 = vmatprep.subr.mxu0 0.0
  %2196 = vmatpush1.msra.mxu0 0.0
  %2197 = vmatprep.subr.mxu0 0.0
  %2198 = vmatpush1.msra.mxu0 0.0
  %2199 = vmatprep.subr.mxu0 0.0
  %2200 = vmatpush1.msra.mxu0 0.0
  %2201 = vmatprep.subr.mxu0 0.0
  %2202 = vmatpush1.msra.mxu0 0.0
  %2203 = vmatprep.subr.mxu0 0.0
  %2204 = vmatpush1.msra.mxu0 0.0
  %2205 = vmatprep.subr.mxu0 0.0
  %2206 = vmatpush1.msra.mxu0 0.0
  %2207 = vmatprep.subr.mxu0 0.0
  %2208 = vmatpush1.msra.mxu0 0.0
  %2209 = vmatprep.subr.mxu0 0.0
  %2210 = vmatpush1.msra.mxu0 0.0
  %2211 = vmatprep.subr.mxu0 0.0
  %2212 = vmatpush1.msra.mxu0 0.0
  %2213 = vmatprep.subr.mxu0 0.0
  %2214 = vmatpush1.msra.mxu0 0.0
  %2215 = vmatprep.subr.mxu0 0.0
  %2216 = vmatpush1.msra.mxu0 0.0
  %2217 = vmatprep.subr.mxu0 0.0
  %2218 = vmatpush1.msra.mxu0 0.0
  %2219 = vmatprep.subr.mxu0 0.0
  %2220 = vmatpush1.msra.mxu0 0.0
  %2221 = vmatprep.subr.mxu0 0.0
  %2222 = vmatpush1.msra.mxu0 0.0
  %2223 = vmatprep.subr.mxu0 0.0
  %2224 = vmatpush1.msra.mxu0 0.0
  %2225 = vmatprep.subr.mxu0 0.0
  %2226 = vmatpush1.msra.mxu0 0.0
  %2227 = vmatprep.subr.mxu0 0.0
  %2228 = vmatpush1.msra.mxu0 0.0
  %2229 = vmatprep.subr.mxu0 0.0
  %2230 = vmatpush1.msra.mxu0 0.0
  %2231 = vmatprep.subr.mxu0 0.0
  %2232 = vmatpush1.msra.mxu0 0.0
  %2233 = vmatprep.subr.mxu0 0.0
  %2234 = vmatpush1.msra.mxu0 0.0
  %2235 = vmatprep.subr.mxu0 0.0
  %2236 = vmatpush1.msra.mxu0 0.0
  %2237 = vmatprep.subr.mxu0 0.0
  %2238 = vmatpush1.msra.mxu0 0.0
  %2239 = vmatprep.subr.mxu0 0.0
  %2240 = vmatpush1.msra.mxu0 0.0
  %2241 = vmatprep.subr.mxu0 0.0
  %2242 = vmatpush1.msra.mxu0 0.0
  %2243 = vmatprep.subr.mxu0 0.0
  %2244 = vmatpush1.msra.mxu0 0.0
  %2245 = vmatprep.subr.mxu0 0.0
  %2246 = vmatpush1.msra.mxu0 0.0
  %2247 = vmatprep.subr.mxu0 0.0
  %2248 = vmatpush1.msra.mxu0 0.0
  %2249 = vmatprep.subr.mxu0 0.0
  %2250 = vmatpush1.msra.mxu0 0.0
  %2251 = vmatprep.subr.mxu0 0.0
  %2252 = vmatpush1.msra.mxu0 0.0
  %2253 = vmatprep.subr.mxu0 0.0
  %2254 = vmatpush1.msra.mxu0 0.0
  %2255 = vmatprep.subr.mxu0 0.0
  %2256 = vmatpush1.msra.mxu0 0.0
  %2257 = vmatprep.mubr.f32.mxu0 0.0
  %2258 = vmatmul.mubr.f32.gmra.mrb[0].mxu0 %v1614
  %v2259 = vpop.f32.mrb[0].mxu0
  %v2260 = vadd.f32 0.0, %v2259
  %v2261 = vpop.f32.mrb[0].mxu0
  %2262 = vdwg.mxu0
  %2263 = vmatprep.subr.mxu0 0.0
  %2264 = vmatpush1.msra.mxu0 %v2120
  %2265 = vmatprep.subr.mxu0 0.0
  %2266 = vmatpush1.msra.mxu0 0.0
  %2267 = vmatprep.subr.mxu0 0.0
  %2268 = vmatpush1.msra.mxu0 0.0
  %2269 = vmatprep.subr.mxu0 0.0
  %2270 = vmatpush1.msra.mxu0 0.0
  %2271 = vmatprep.subr.mxu0 0.0
  %2272 = vmatpush1.msra.mxu0 0.0
  %2273 = vmatprep.subr.mxu0 0.0
  %2274 = vmatpush1.msra.mxu0 0.0
  %2275 = vmatprep.subr.mxu0 0.0
  %2276 = vmatpush1.msra.mxu0 0.0
  %2277 = vmatprep.subr.mxu0 0.0
  %2278 = vmatpush1.msra.mxu0 0.0
  %2279 = vmatprep.subr.mxu0 0.0
  %2280 = vmatpush1.msra.mxu0 0.0
  %2281 = vmatprep.subr.mxu0 0.0
  %2282 = vmatpush1.msra.mxu0 0.0
  %2283 = vmatprep.subr.mxu0 0.0
  %2284 = vmatpush1.msra.mxu0 0.0
  %2285 = vmatprep.subr.mxu0 0.0
  %2286 = vmatpush1.msra.mxu0 0.0
  %2287 = vmatprep.subr.mxu0 0.0
  %2288 = vmatpush1.msra.mxu0 0.0
  %2289 = vmatprep.subr.mxu0 0.0
  %2290 = vmatpush1.msra.mxu0 0.0
  %2291 = vmatprep.subr.mxu0 0.0
  %2292 = vmatpush1.msra.mxu0 0.0
  %2293 = vmatprep.subr.mxu0 0.0
  %2294 = vmatpush1.msra.mxu0 0.0
  %2295 = vmatprep.subr.mxu0 0.0
  %2296 = vmatpush1.msra.mxu0 0.0
  %2297 = vmatprep.subr.mxu0 0.0
  %2298 = vmatpush1.msra.mxu0 0.0
  %2299 = vmatprep.subr.mxu0 0.0
  %2300 = vmatpush1.msra.mxu0 0.0
  %2301 = vmatprep.subr.mxu0 0.0
  %2302 = vmatpush1.msra.mxu0 0.0
  %2303 = vmatprep.subr.mxu0 0.0
  %2304 = vmatpush1.msra.mxu0 0.0
  %2305 = vmatprep.subr.mxu0 0.0
  %2306 = vmatpush1.msra.mxu0 0.0
  %2307 = vmatprep.subr.mxu0 0.0
  %2308 = vmatpush1.msra.mxu0 0.0
  %2309 = vmatprep.subr.mxu0 0.0
  %2310 = vmatpush1.msra.mxu0 0.0
  %2311 = vmatprep.subr.mxu0 0.0
  %2312 = vmatpush1.msra.mxu0 0.0
  %2313 = vmatprep.subr.mxu0 0.0
  %2314 = vmatpush1.msra.mxu0 0.0
  %2315 = vmatprep.subr.mxu0 0.0
  %2316 = vmatpush1.msra.mxu0 0.0
  %2317 = vmatprep.subr.mxu0 0.0
  %2318 = vmatpush1.msra.mxu0 0.0
  %2319 = vmatprep.subr.mxu0 0.0
  %2320 = vmatpush1.msra.mxu0 0.0
  %2321 = vmatprep.subr.mxu0 0.0
  %2322 = vmatpush1.msra.mxu0 0.0
  %2323 = vmatprep.subr.mxu0 0.0
  %2324 = vmatpush1.msra.mxu0 0.0
  %2325 = vmatprep.subr.mxu0 0.0
  %2326 = vmatpush1.msra.mxu0 0.0
  %2327 = vmatprep.mubr.f32.mxu0 0.0
  %2328 = vmatmul.mubr.f32.gmra.mrb[0].mxu0 %v1687
  %v2329 = vpop.f32.mrb[0].mxu0
  %v2330 = vadd.f32 %v2260, %v2329
  %v2331 = vpop.f32.mrb[0].mxu0
  %2332 = vdwg.mxu0
  %v2334 = vlaneseq
  %v2335 = vshrl.u32 %v2334, 7
  %v2336 = vsub.s32 0, %v2335
  %v2337 = vrot.slane %v367, %v2336
  %v2339 = vadd.f32 %v2330, %v2337
  %2340 = vmatprep.subr.mxu0 0.0
  %2341 = vmatpush1.msra.mxu0 %v368
  %2342 = vmatprep.subr.mxu0 0.0
  %2343 = vmatpush1.msra.mxu0 %v369
  %2344 = vmatprep.subr.mxu0 0.0
  %2345 = vmatpush1.msra.mxu0 %v370
  %2346 = vmatprep.subr.mxu0 0.0
  %2347 = vmatpush1.msra.mxu0 %v371
  %2348 = vmatprep.subr.mxu0 0.0
  %2349 = vmatpush1.msra.mxu0 %v372
  %2350 = vmatprep.subr.mxu0 0.0
  %2351 = vmatpush1.msra.mxu0 %v373
  %2352 = vmatprep.subr.mxu0 0.0
  %2353 = vmatpush1.msra.mxu0 %v374
  %2354 = vmatprep.subr.mxu0 0.0
  %2355 = vmatpush1.msra.mxu0 %v375
  %2356 = vmatprep.subr.mxu0 0.0
  %2357 = vmatpush1.msra.mxu0 %v376
  %2358 = vmatprep.subr.mxu0 0.0
  %2359 = vmatpush1.msra.mxu0 %v377
  %2360 = vmatprep.subr.mxu0 0.0
  %2361 = vmatpush1.msra.mxu0 %v378
  %2362 = vmatprep.subr.mxu0 0.0
  %2363 = vmatpush1.msra.mxu0 %v379
  %2364 = vmatprep.subr.mxu0 0.0
  %2365 = vmatpush1.msra.mxu0 %v380
  %2366 = vmatprep.subr.mxu0 0.0
  %2367 = vmatpush1.msra.mxu0 %v381
  %2368 = vmatprep.subr.mxu0 0.0
  %2369 = vmatpush1.msra.mxu0 %v382
  %2370 = vmatprep.subr.mxu0 0.0
  %2371 = vmatpush1.msra.mxu0 %v383
  %2372 = vmatprep.subr.mxu0 0.0
  %2373 = vmatpush1.msra.mxu0 0.0
  %2374 = vmatprep.subr.mxu0 0.0
  %2375 = vmatpush1.msra.mxu0 0.0
  %2376 = vmatprep.subr.mxu0 0.0
  %2377 = vmatpush1.msra.mxu0 0.0
  %2378 = vmatprep.subr.mxu0 0.0
  %2379 = vmatpush1.msra.mxu0 0.0
  %2380 = vmatprep.subr.mxu0 0.0
  %2381 = vmatpush1.msra.mxu0 0.0
  %2382 = vmatprep.subr.mxu0 0.0
  %2383 = vmatpush1.msra.mxu0 0.0
  %2384 = vmatprep.subr.mxu0 0.0
  %2385 = vmatpush1.msra.mxu0 0.0
  %2386 = vmatprep.subr.mxu0 0.0
  %2387 = vmatpush1.msra.mxu0 0.0
  %2388 = vmatprep.subr.mxu0 0.0
  %2389 = vmatpush1.msra.mxu0 0.0
  %2390 = vmatprep.subr.mxu0 0.0
  %2391 = vmatpush1.msra.mxu0 0.0
  %2392 = vmatprep.subr.mxu0 0.0
  %2393 = vmatpush1.msra.mxu0 0.0
  %2394 = vmatprep.subr.mxu0 0.0
  %2395 = vmatpush1.msra.mxu0 0.0
  %2396 = vmatprep.subr.mxu0 0.0
  %2397 = vmatpush1.msra.mxu0 0.0
  %2398 = vmatprep.subr.mxu0 0.0
  %2399 = vmatpush1.msra.mxu0 0.0
  %2400 = vmatprep.subr.mxu0 0.0
  %2401 = vmatpush1.msra.mxu0 0.0
  %2402 = vmatprep.subr.mxu0 0.0
  %2403 = vmatpush1.msra.mxu0 0.0
  %2404 = vmatprep.mubr.f32.mxu0 0.0
  %2405 = vmatmul.mubr.f32.gmra.mrb[0].mxu0 %v2052
  %v2406 = vpop.f32.mrb[0].mxu0
  %v2407 = vadd.f32 0.0, %v2406
  %v2408 = vpop.f32.mrb[0].mxu0
  %2409 = vdwg.mxu0
  %2410 = vmatprep.subr.mxu0 0.0
  %2411 = vmatpush1.msra.mxu0 %v384
  %2412 = vmatprep.subr.mxu0 0.0
  %2413 = vmatpush1.msra.mxu0 %v385
  %2414 = vmatprep.subr.mxu0 0.0
  %2415 = vmatpush1.msra.mxu0 %v386
  %2416 = vmatprep.subr.mxu0 0.0
  %2417 = vmatpush1.msra.mxu0 %v387
  %2418 = vmatprep.subr.mxu0 0.0
  %2419 = vmatpush1.msra.mxu0 %v388
  %2420 = vmatprep.subr.mxu0 0.0
  %2421 = vmatpush1.msra.mxu0 %v389
  %2422 = vmatprep.subr.mxu0 0.0
  %2423 = vmatpush1.msra.mxu0 %v390
  %2424 = vmatprep.subr.mxu0 0.0
  %2425 = vmatpush1.msra.mxu0 %v391
  %2426 = vmatprep.subr.mxu0 0.0
  %2427 = vmatpush1.msra.mxu0 %v392
  %2428 = vmatprep.subr.mxu0 0.0
  %2429 = vmatpush1.msra.mxu0 %v393
  %2430 = vmatprep.subr.mxu0 0.0
  %2431 = vmatpush1.msra.mxu0 %v394
  %2432 = vmatprep.subr.mxu0 0.0
  %2433 = vmatpush1.msra.mxu0 %v395
  %2434 = vmatprep.subr.mxu0 0.0
  %2435 = vmatpush1.msra.mxu0 %v396
  %2436 = vmatprep.subr.mxu0 0.0
  %2437 = vmatpush1.msra.mxu0 %v397
  %2438 = vmatprep.subr.mxu0 0.0
  %2439 = vmatpush1.msra.mxu0 %v398
  %2440 = vmatprep.subr.mxu0 0.0
  %2441 = vmatpush1.msra.mxu0 %v399
  %2442 = vmatprep.subr.mxu0 0.0
  %2443 = vmatpush1.msra.mxu0 0.0
  %2444 = vmatprep.subr.mxu0 0.0
  %2445 = vmatpush1.msra.mxu0 0.0
  %2446 = vmatprep.subr.mxu0 0.0
  %2447 = vmatpush1.msra.mxu0 0.0
  %2448 = vmatprep.subr.mxu0 0.0
  %2449 = vmatpush1.msra.mxu0 0.0
  %2450 = vmatprep.subr.mxu0 0.0
  %2451 = vmatpush1.msra.mxu0 0.0
  %2452 = vmatprep.subr.mxu0 0.0
  %2453 = vmatpush1.msra.mxu0 0.0
  %2454 = vmatprep.subr.mxu0 0.0
  %2455 = vmatpush1.msra.mxu0 0.0
  %2456 = vmatprep.subr.mxu0 0.0
  %2457 = vmatpush1.msra.mxu0 0.0
  %2458 = vmatprep.subr.mxu0 0.0
  %2459 = vmatpush1.msra.mxu0 0.0
  %2460 = vmatprep.subr.mxu0 0.0
  %2461 = vmatpush1.msra.mxu0 0.0
  %2462 = vmatprep.subr.mxu0 0.0
  %2463 = vmatpush1.msra.mxu0 0.0
  %2464 = vmatprep.subr.mxu0 0.0
  %2465 = vmatpush1.msra.mxu0 0.0
  %2466 = vmatprep.subr.mxu0 0.0
  %2467 = vmatpush1.msra.mxu0 0.0
  %2468 = vmatprep.subr.mxu0 0.0
  %2469 = vmatpush1.msra.mxu0 0.0
  %2470 = vmatprep.subr.mxu0 0.0
  %2471 = vmatpush1.msra.mxu0 0.0
  %2472 = vmatprep.subr.mxu0 0.0
  %2473 = vmatpush1.msra.mxu0 0.0
  %2474 = vmatprep.mubr.f32.mxu0 0.0
  %2475 = vmatmul.mubr.f32.gmra.mrb[0].mxu0 %v2339
  %v2476 = vpop.f32.mrb[0].mxu0
  %v2477 = vadd.f32 0.0, %v2476
  %v2478 = vpop.f32.mrb[0].mxu0
  %2479 = vdwg.mxu0
  %2480 = vmatprep.subr.mxu0 0.0
  %2481 = vmatpush1.msra.mxu0 %v2477
  %2482 = vmatprep.subr.mxu0 0.0
  %2483 = vmatpush1.msra.mxu0 0.0
  %2484 = vmatprep.subr.mxu0 0.0
  %2485 = vmatpush1.msra.mxu0 0.0
  %2486 = vmatprep.subr.mxu0 0.0
  %2487 = vmatpush1.msra.mxu0 0.0
  %2488 = vmatprep.subr.mxu0 0.0
  %2489 = vmatpush1.msra.mxu0 0.0
  %2490 = vmatprep.subr.mxu0 0.0
  %2491 = vmatpush1.msra.mxu0 0.0
  %2492 = vmatprep.subr.mxu0 0.0
  %2493 = vmatpush1.msra.mxu0 0.0
  %2494 = vmatprep.subr.mxu0 0.0
  %2495 = vmatpush1.msra.mxu0 0.0
  %2496 = vmatprep.subr.mxu0 0.0
  %2497 = vmatpush1.msra.mxu0 0.0
  %2498 = vmatprep.subr.mxu0 0.0
  %2499 = vmatpush1.msra.mxu0 0.0
  %2500 = vmatprep.subr.mxu0 0.0
  %2501 = vmatpush1.msra.mxu0 0.0
  %2502 = vmatprep.subr.mxu0 0.0
  %2503 = vmatpush1.msra.mxu0 0.0
  %2504 = vmatprep.subr.mxu0 0.0
  %2505 = vmatpush1.msra.mxu0 0.0
  %2506 = vmatprep.subr.mxu0 0.0
  %2507 = vmatpush1.msra.mxu0 0.0
  %2508 = vmatprep.subr.mxu0 0.0
  %2509 = vmatpush1.msra.mxu0 0.0
  %2510 = vmatprep.subr.mxu0 0.0
  %2511 = vmatpush1.msra.mxu0 0.0
  %2512 = vmatprep.subr.mxu0 0.0
  %2513 = vmatpush1.msra.mxu0 0.0
  %2514 = vmatprep.subr.mxu0 0.0
  %2515 = vmatpush1.msra.mxu0 0.0
  %2516 = vmatprep.subr.mxu0 0.0
  %2517 = vmatpush1.msra.mxu0 0.0
  %2518 = vmatprep.subr.mxu0 0.0
  %2519 = vmatpush1.msra.mxu0 0.0
  %2520 = vmatprep.subr.mxu0 0.0
  %2521 = vmatpush1.msra.mxu0 0.0
  %2522 = vmatprep.subr.mxu0 0.0
  %2523 = vmatpush1.msra.mxu0 0.0
  %2524 = vmatprep.subr.mxu0 0.0
  %2525 = vmatpush1.msra.mxu0 0.0
  %2526 = vmatprep.subr.mxu0 0.0
  %2527 = vmatpush1.msra.mxu0 0.0
  %2528 = vmatprep.subr.mxu0 0.0
  %2529 = vmatpush1.msra.mxu0 0.0
  %2530 = vmatprep.subr.mxu0 0.0
  %2531 = vmatpush1.msra.mxu0 0.0
  %2532 = vmatprep.subr.mxu0 0.0
  %2533 = vmatpush1.msra.mxu0 0.0
  %2534 = vmatprep.subr.mxu0 0.0
  %2535 = vmatpush1.msra.mxu0 0.0
  %2536 = vmatprep.subr.mxu0 0.0
  %2537 = vmatpush1.msra.mxu0 0.0
  %2538 = vmatprep.subr.mxu0 0.0
  %2539 = vmatpush1.msra.mxu0 0.0
  %2540 = vmatprep.subr.mxu0 0.0
  %2541 = vmatpush1.msra.mxu0 0.0
  %2542 = vmatprep.subr.mxu0 0.0
  %2543 = vmatpush1.msra.mxu0 0.0
  %2544 = vmatprep.mubr.f32.mxu0 0.0
  %2545 = vmatmul.mubr.f32.gmra.mrb[0].mxu0 %v1028
  %v2546 = vpop.f32.mrb[0].mxu0
  %v2547 = vadd.f32 0.0, %v2546
  %v2548 = vpop.f32.mrb[0].mxu0
  %2549 = vdwg.mxu0
  %2550 = vmatprep.subr.mxu0 0.0
  %2551 = vmatpush1.msra.mxu0 %v2407
  %2552 = vmatprep.subr.mxu0 0.0
  %2553 = vmatpush1.msra.mxu0 0.0
  %2554 = vmatprep.subr.mxu0 0.0
  %2555 = vmatpush1.msra.mxu0 0.0
  %2556 = vmatprep.subr.mxu0 0.0
  %2557 = vmatpush1.msra.mxu0 0.0
  %2558 = vmatprep.subr.mxu0 0.0
  %2559 = vmatpush1.msra.mxu0 0.0
  %2560 = vmatprep.subr.mxu0 0.0
  %2561 = vmatpush1.msra.mxu0 0.0
  %2562 = vmatprep.subr.mxu0 0.0
  %2563 = vmatpush1.msra.mxu0 0.0
  %2564 = vmatprep.subr.mxu0 0.0
  %2565 = vmatpush1.msra.mxu0 0.0
  %2566 = vmatprep.subr.mxu0 0.0
  %2567 = vmatpush1.msra.mxu0 0.0
  %2568 = vmatprep.subr.mxu0 0.0
  %2569 = vmatpush1.msra.mxu0 0.0
  %2570 = vmatprep.subr.mxu0 0.0
  %2571 = vmatpush1.msra.mxu0 0.0
  %2572 = vmatprep.subr.mxu0 0.0
  %2573 = vmatpush1.msra.mxu0 0.0
  %2574 = vmatprep.subr.mxu0 0.0
  %2575 = vmatpush1.msra.mxu0 0.0
  %2576 = vmatprep.subr.mxu0 0.0
  %2577 = vmatpush1.msra.mxu0 0.0
  %2578 = vmatprep.subr.mxu0 0.0
  %2579 = vmatpush1.msra.mxu0 0.0
  %2580 = vmatprep.subr.mxu0 0.0
  %2581 = vmatpush1.msra.mxu0 0.0
  %2582 = vmatprep.subr.mxu0 0.0
  %2583 = vmatpush1.msra.mxu0 0.0
  %2584 = vmatprep.subr.mxu0 0.0
  %2585 = vmatpush1.msra.mxu0 0.0
  %2586 = vmatprep.subr.mxu0 0.0
  %2587 = vmatpush1.msra.mxu0 0.0
  %2588 = vmatprep.subr.mxu0 0.0
  %2589 = vmatpush1.msra.mxu0 0.0
  %2590 = vmatprep.subr.mxu0 0.0
  %2591 = vmatpush1.msra.mxu0 0.0
  %2592 = vmatprep.subr.mxu0 0.0
  %2593 = vmatpush1.msra.mxu0 0.0
  %2594 = vmatprep.subr.mxu0 0.0
  %2595 = vmatpush1.msra.mxu0 0.0
  %2596 = vmatprep.subr.mxu0 0.0
  %2597 = vmatpush1.msra.mxu0 0.0
  %2598 = vmatprep.subr.mxu0 0.0
  %2599 = vmatpush1.msra.mxu0 0.0
  %2600 = vmatprep.subr.mxu0 0.0
  %2601 = vmatpush1.msra.mxu0 0.0
  %2602 = vmatprep.subr.mxu0 0.0
  %2603 = vmatpush1.msra.mxu0 0.0
  %2604 = vmatprep.subr.mxu0 0.0
  %2605 = vmatpush1.msra.mxu0 0.0
  %2606 = vmatprep.subr.mxu0 0.0
  %2607 = vmatpush1.msra.mxu0 0.0
  %2608 = vmatprep.subr.mxu0 0.0
  %2609 = vmatpush1.msra.mxu0 0.0
  %2610 = vmatprep.subr.mxu0 0.0
  %2611 = vmatpush1.msra.mxu0 0.0
  %2612 = vmatprep.subr.mxu0 0.0
  %2613 = vmatpush1.msra.mxu0 0.0
  %2614 = vmatprep.mubr.f32.mxu0 0.0
  %2615 = vmatmul.mubr.f32.gmra.mrb[0].mxu0 %v1101
  %v2616 = vpop.f32.mrb[0].mxu0
  %v2617 = vadd.f32 %v2547, %v2616
  %v2618 = vpop.f32.mrb[0].mxu0
  %2619 = vdwg.mxu0
  %v2621 = vlaneseq
  %v2622 = vshrl.u32 %v2621, 7
  %v2623 = vsub.s32 0, %v2622
  %v2624 = vrot.slane %v400, %v2623
  %v2626 = vadd.f32 %v2617, %v2624
  %v2627 = vand.u32 2147483647, %v2626
  %2628 = vadd.xlane.f32.xlu0 %v2627
  %v2629 = vpop.xlane.xlu0 %2628
  %v2630 = vmax.f32 %v2629, 1e-12
  %v2631 = vrcp.pop %v2630
  %v2632 = vmul.f32 %v2626, %v2631
  %2633 = vst [vmem:[%s93] sm:$0xff] %v2632
  %v2634 = vpack.c.bf16 %v401, %v401
  %v2635 = vpack.c.bf16 %v2632, %v2632
  %v2652 = vunpack.c.l.b16 %v418
  %v2653 = vunpack.c.h.b16 %v418
  %v2654 = vunpack.c.l.b16 %v419
  %v2655 = vunpack.c.h.b16 %v419
  %v2656 = vunpack.c.l.b16 %v420
  %v2657 = vunpack.c.h.b16 %v420
  %v2658 = vunpack.c.l.b16 %v421
  %v2659 = vunpack.c.h.b16 %v421
  %v2660 = vunpack.c.l.b16 %v422
  %v2661 = vunpack.c.h.b16 %v422
  %v2662 = vunpack.c.l.b16 %v423
  %v2663 = vunpack.c.h.b16 %v423
  %v2664 = vunpack.c.l.b16 %v424
  %v2665 = vunpack.c.h.b16 %v424
  %v2666 = vunpack.c.l.b16 %v425
  %v2667 = vunpack.c.h.b16 %v425
  %v2668 = vunpack.c.l.b16 %v426
  %v2669 = vunpack.c.h.b16 %v426
  %v2670 = vunpack.c.l.b16 %v427
  %v2671 = vunpack.c.h.b16 %v427
  %v2672 = vunpack.c.l.b16 %v428
  %v2673 = vunpack.c.h.b16 %v428
  %v2674 = vunpack.c.l.b16 %v429
  %v2675 = vunpack.c.h.b16 %v429
  %v2676 = vunpack.c.l.b16 %v430
  %v2677 = vunpack.c.h.b16 %v430
  %v2678 = vunpack.c.l.b16 %v431
  %v2679 = vunpack.c.h.b16 %v431
  %v2680 = vunpack.c.l.b16 %v432
  %v2681 = vunpack.c.h.b16 %v432
  %v2682 = vunpack.c.l.b16 %v433
  %v2683 = vunpack.c.h.b16 %v433
  %v2684 = vpack.c.b16 %v2654, %v2652
  %v2685 = vpack.c.b16 %v2655, %v2653
  %v2686 = vpack.c.b16 %v2658, %v2656
  %v2687 = vpack.c.b16 %v2659, %v2657
  %v2688 = vpack.c.b16 %v2662, %v2660
  %v2689 = vpack.c.b16 %v2663, %v2661
  %v2690 = vpack.c.b16 %v2666, %v2664
  %v2691 = vpack.c.b16 %v2667, %v2665
  %v2692 = vpack.c.b16 %v2670, %v2668
  %v2693 = vpack.c.b16 %v2671, %v2669
  %v2694 = vpack.c.b16 %v2674, %v2672
  %v2695 = vpack.c.b16 %v2675, %v2673
  %v2696 = vpack.c.b16 %v2678, %v2676
  %v2697 = vpack.c.b16 %v2679, %v2677
  %v2698 = vpack.c.b16 %v2682, %v2680
  %v2699 = vpack.c.b16 %v2683, %v2681
  %2716 = vmatprep.subr.bf16.mxu0 %v2685
  %2717 = vmatpush1.bf16.msra.mxu0 %v2684
  %2718 = vmatprep.subr.bf16.mxu0 %v2687
  %2719 = vmatpush1.bf16.msra.mxu0 %v2686
  %2720 = vmatprep.subr.bf16.mxu0 %v2689
  %2721 = vmatpush1.bf16.msra.mxu0 %v2688
  %2722 = vmatprep.subr.bf16.mxu0 %v2691
  %2723 = vmatpush1.bf16.msra.mxu0 %v2690
  %2724 = vmatprep.subr.bf16.mxu0 %v2693
  %2725 = vmatpush1.bf16.msra.mxu0 %v2692
  %2726 = vmatprep.subr.bf16.mxu0 %v2695
  %2727 = vmatpush1.bf16.msra.mxu0 %v2694
  %2728 = vmatprep.subr.bf16.mxu0 %v2697
  %2729 = vmatpush1.bf16.msra.mxu0 %v2696
  %2730 = vmatprep.subr.bf16.mxu0 %v2699
  %2731 = vmatpush1.bf16.msra.mxu0 %v2698
  %2732 = vmatprep.subr.bf16.mxu0 0
  %2733 = vmatpush1.bf16.msra.mxu0 0
  %2734 = vmatprep.subr.bf16.mxu0 0
  %2735 = vmatpush1.bf16.msra.mxu0 0
  %2736 = vmatprep.subr.bf16.mxu0 0
  %2737 = vmatpush1.bf16.msra.mxu0 0
  %2738 = vmatprep.subr.bf16.mxu0 0
  %2739 = vmatpush1.bf16.msra.mxu0 0
  %2740 = vmatprep.subr.bf16.mxu0 0
  %2741 = vmatpush1.bf16.msra.mxu0 0
  %2742 = vmatprep.subr.bf16.mxu0 0
  %2743 = vmatpush1.bf16.msra.mxu0 0
  %2744 = vmatprep.subr.bf16.mxu0 0
  %2745 = vmatpush1.bf16.msra.mxu0 0
  %2746 = vmatprep.subr.bf16.mxu0 0
  %2747 = vmatpush1.bf16.msra.mxu0 0
  %2748 = vmatprep.mubr.bf16.mxu0 0
  %2749 = vmatmul.mubr.bf16.gmra.mrb[0].mxu0 %v2635
  %v2750 = vpop.f32.mrb[0].mxu0
  %v2751 = vadd.f32 0.0, %v2750
  %v2752 = vpop.f32.mrb[0].mxu0
  %v2753 = vadd.f32 0.0, %v2752
  %v2754 = vpop.f32.mrb[0].mxu0
  %v2755 = vpop.f32.mrb[0].mxu0
  %2756 = vdwg.mxu0
  %v2773 = vunpack.c.l.b16 %v402
  %v2774 = vunpack.c.h.b16 %v402
  %v2775 = vunpack.c.l.b16 %v403
  %v2776 = vunpack.c.h.b16 %v403
  %v2777 = vunpack.c.l.b16 %v404
  %v2778 = vunpack.c.h.b16 %v404
  %v2779 = vunpack.c.l.b16 %v405
  %v2780 = vunpack.c.h.b16 %v405
  %v2781 = vunpack.c.l.b16 %v406
  %v2782 = vunpack.c.h.b16 %v406
  %v2783 = vunpack.c.l.b16 %v407
  %v2784 = vunpack.c.h.b16 %v407
  %v2785 = vunpack.c.l.b16 %v408
  %v2786 = vunpack.c.h.b16 %v408
  %v2787 = vunpack.c.l.b16 %v409
  %v2788 = vunpack.c.h.b16 %v409
  %v2789 = vunpack.c.l.b16 %v410
  %v2790 = vunpack.c.h.b16 %v410
  %v2791 = vunpack.c.l.b16 %v411
  %v2792 = vunpack.c.h.b16 %v411
  %v2793 = vunpack.c.l.b16 %v412
  %v2794 = vunpack.c.h.b16 %v412
  %v2795 = vunpack.c.l.b16 %v413
  %v2796 = vunpack.c.h.b16 %v413
  %v2797 = vunpack.c.l.b16 %v414
  %v2798 = vunpack.c.h.b16 %v414
  %v2799 = vunpack.c.l.b16 %v415
  %v2800 = vunpack.c.h.b16 %v415
  %v2801 = vunpack.c.l.b16 %v416
  %v2802 = vunpack.c.h.b16 %v416
  %v2803 = vunpack.c.l.b16 %v417
  %v2804 = vunpack.c.h.b16 %v417
  %v2805 = vpack.c.b16 %v2775, %v2773
  %v2806 = vpack.c.b16 %v2776, %v2774
  %v2807 = vpack.c.b16 %v2779, %v2777
  %v2808 = vpack.c.b16 %v2780, %v2778
  %v2809 = vpack.c.b16 %v2783, %v2781
  %v2810 = vpack.c.b16 %v2784, %v2782
  %v2811 = vpack.c.b16 %v2787, %v2785
  %v2812 = vpack.c.b16 %v2788, %v2786
  %v2813 = vpack.c.b16 %v2791, %v2789
  %v2814 = vpack.c.b16 %v2792, %v2790
  %v2815 = vpack.c.b16 %v2795, %v2793
  %v2816 = vpack.c.b16 %v2796, %v2794
  %v2817 = vpack.c.b16 %v2799, %v2797
  %v2818 = vpack.c.b16 %v2800, %v2798
  %v2819 = vpack.c.b16 %v2803, %v2801
  %v2820 = vpack.c.b16 %v2804, %v2802
  %2837 = vmatprep.subr.bf16.mxu0 %v2806
  %2838 = vmatpush1.bf16.msra.mxu0 %v2805
  %2839 = vmatprep.subr.bf16.mxu0 %v2808
  %2840 = vmatpush1.bf16.msra.mxu0 %v2807
  %2841 = vmatprep.subr.bf16.mxu0 %v2810
  %2842 = vmatpush1.bf16.msra.mxu0 %v2809
  %2843 = vmatprep.subr.bf16.mxu0 %v2812
  %2844 = vmatpush1.bf16.msra.mxu0 %v2811
  %2845 = vmatprep.subr.bf16.mxu0 %v2814
  %2846 = vmatpush1.bf16.msra.mxu0 %v2813
  %2847 = vmatprep.subr.bf16.mxu0 %v2816
  %2848 = vmatpush1.bf16.msra.mxu0 %v2815
  %2849 = vmatprep.subr.bf16.mxu0 %v2818
  %2850 = vmatpush1.bf16.msra.mxu0 %v2817
  %2851 = vmatprep.subr.bf16.mxu0 %v2820
  %2852 = vmatpush1.bf16.msra.mxu0 %v2819
  %2853 = vmatprep.subr.bf16.mxu0 0
  %2854 = vmatpush1.bf16.msra.mxu0 0
  %2855 = vmatprep.subr.bf16.mxu0 0
  %2856 = vmatpush1.bf16.msra.mxu0 0
  %2857 = vmatprep.subr.bf16.mxu0 0
  %2858 = vmatpush1.bf16.msra.mxu0 0
  %2859 = vmatprep.subr.bf16.mxu0 0
  %2860 = vmatpush1.bf16.msra.mxu0 0
  %2861 = vmatprep.subr.bf16.mxu0 0
  %2862 = vmatpush1.bf16.msra.mxu0 0
  %2863 = vmatprep.subr.bf16.mxu0 0
  %2864 = vmatpush1.bf16.msra.mxu0 0
  %2865 = vmatprep.subr.bf16.mxu0 0
  %2866 = vmatpush1.bf16.msra.mxu0 0
  %2867 = vmatprep.subr.bf16.mxu0 0
  %2868 = vmatpush1.bf16.msra.mxu0 0
  %2869 = vmatprep.mubr.bf16.mxu0 0
  %2870 = vmatmul.mubr.bf16.gmra.mrb[0].mxu0 %v2634
  %v2871 = vpop.f32.mrb[0].mxu0
  %v2872 = vadd.f32 %v2751, %v2871
  %v2873 = vpop.f32.mrb[0].mxu0
  %v2874 = vadd.f32 %v2753, %v2873
  %v2875 = vpop.f32.mrb[0].mxu0
  %v2876 = vpop.f32.mrb[0].mxu0
  %2877 = vdwg.mxu0
  %v2879 = vlaneseq
  %v2880 = vshrl.u32 %v2879, 7
  %v2881 = vsub.s32 0, %v2880
  %v2882 = vrot.slane %v434, %v2881
  %v2883 = vlaneseq
  %v2884 = vshrl.u32 %v2883, 7
  %v2885 = vsub.s32 1, %v2884
  %v2886 = vrot.slane %v434, %v2885
  %v2889 = vadd.f32 %v2872, %v2882
  %v2890 = vadd.f32 %v2874, %v2886
  %v2891 = vmax.f32 %v2889, 0.0
  %v2892 = vmax.f32 %v2890, 0.0
  %v2893 = vpack.c.bf16 %v2891, %v2891
  %v2894 = vpack.c.bf16 %v2892, %v2892
  %v2896 = vlaneseq
  %v2897 = vshrl.u32 %v2896, 7
  %v2898 = vsub.s32 0, %v2897
  %v2899 = vrot.slane %v499, %v2898
  %v2900 = vlaneseq
  %v2901 = vshrl.u32 %v2900, 7
  %v2902 = vsub.s32 1, %v2901
  %v2903 = vrot.slane %v499, %v2902
  %v2904 = vlaneseq
  %v2905 = vshrl.u32 %v2904, 7
  %v2906 = vsub.s32 2, %v2905
  %v2907 = vrot.slane %v499, %v2906
  %v2908 = vlaneseq
  %v2909 = vshrl.u32 %v2908, 7
  %v2910 = vsub.s32 3, %v2909
  %v2911 = vrot.slane %v499, %v2910
  %v2980 = vunpack.c.l.b16 %v435
  %v2981 = vunpack.c.h.b16 %v435
  %v2982 = vunpack.c.l.b16 %v436
  %v2983 = vunpack.c.h.b16 %v436
  %v2984 = vunpack.c.l.b16 %v437
  %v2985 = vunpack.c.h.b16 %v437
  %v2986 = vunpack.c.l.b16 %v438
  %v2987 = vunpack.c.h.b16 %v438
  %v2988 = vunpack.c.l.b16 %v439
  %v2989 = vunpack.c.h.b16 %v439
  %v2990 = vunpack.c.l.b16 %v440
  %v2991 = vunpack.c.h.b16 %v440
  %v2992 = vunpack.c.l.b16 %v441
  %v2993 = vunpack.c.h.b16 %v441
  %v2994 = vunpack.c.l.b16 %v442
  %v2995 = vunpack.c.h.b16 %v442
  %v2996 = vunpack.c.l.b16 %v443
  %v2997 = vunpack.c.h.b16 %v443
  %v2998 = vunpack.c.l.b16 %v444
  %v2999 = vunpack.c.h.b16 %v444
  %v3000 = vunpack.c.l.b16 %v445
  %v3001 = vunpack.c.h.b16 %v445
  %v3002 = vunpack.c.l.b16 %v446
  %v3003 = vunpack.c.h.b16 %v446
  %v3004 = vunpack.c.l.b16 %v447
  %v3005 = vunpack.c.h.b16 %v447
  %v3006 = vunpack.c.l.b16 %v448
  %v3007 = vunpack.c.h.b16 %v448
  %v3008 = vunpack.c.l.b16 %v449
  %v3009 = vunpack.c.h.b16 %v449
  %v3010 = vunpack.c.l.b16 %v450
  %v3011 = vunpack.c.h.b16 %v450
  %v3012 = vunpack.c.l.b16 %v451
  %v3013 = vunpack.c.h.b16 %v451
  %v3014 = vunpack.c.l.b16 %v452
  %v3015 = vunpack.c.h.b16 %v452
  %v3016 = vunpack.c.l.b16 %v453
  %v3017 = vunpack.c.h.b16 %v453
  %v3018 = vunpack.c.l.b16 %v454
  %v3019 = vunpack.c.h.b16 %v454
  %v3020 = vunpack.c.l.b16 %v455
  %v3021 = vunpack.c.h.b16 %v455
  %v3022 = vunpack.c.l.b16 %v456
  %v3023 = vunpack.c.h.b16 %v456
  %v3024 = vunpack.c.l.b16 %v457
  %v3025 = vunpack.c.h.b16 %v457
  %v3026 = vunpack.c.l.b16 %v458
  %v3027 = vunpack.c.h.b16 %v458
  %v3028 = vunpack.c.l.b16 %v459
  %v3029 = vunpack.c.h.b16 %v459
  %v3030 = vunpack.c.l.b16 %v460
  %v3031 = vunpack.c.h.b16 %v460
  %v3032 = vunpack.c.l.b16 %v461
  %v3033 = vunpack.c.h.b16 %v461
  %v3034 = vunpack.c.l.b16 %v462
  %v3035 = vunpack.c.h.b16 %v462
  %v3036 = vunpack.c.l.b16 %v463
  %v3037 = vunpack.c.h.b16 %v463
  %v3038 = vunpack.c.l.b16 %v464
  %v3039 = vunpack.c.h.b16 %v464
  %v3040 = vunpack.c.l.b16 %v465
  %v3041 = vunpack.c.h.b16 %v465
  %v3042 = vunpack.c.l.b16 %v466
  %v3043 = vunpack.c.h.b16 %v466
  %v3044 = vunpack.c.l.b16 %v467
  %v3045 = vunpack.c.h.b16 %v467
  %v3046 = vunpack.c.l.b16 %v468
  %v3047 = vunpack.c.h.b16 %v468
  %v3048 = vunpack.c.l.b16 %v469
  %v3049 = vunpack.c.h.b16 %v469
  %v3050 = vunpack.c.l.b16 %v470
  %v3051 = vunpack.c.h.b16 %v470
  %v3052 = vunpack.c.l.b16 %v471
  %v3053 = vunpack.c.h.b16 %v471
  %v3054 = vunpack.c.l.b16 %v472
  %v3055 = vunpack.c.h.b16 %v472
  %v3056 = vunpack.c.l.b16 %v473
  %v3057 = vunpack.c.h.b16 %v473
  %v3058 = vunpack.c.l.b16 %v474
  %v3059 = vunpack.c.h.b16 %v474
  %v3060 = vunpack.c.l.b16 %v475
  %v3061 = vunpack.c.h.b16 %v475
  %v3062 = vunpack.c.l.b16 %v476
  %v3063 = vunpack.c.h.b16 %v476
  %v3064 = vunpack.c.l.b16 %v477
  %v3065 = vunpack.c.h.b16 %v477
  %v3066 = vunpack.c.l.b16 %v478
  %v3067 = vunpack.c.h.b16 %v478
  %v3068 = vunpack.c.l.b16 %v479
  %v3069 = vunpack.c.h.b16 %v479
  %v3070 = vunpack.c.l.b16 %v480
  %v3071 = vunpack.c.h.b16 %v480
  %v3072 = vunpack.c.l.b16 %v481
  %v3073 = vunpack.c.h.b16 %v481
  %v3074 = vunpack.c.l.b16 %v482
  %v3075 = vunpack.c.h.b16 %v482
  %v3076 = vunpack.c.l.b16 %v483
  %v3077 = vunpack.c.h.b16 %v483
  %v3078 = vunpack.c.l.b16 %v484
  %v3079 = vunpack.c.h.b16 %v484
  %v3080 = vunpack.c.l.b16 %v485
  %v3081 = vunpack.c.h.b16 %v485
  %v3082 = vunpack.c.l.b16 %v486
  %v3083 = vunpack.c.h.b16 %v486
  %v3084 = vunpack.c.l.b16 %v487
  %v3085 = vunpack.c.h.b16 %v487
  %v3086 = vunpack.c.l.b16 %v488
  %v3087 = vunpack.c.h.b16 %v488
  %v3088 = vunpack.c.l.b16 %v489
  %v3089 = vunpack.c.h.b16 %v489
  %v3090 = vunpack.c.l.b16 %v490
  %v3091 = vunpack.c.h.b16 %v490
  %v3092 = vunpack.c.l.b16 %v491
  %v3093 = vunpack.c.h.b16 %v491
  %v3094 = vunpack.c.l.b16 %v492
  %v3095 = vunpack.c.h.b16 %v492
  %v3096 = vunpack.c.l.b16 %v493
  %v3097 = vunpack.c.h.b16 %v493
  %v3098 = vunpack.c.l.b16 %v494
  %v3099 = vunpack.c.h.b16 %v494
  %v3100 = vunpack.c.l.b16 %v495
  %v3101 = vunpack.c.h.b16 %v495
  %v3102 = vunpack.c.l.b16 %v496
  %v3103 = vunpack.c.h.b16 %v496
  %v3104 = vunpack.c.l.b16 %v497
  %v3105 = vunpack.c.h.b16 %v497
  %v3106 = vunpack.c.l.b16 %v498
  %v3107 = vunpack.c.h.b16 %v498
  %v3108 = vpack.c.b16 %v2984, %v2980
  %v3109 = vpack.c.b16 %v2985, %v2981
  %v3110 = vpack.c.b16 %v2986, %v2982
  %v3111 = vpack.c.b16 %v2987, %v2983
  %v3112 = vpack.c.b16 %v2992, %v2988
  %v3113 = vpack.c.b16 %v2993, %v2989
  %v3114 = vpack.c.b16 %v2994, %v2990
  %v3115 = vpack.c.b16 %v2995, %v2991
  %v3116 = vpack.c.b16 %v3000, %v2996
  %v3117 = vpack.c.b16 %v3001, %v2997
  %v3118 = vpack.c.b16 %v3002, %v2998
  %v3119 = vpack.c.b16 %v3003, %v2999
  %v3120 = vpack.c.b16 %v3008, %v3004
  %v3121 = vpack.c.b16 %v3009, %v3005
  %v3122 = vpack.c.b16 %v3010, %v3006
  %v3123 = vpack.c.b16 %v3011, %v3007
  %v3124 = vpack.c.b16 %v3016, %v3012
  %v3125 = vpack.c.b16 %v3017, %v3013
  %v3126 = vpack.c.b16 %v3018, %v3014
  %v3127 = vpack.c.b16 %v3019, %v3015
  %v3128 = vpack.c.b16 %v3024, %v3020
  %v3129 = vpack.c.b16 %v3025, %v3021
  %v3130 = vpack.c.b16 %v3026, %v3022
  %v3131 = vpack.c.b16 %v3027, %v3023
  %v3132 = vpack.c.b16 %v3032, %v3028
  %v3133 = vpack.c.b16 %v3033, %v3029
  %v3134 = vpack.c.b16 %v3034, %v3030
  %v3135 = vpack.c.b16 %v3035, %v3031
  %v3136 = vpack.c.b16 %v3040, %v3036
  %v3137 = vpack.c.b16 %v3041, %v3037
  %v3138 = vpack.c.b16 %v3042, %v3038
  %v3139 = vpack.c.b16 %v3043, %v3039
  %v3140 = vpack.c.b16 %v3048, %v3044
  %v3141 = vpack.c.b16 %v3049, %v3045
  %v3142 = vpack.c.b16 %v3050, %v3046
  %v3143 = vpack.c.b16 %v3051, %v3047
  %v3144 = vpack.c.b16 %v3056, %v3052
  %v3145 = vpack.c.b16 %v3057, %v3053
  %v3146 = vpack.c.b16 %v3058, %v3054
  %v3147 = vpack.c.b16 %v3059, %v3055
  %v3148 = vpack.c.b16 %v3064, %v3060
  %v3149 = vpack.c.b16 %v3065, %v3061
  %v3150 = vpack.c.b16 %v3066, %v3062
  %v3151 = vpack.c.b16 %v3067, %v3063
  %v3152 = vpack.c.b16 %v3072, %v3068
  %v3153 = vpack.c.b16 %v3073, %v3069
  %v3154 = vpack.c.b16 %v3074, %v3070
  %v3155 = vpack.c.b16 %v3075, %v3071
  %v3156 = vpack.c.b16 %v3080, %v3076
  %v3157 = vpack.c.b16 %v3081, %v3077
  %v3158 = vpack.c.b16 %v3082, %v3078
  %v3159 = vpack.c.b16 %v3083, %v3079
  %v3160 = vpack.c.b16 %v3088, %v3084
  %v3161 = vpack.c.b16 %v3089, %v3085
  %v3162 = vpack.c.b16 %v3090, %v3086
  %v3163 = vpack.c.b16 %v3091, %v3087
  %v3164 = vpack.c.b16 %v3096, %v3092
  %v3165 = vpack.c.b16 %v3097, %v3093
  %v3166 = vpack.c.b16 %v3098, %v3094
  %v3167 = vpack.c.b16 %v3099, %v3095
  %v3168 = vpack.c.b16 %v3104, %v3100
  %v3169 = vpack.c.b16 %v3105, %v3101
  %v3170 = vpack.c.b16 %v3106, %v3102
  %v3171 = vpack.c.b16 %v3107, %v3103
  %3236 = vmatprep.subr.bf16.mxu0 %v3109
  %3237 = vmatpush1.bf16.msra.mxu0 %v3108
  %3238 = vmatprep.subr.bf16.mxu0 %v3113
  %3239 = vmatpush1.bf16.msra.mxu0 %v3112
  %3240 = vmatprep.subr.bf16.mxu0 %v3117
  %3241 = vmatpush1.bf16.msra.mxu0 %v3116
  %3242 = vmatprep.subr.bf16.mxu0 %v3121
  %3243 = vmatpush1.bf16.msra.mxu0 %v3120
  %3244 = vmatprep.subr.bf16.mxu0 %v3125
  %3245 = vmatpush1.bf16.msra.mxu0 %v3124
  %3246 = vmatprep.subr.bf16.mxu0 %v3129
  %3247 = vmatpush1.bf16.msra.mxu0 %v3128
  %3248 = vmatprep.subr.bf16.mxu0 %v3133
  %3249 = vmatpush1.bf16.msra.mxu0 %v3132
  %3250 = vmatprep.subr.bf16.mxu0 %v3137
  %3251 = vmatpush1.bf16.msra.mxu0 %v3136
  %3252 = vmatprep.subr.bf16.mxu0 %v3141
  %3253 = vmatpush1.bf16.msra.mxu0 %v3140
  %3254 = vmatprep.subr.bf16.mxu0 %v3145
  %3255 = vmatpush1.bf16.msra.mxu0 %v3144
  %3256 = vmatprep.subr.bf16.mxu0 %v3149
  %3257 = vmatpush1.bf16.msra.mxu0 %v3148
  %3258 = vmatprep.subr.bf16.mxu0 %v3153
  %3259 = vmatpush1.bf16.msra.mxu0 %v3152
  %3260 = vmatprep.subr.bf16.mxu0 %v3157
  %3261 = vmatpush1.bf16.msra.mxu0 %v3156
  %3262 = vmatprep.subr.bf16.mxu0 %v3161
  %3263 = vmatpush1.bf16.msra.mxu0 %v3160
  %3264 = vmatprep.subr.bf16.mxu0 %v3165
  %3265 = vmatpush1.bf16.msra.mxu0 %v3164
  %3266 = vmatprep.subr.bf16.mxu0 %v3169
  %3267 = vmatpush1.bf16.msra.mxu0 %v3168
  %3268 = vmatprep.mubr.bf16.mxu0 %v2894
  %3269 = vmatmul.mubr.bf16.gmra.mrb[0].mxu0 %v2893
  %v3270 = vpop.f32.mrb[0].mxu0
  %v3271 = vadd.f32 %v2899, %v3270
  %v3272 = vpop.f32.mrb[0].mxu0
  %v3273 = vadd.f32 %v2903, %v3272
  %v3274 = vpop.f32.mrb[0].mxu0
  %v3275 = vpop.f32.mrb[0].mxu0
  %3276 = vdwg.mxu0
  %3277 = vmatprep.subr.bf16.mxu0 %v3111
  %3278 = vmatpush1.bf16.msra.mxu0 %v3110
  %3279 = vmatprep.subr.bf16.mxu0 %v3115
  %3280 = vmatpush1.bf16.msra.mxu0 %v3114
  %3281 = vmatprep.subr.bf16.mxu0 %v3119
  %3282 = vmatpush1.bf16.msra.mxu0 %v3118
  %3283 = vmatprep.subr.bf16.mxu0 %v3123
  %3284 = vmatpush1.bf16.msra.mxu0 %v3122
  %3285 = vmatprep.subr.bf16.mxu0 %v3127
  %3286 = vmatpush1.bf16.msra.mxu0 %v3126
  %3287 = vmatprep.subr.bf16.mxu0 %v3131
  %3288 = vmatpush1.bf16.msra.mxu0 %v3130
  %3289 = vmatprep.subr.bf16.mxu0 %v3135
  %3290 = vmatpush1.bf16.msra.mxu0 %v3134
  %3291 = vmatprep.subr.bf16.mxu0 %v3139
  %3292 = vmatpush1.bf16.msra.mxu0 %v3138
  %3293 = vmatprep.subr.bf16.mxu0 %v3143
  %3294 = vmatpush1.bf16.msra.mxu0 %v3142
  %3295 = vmatprep.subr.bf16.mxu0 %v3147
  %3296 = vmatpush1.bf16.msra.mxu0 %v3146
  %3297 = vmatprep.subr.bf16.mxu0 %v3151
  %3298 = vmatpush1.bf16.msra.mxu0 %v3150
  %3299 = vmatprep.subr.bf16.mxu0 %v3155
  %3300 = vmatpush1.bf16.msra.mxu0 %v3154
  %3301 = vmatprep.subr.bf16.mxu0 %v3159
  %3302 = vmatpush1.bf16.msra.mxu0 %v3158
  %3303 = vmatprep.subr.bf16.mxu0 %v3163
  %3304 = vmatpush1.bf16.msra.mxu0 %v3162
  %3305 = vmatprep.subr.bf16.mxu0 %v3167
  %3306 = vmatpush1.bf16.msra.mxu0 %v3166
  %3307 = vmatprep.subr.bf16.mxu0 %v3171
  %3308 = vmatpush1.bf16.msra.mxu0 %v3170
  %3309 = vmatprep.mubr.bf16.mxu0 %v2894
  %3310 = vmatmul.mubr.bf16.gmra.mrb[0].mxu0 %v2893
  %v3311 = vpop.f32.mrb[0].mxu0
  %v3312 = vadd.f32 %v2907, %v3311
  %v3313 = vpop.f32.mrb[0].mxu0
  %v3314 = vadd.f32 %v2911, %v3313
  %v3315 = vpop.f32.mrb[0].mxu0
  %v3316 = vpop.f32.mrb[0].mxu0
  %3317 = vdwg.mxu0
  %v3318 = vmax.f32 %v3271, 0.0
  %v3319 = vmax.f32 %v3273, 0.0
  %v3320 = vmax.f32 %v3312, 0.0
  %v3321 = vmax.f32 %v3314, 0.0
  %v3322 = vpack.c.bf16 %v3318, %v3318
  %v3323 = vpack.c.bf16 %v3319, %v3319
  %v3324 = vpack.c.bf16 %v3320, %v3320
  %v3325 = vpack.c.bf16 %v3321, %v3321
  %v3327 = vlaneseq
  %v3328 = vshrl.u32 %v3327, 7
  %v3329 = vsub.s32 0, %v3328
  %v3330 = vrot.slane %v756, %v3329
  %v3331 = vlaneseq
  %v3332 = vshrl.u32 %v3331, 7
  %v3333 = vsub.s32 1, %v3332
  %v3334 = vrot.slane %v756, %v3333
  %v3335 = vlaneseq
  %v3336 = vshrl.u32 %v3335, 7
  %v3337 = vsub.s32 2, %v3336
  %v3338 = vrot.slane %v756, %v3337
  %v3339 = vlaneseq
  %v3340 = vshrl.u32 %v3339, 7
  %v3341 = vsub.s32 3, %v3340
  %v3342 = vrot.slane %v756, %v3341
  %v3343 = vlaneseq
  %v3344 = vshrl.u32 %v3343, 7
  %v3345 = vsub.s32 4, %v3344
  %v3346 = vrot.slane %v756, %v3345
  %v3347 = vlaneseq
  %v3348 = vshrl.u32 %v3347, 7
  %v3349 = vsub.s32 5, %v3348
  %v3350 = vrot.slane %v756, %v3349
  %v3351 = vlaneseq
  %v3352 = vshrl.u32 %v3351, 7
  %v3353 = vsub.s32 6, %v3352
  %v3354 = vrot.slane %v756, %v3353
  %v3355 = vlaneseq
  %v3356 = vshrl.u32 %v3355, 7
  %v3357 = vsub.s32 7, %v3356
  %v3358 = vrot.slane %v756, %v3357
  %v3623 = vunpack.c.l.b16 %v500
  %v3624 = vunpack.c.h.b16 %v500
  %v3625 = vunpack.c.l.b16 %v501
  %v3626 = vunpack.c.h.b16 %v501
  %v3627 = vunpack.c.l.b16 %v502
  %v3628 = vunpack.c.h.b16 %v502
  %v3629 = vunpack.c.l.b16 %v503
  %v3630 = vunpack.c.h.b16 %v503
  %v3631 = vunpack.c.l.b16 %v504
  %v3632 = vunpack.c.h.b16 %v504
  %v3633 = vunpack.c.l.b16 %v505
  %v3634 = vunpack.c.h.b16 %v505
  %v3635 = vunpack.c.l.b16 %v506
  %v3636 = vunpack.c.h.b16 %v506
  %v3637 = vunpack.c.l.b16 %v507
  %v3638 = vunpack.c.h.b16 %v507
  %v3639 = vunpack.c.l.b16 %v508
  %v3640 = vunpack.c.h.b16 %v508
  %v3641 = vunpack.c.l.b16 %v509
  %v3642 = vunpack.c.h.b16 %v509
  %v3643 = vunpack.c.l.b16 %v510
  %v3644 = vunpack.c.h.b16 %v510
  %v3645 = vunpack.c.l.b16 %v511
  %v3646 = vunpack.c.h.b16 %v511
  %v3647 = vunpack.c.l.b16 %v512
  %v3648 = vunpack.c.h.b16 %v512
  %v3649 = vunpack.c.l.b16 %v513
  %v3650 = vunpack.c.h.b16 %v513
  %v3651 = vunpack.c.l.b16 %v514
  %v3652 = vunpack.c.h.b16 %v514
  %v3653 = vunpack.c.l.b16 %v515
  %v3654 = vunpack.c.h.b16 %v515
  %v3655 = vunpack.c.l.b16 %v516
  %v3656 = vunpack.c.h.b16 %v516
  %v3657 = vunpack.c.l.b16 %v517
  %v3658 = vunpack.c.h.b16 %v517
  %v3659 = vunpack.c.l.b16 %v518
  %v3660 = vunpack.c.h.b16 %v518
  %v3661 = vunpack.c.l.b16 %v519
  %v3662 = vunpack.c.h.b16 %v519
  %v3663 = vunpack.c.l.b16 %v520
  %v3664 = vunpack.c.h.b16 %v520
  %v3665 = vunpack.c.l.b16 %v521
  %v3666 = vunpack.c.h.b16 %v521
  %v3667 = vunpack.c.l.b16 %v522
  %v3668 = vunpack.c.h.b16 %v522
  %v3669 = vunpack.c.l.b16 %v523
  %v3670 = vunpack.c.h.b16 %v523
  %v3671 = vunpack.c.l.b16 %v524
  %v3672 = vunpack.c.h.b16 %v524
  %v3673 = vunpack.c.l.b16 %v525
  %v3674 = vunpack.c.h.b16 %v525
  %v3675 = vunpack.c.l.b16 %v526
  %v3676 = vunpack.c.h.b16 %v526
  %v3677 = vunpack.c.l.b16 %v527
  %v3678 = vunpack.c.h.b16 %v527
  %v3679 = vunpack.c.l.b16 %v528
  %v3680 = vunpack.c.h.b16 %v528
  %v3681 = vunpack.c.l.b16 %v529
  %v3682 = vunpack.c.h.b16 %v529
  %v3683 = vunpack.c.l.b16 %v530
  %v3684 = vunpack.c.h.b16 %v530
  %v3685 = vunpack.c.l.b16 %v531
  %v3686 = vunpack.c.h.b16 %v531
  %v3687 = vunpack.c.l.b16 %v532
  %v3688 = vunpack.c.h.b16 %v532
  %v3689 = vunpack.c.l.b16 %v533
  %v3690 = vunpack.c.h.b16 %v533
  %v3691 = vunpack.c.l.b16 %v534
  %v3692 = vunpack.c.h.b16 %v534
  %v3693 = vunpack.c.l.b16 %v535
  %v3694 = vunpack.c.h.b16 %v535
  %v3695 = vunpack.c.l.b16 %v536
  %v3696 = vunpack.c.h.b16 %v536
  %v3697 = vunpack.c.l.b16 %v537
  %v3698 = vunpack.c.h.b16 %v537
  %v3699 = vunpack.c.l.b16 %v538
  %v3700 = vunpack.c.h.b16 %v538
  %v3701 = vunpack.c.l.b16 %v539
  %v3702 = vunpack.c.h.b16 %v539
  %v3703 = vunpack.c.l.b16 %v540
  %v3704 = vunpack.c.h.b16 %v540
  %v3705 = vunpack.c.l.b16 %v541
  %v3706 = vunpack.c.h.b16 %v541
  %v3707 = vunpack.c.l.b16 %v542
  %v3708 = vunpack.c.h.b16 %v542
  %v3709 = vunpack.c.l.b16 %v543
  %v3710 = vunpack.c.h.b16 %v543
  %v3711 = vunpack.c.l.b16 %v544
  %v3712 = vunpack.c.h.b16 %v544
  %v3713 = vunpack.c.l.b16 %v545
  %v3714 = vunpack.c.h.b16 %v545
  %v3715 = vunpack.c.l.b16 %v546
  %v3716 = vunpack.c.h.b16 %v546
  %v3717 = vunpack.c.l.b16 %v547
  %v3718 = vunpack.c.h.b16 %v547
  %v3719 = vunpack.c.l.b16 %v548
  %v3720 = vunpack.c.h.b16 %v548
  %v3721 = vunpack.c.l.b16 %v549
  %v3722 = vunpack.c.h.b16 %v549
  %v3723 = vunpack.c.l.b16 %v550
  %v3724 = vunpack.c.h.b16 %v550
  %v3725 = vunpack.c.l.b16 %v551
  %v3726 = vunpack.c.h.b16 %v551
  %v3727 = vunpack.c.l.b16 %v552
  %v3728 = vunpack.c.h.b16 %v552
  %v3729 = vunpack.c.l.b16 %v553
  %v3730 = vunpack.c.h.b16 %v553
  %v3731 = vunpack.c.l.b16 %v554
  %v3732 = vunpack.c.h.b16 %v554
  %v3733 = vunpack.c.l.b16 %v555
  %v3734 = vunpack.c.h.b16 %v555
  %v3735 = vunpack.c.l.b16 %v556
  %v3736 = vunpack.c.h.b16 %v556
  %v3737 = vunpack.c.l.b16 %v557
  %v3738 = vunpack.c.h.b16 %v557
  %v3739 = vunpack.c.l.b16 %v558
  %v3740 = vunpack.c.h.b16 %v558
  %v3741 = vunpack.c.l.b16 %v559
  %v3742 = vunpack.c.h.b16 %v559
  %v3743 = vunpack.c.l.b16 %v560
  %v3744 = vunpack.c.h.b16 %v560
  %v3745 = vunpack.c.l.b16 %v561
  %v3746 = vunpack.c.h.b16 %v561
  %v3747 = vunpack.c.l.b16 %v562
  %v3748 = vunpack.c.h.b16 %v562
  %v3749 = vunpack.c.l.b16 %v563
  %v3750 = vunpack.c.h.b16 %v563
  %v3751 = vunpack.c.l.b16 %v564
  %v3752 = vunpack.c.h.b16 %v564
  %v3753 = vunpack.c.l.b16 %v565
  %v3754 = vunpack.c.h.b16 %v565
  %v3755 = vunpack.c.l.b16 %v566
  %v3756 = vunpack.c.h.b16 %v566
  %v3757 = vunpack.c.l.b16 %v567
  %v3758 = vunpack.c.h.b16 %v567
  %v3759 = vunpack.c.l.b16 %v568
  %v3760 = vunpack.c.h.b16 %v568
  %v3761 = vunpack.c.l.b16 %v569
  %v3762 = vunpack.c.h.b16 %v569
  %v3763 = vunpack.c.l.b16 %v570
  %v3764 = vunpack.c.h.b16 %v570
  %v3765 = vunpack.c.l.b16 %v571
  %v3766 = vunpack.c.h.b16 %v571
  %v3767 = vunpack.c.l.b16 %v572
  %v3768 = vunpack.c.h.b16 %v572
  %v3769 = vunpack.c.l.b16 %v573
  %v3770 = vunpack.c.h.b16 %v573
  %v3771 = vunpack.c.l.b16 %v574
  %v3772 = vunpack.c.h.b16 %v574
  %v3773 = vunpack.c.l.b16 %v575
  %v3774 = vunpack.c.h.b16 %v575
  %v3775 = vunpack.c.l.b16 %v576
  %v3776 = vunpack.c.h.b16 %v576
  %v3777 = vunpack.c.l.b16 %v577
  %v3778 = vunpack.c.h.b16 %v577
  %v3779 = vunpack.c.l.b16 %v578
  %v3780 = vunpack.c.h.b16 %v578
  %v3781 = vunpack.c.l.b16 %v579
  %v3782 = vunpack.c.h.b16 %v579
  %v3783 = vunpack.c.l.b16 %v580
  %v3784 = vunpack.c.h.b16 %v580
  %v3785 = vunpack.c.l.b16 %v581
  %v3786 = vunpack.c.h.b16 %v581
  %v3787 = vunpack.c.l.b16 %v582
  %v3788 = vunpack.c.h.b16 %v582
  %v3789 = vunpack.c.l.b16 %v583
  %v3790 = vunpack.c.h.b16 %v583
  %v3791 = vunpack.c.l.b16 %v584
  %v3792 = vunpack.c.h.b16 %v584
  %v3793 = vunpack.c.l.b16 %v585
  %v3794 = vunpack.c.h.b16 %v585
  %v3795 = vunpack.c.l.b16 %v586
  %v3796 = vunpack.c.h.b16 %v586
  %v3797 = vunpack.c.l.b16 %v587
  %v3798 = vunpack.c.h.b16 %v587
  %v3799 = vunpack.c.l.b16 %v588
  %v3800 = vunpack.c.h.b16 %v588
  %v3801 = vunpack.c.l.b16 %v589
  %v3802 = vunpack.c.h.b16 %v589
  %v3803 = vunpack.c.l.b16 %v590
  %v3804 = vunpack.c.h.b16 %v590
  %v3805 = vunpack.c.l.b16 %v591
  %v3806 = vunpack.c.h.b16 %v591
  %v3807 = vunpack.c.l.b16 %v592
  %v3808 = vunpack.c.h.b16 %v592
  %v3809 = vunpack.c.l.b16 %v593
  %v3810 = vunpack.c.h.b16 %v593
  %v3811 = vunpack.c.l.b16 %v594
  %v3812 = vunpack.c.h.b16 %v594
  %v3813 = vunpack.c.l.b16 %v595
  %v3814 = vunpack.c.h.b16 %v595
  %v3815 = vunpack.c.l.b16 %v596
  %v3816 = vunpack.c.h.b16 %v596
  %v3817 = vunpack.c.l.b16 %v597
  %v3818 = vunpack.c.h.b16 %v597
  %v3819 = vunpack.c.l.b16 %v598
  %v3820 = vunpack.c.h.b16 %v598
  %v3821 = vunpack.c.l.b16 %v599
  %v3822 = vunpack.c.h.b16 %v599
  %v3823 = vunpack.c.l.b16 %v600
  %v3824 = vunpack.c.h.b16 %v600
  %v3825 = vunpack.c.l.b16 %v601
  %v3826 = vunpack.c.h.b16 %v601
  %v3827 = vunpack.c.l.b16 %v602
  %v3828 = vunpack.c.h.b16 %v602
  %v3829 = vunpack.c.l.b16 %v603
  %v3830 = vunpack.c.h.b16 %v603
  %v3831 = vunpack.c.l.b16 %v604
  %v3832 = vunpack.c.h.b16 %v604
  %v3833 = vunpack.c.l.b16 %v605
  %v3834 = vunpack.c.h.b16 %v605
  %v3835 = vunpack.c.l.b16 %v606
  %v3836 = vunpack.c.h.b16 %v606
  %v3837 = vunpack.c.l.b16 %v607
  %v3838 = vunpack.c.h.b16 %v607
  %v3839 = vunpack.c.l.b16 %v608
  %v3840 = vunpack.c.h.b16 %v608
  %v3841 = vunpack.c.l.b16 %v609
  %v3842 = vunpack.c.h.b16 %v609
  %v3843 = vunpack.c.l.b16 %v610
  %v3844 = vunpack.c.h.b16 %v610
  %v3845 = vunpack.c.l.b16 %v611
  %v3846 = vunpack.c.h.b16 %v611
  %v3847 = vunpack.c.l.b16 %v612
  %v3848 = vunpack.c.h.b16 %v612
  %v3849 = vunpack.c.l.b16 %v613
  %v3850 = vunpack.c.h.b16 %v613
  %v3851 = vunpack.c.l.b16 %v614
  %v3852 = vunpack.c.h.b16 %v614
  %v3853 = vunpack.c.l.b16 %v615
  %v3854 = vunpack.c.h.b16 %v615
  %v3855 = vunpack.c.l.b16 %v616
  %v3856 = vunpack.c.h.b16 %v616
  %v3857 = vunpack.c.l.b16 %v617
  %v3858 = vunpack.c.h.b16 %v617
  %v3859 = vunpack.c.l.b16 %v618
  %v3860 = vunpack.c.h.b16 %v618
  %v3861 = vunpack.c.l.b16 %v619
  %v3862 = vunpack.c.h.b16 %v619
  %v3863 = vunpack.c.l.b16 %v620
  %v3864 = vunpack.c.h.b16 %v620
  %v3865 = vunpack.c.l.b16 %v621
  %v3866 = vunpack.c.h.b16 %v621
  %v3867 = vunpack.c.l.b16 %v622
  %v3868 = vunpack.c.h.b16 %v622
  %v3869 = vunpack.c.l.b16 %v623
  %v3870 = vunpack.c.h.b16 %v623
  %v3871 = vunpack.c.l.b16 %v624
  %v3872 = vunpack.c.h.b16 %v624
  %v3873 = vunpack.c.l.b16 %v625
  %v3874 = vunpack.c.h.b16 %v625
  %v3875 = vunpack.c.l.b16 %v626
  %v3876 = vunpack.c.h.b16 %v626
  %v3877 = vunpack.c.l.b16 %v627
  %v3878 = vunpack.c.h.b16 %v627
  %v3879 = vunpack.c.l.b16 %v628
  %v3880 = vunpack.c.h.b16 %v628
  %v3881 = vunpack.c.l.b16 %v629
  %v3882 = vunpack.c.h.b16 %v629
  %v3883 = vunpack.c.l.b16 %v630
  %v3884 = vunpack.c.h.b16 %v630
  %v3885 = vunpack.c.l.b16 %v631
  %v3886 = vunpack.c.h.b16 %v631
  %v3887 = vunpack.c.l.b16 %v632
  %v3888 = vunpack.c.h.b16 %v632
  %v3889 = vunpack.c.l.b16 %v633
  %v3890 = vunpack.c.h.b16 %v633
  %v3891 = vunpack.c.l.b16 %v634
  %v3892 = vunpack.c.h.b16 %v634
  %v3893 = vunpack.c.l.b16 %v635
  %v3894 = vunpack.c.h.b16 %v635
  %v3895 = vunpack.c.l.b16 %v636
  %v3896 = vunpack.c.h.b16 %v636
  %v3897 = vunpack.c.l.b16 %v637
  %v3898 = vunpack.c.h.b16 %v637
  %v3899 = vunpack.c.l.b16 %v638
  %v3900 = vunpack.c.h.b16 %v638
  %v3901 = vunpack.c.l.b16 %v639
  %v3902 = vunpack.c.h.b16 %v639
  %v3903 = vunpack.c.l.b16 %v640
  %v3904 = vunpack.c.h.b16 %v640
  %v3905 = vunpack.c.l.b16 %v641
  %v3906 = vunpack.c.h.b16 %v641
  %v3907 = vunpack.c.l.b16 %v642
  %v3908 = vunpack.c.h.b16 %v642
  %v3909 = vunpack.c.l.b16 %v643
  %v3910 = vunpack.c.h.b16 %v643
  %v3911 = vunpack.c.l.b16 %v644
  %v3912 = vunpack.c.h.b16 %v644
  %v3913 = vunpack.c.l.b16 %v645
  %v3914 = vunpack.c.h.b16 %v645
  %v3915 = vunpack.c.l.b16 %v646
  %v3916 = vunpack.c.h.b16 %v646
  %v3917 = vunpack.c.l.b16 %v647
  %v3918 = vunpack.c.h.b16 %v647
  %v3919 = vunpack.c.l.b16 %v648
  %v3920 = vunpack.c.h.b16 %v648
  %v3921 = vunpack.c.l.b16 %v649
  %v3922 = vunpack.c.h.b16 %v649
  %v3923 = vunpack.c.l.b16 %v650
  %v3924 = vunpack.c.h.b16 %v650
  %v3925 = vunpack.c.l.b16 %v651
  %v3926 = vunpack.c.h.b16 %v651
  %v3927 = vunpack.c.l.b16 %v652
  %v3928 = vunpack.c.h.b16 %v652
  %v3929 = vunpack.c.l.b16 %v653
  %v3930 = vunpack.c.h.b16 %v653
  %v3931 = vunpack.c.l.b16 %v654
  %v3932 = vunpack.c.h.b16 %v654
  %v3933 = vunpack.c.l.b16 %v655
  %v3934 = vunpack.c.h.b16 %v655
  %v3935 = vunpack.c.l.b16 %v656
  %v3936 = vunpack.c.h.b16 %v656
  %v3937 = vunpack.c.l.b16 %v657
  %v3938 = vunpack.c.h.b16 %v657
  %v3939 = vunpack.c.l.b16 %v658
  %v3940 = vunpack.c.h.b16 %v658
  %v3941 = vunpack.c.l.b16 %v659
  %v3942 = vunpack.c.h.b16 %v659
  %v3943 = vunpack.c.l.b16 %v660
  %v3944 = vunpack.c.h.b16 %v660
  %v3945 = vunpack.c.l.b16 %v661
  %v3946 = vunpack.c.h.b16 %v661
  %v3947 = vunpack.c.l.b16 %v662
  %v3948 = vunpack.c.h.b16 %v662
  %v3949 = vunpack.c.l.b16 %v663
  %v3950 = vunpack.c.h.b16 %v663
  %v3951 = vunpack.c.l.b16 %v664
  %v3952 = vunpack.c.h.b16 %v664
  %v3953 = vunpack.c.l.b16 %v665
  %v3954 = vunpack.c.h.b16 %v665
  %v3955 = vunpack.c.l.b16 %v666
  %v3956 = vunpack.c.h.b16 %v666
  %v3957 = vunpack.c.l.b16 %v667
  %v3958 = vunpack.c.h.b16 %v667
  %v3959 = vunpack.c.l.b16 %v668
  %v3960 = vunpack.c.h.b16 %v668
  %v3961 = vunpack.c.l.b16 %v669
  %v3962 = vunpack.c.h.b16 %v669
  %v3963 = vunpack.c.l.b16 %v670
  %v3964 = vunpack.c.h.b16 %v670
  %v3965 = vunpack.c.l.b16 %v671
  %v3966 = vunpack.c.h.b16 %v671
  %v3967 = vunpack.c.l.b16 %v672
  %v3968 = vunpack.c.h.b16 %v672
  %v3969 = vunpack.c.l.b16 %v673
  %v3970 = vunpack.c.h.b16 %v673
  %v3971 = vunpack.c.l.b16 %v674
  %v3972 = vunpack.c.h.b16 %v674
  %v3973 = vunpack.c.l.b16 %v675
  %v3974 = vunpack.c.h.b16 %v675
  %v3975 = vunpack.c.l.b16 %v676
  %v3976 = vunpack.c.h.b16 %v676
  %v3977 = vunpack.c.l.b16 %v677
  %v3978 = vunpack.c.h.b16 %v677
  %v3979 = vunpack.c.l.b16 %v678
  %v3980 = vunpack.c.h.b16 %v678
  %v3981 = vunpack.c.l.b16 %v679
  %v3982 = vunpack.c.h.b16 %v679
  %v3983 = vunpack.c.l.b16 %v680
  %v3984 = vunpack.c.h.b16 %v680
  %v3985 = vunpack.c.l.b16 %v681
  %v3986 = vunpack.c.h.b16 %v681
  %v3987 = vunpack.c.l.b16 %v682
  %v3988 = vunpack.c.h.b16 %v682
  %v3989 = vunpack.c.l.b16 %v683
  %v3990 = vunpack.c.h.b16 %v683
  %v3991 = vunpack.c.l.b16 %v684
  %v3992 = vunpack.c.h.b16 %v684
  %v3993 = vunpack.c.l.b16 %v685
  %v3994 = vunpack.c.h.b16 %v685
  %v3995 = vunpack.c.l.b16 %v686
  %v3996 = vunpack.c.h.b16 %v686
  %v3997 = vunpack.c.l.b16 %v687
  %v3998 = vunpack.c.h.b16 %v687
  %v3999 = vunpack.c.l.b16 %v688
  %v4000 = vunpack.c.h.b16 %v688
  %v4001 = vunpack.c.l.b16 %v689
  %v4002 = vunpack.c.h.b16 %v689
  %v4003 = vunpack.c.l.b16 %v690
  %v4004 = vunpack.c.h.b16 %v690
  %v4005 = vunpack.c.l.b16 %v691
  %v4006 = vunpack.c.h.b16 %v691
  %v4007 = vunpack.c.l.b16 %v692
  %v4008 = vunpack.c.h.b16 %v692
  %v4009 = vunpack.c.l.b16 %v693
  %v4010 = vunpack.c.h.b16 %v693
  %v4011 = vunpack.c.l.b16 %v694
  %v4012 = vunpack.c.h.b16 %v694
  %v4013 = vunpack.c.l.b16 %v695
  %v4014 = vunpack.c.h.b16 %v695
  %v4015 = vunpack.c.l.b16 %v696
  %v4016 = vunpack.c.h.b16 %v696
  %v4017 = vunpack.c.l.b16 %v697
  %v4018 = vunpack.c.h.b16 %v697
  %v4019 = vunpack.c.l.b16 %v698
  %v4020 = vunpack.c.h.b16 %v698
  %v4021 = vunpack.c.l.b16 %v699
  %v4022 = vunpack.c.h.b16 %v699
  %v4023 = vunpack.c.l.b16 %v700
  %v4024 = vunpack.c.h.b16 %v700
  %v4025 = vunpack.c.l.b16 %v701
  %v4026 = vunpack.c.h.b16 %v701
  %v4027 = vunpack.c.l.b16 %v702
  %v4028 = vunpack.c.h.b16 %v702
  %v4029 = vunpack.c.l.b16 %v703
  %v4030 = vunpack.c.h.b16 %v703
  %v4031 = vunpack.c.l.b16 %v704
  %v4032 = vunpack.c.h.b16 %v704
  %v4033 = vunpack.c.l.b16 %v705
  %v4034 = vunpack.c.h.b16 %v705
  %v4035 = vunpack.c.l.b16 %v706
  %v4036 = vunpack.c.h.b16 %v706
  %v4037 = vunpack.c.l.b16 %v707
  %v4038 = vunpack.c.h.b16 %v707
  %v4039 = vunpack.c.l.b16 %v708
  %v4040 = vunpack.c.h.b16 %v708
  %v4041 = vunpack.c.l.b16 %v709
  %v4042 = vunpack.c.h.b16 %v709
  %v4043 = vunpack.c.l.b16 %v710
  %v4044 = vunpack.c.h.b16 %v710
  %v4045 = vunpack.c.l.b16 %v711
  %v4046 = vunpack.c.h.b16 %v711
  %v4047 = vunpack.c.l.b16 %v712
  %v4048 = vunpack.c.h.b16 %v712
  %v4049 = vunpack.c.l.b16 %v713
  %v4050 = vunpack.c.h.b16 %v713
  %v4051 = vunpack.c.l.b16 %v714
  %v4052 = vunpack.c.h.b16 %v714
  %v4053 = vunpack.c.l.b16 %v715
  %v4054 = vunpack.c.h.b16 %v715
  %v4055 = vunpack.c.l.b16 %v716
  %v4056 = vunpack.c.h.b16 %v716
  %v4057 = vunpack.c.l.b16 %v717
  %v4058 = vunpack.c.h.b16 %v717
  %v4059 = vunpack.c.l.b16 %v718
  %v4060 = vunpack.c.h.b16 %v718
  %v4061 = vunpack.c.l.b16 %v719
  %v4062 = vunpack.c.h.b16 %v719
  %v4063 = vunpack.c.l.b16 %v720
  %v4064 = vunpack.c.h.b16 %v720
  %v4065 = vunpack.c.l.b16 %v721
  %v4066 = vunpack.c.h.b16 %v721
  %v4067 = vunpack.c.l.b16 %v722
  %v4068 = vunpack.c.h.b16 %v722
  %v4069 = vunpack.c.l.b16 %v723
  %v4070 = vunpack.c.h.b16 %v723
  %v4071 = vunpack.c.l.b16 %v724
  %v4072 = vunpack.c.h.b16 %v724
  %v4073 = vunpack.c.l.b16 %v725
  %v4074 = vunpack.c.h.b16 %v725
  %v4075 = vunpack.c.l.b16 %v726
  %v4076 = vunpack.c.h.b16 %v726
  %v4077 = vunpack.c.l.b16 %v727
  %v4078 = vunpack.c.h.b16 %v727
  %v4079 = vunpack.c.l.b16 %v728
  %v4080 = vunpack.c.h.b16 %v728
  %v4081 = vunpack.c.l.b16 %v729
  %v4082 = vunpack.c.h.b16 %v729
  %v4083 = vunpack.c.l.b16 %v730
  %v4084 = vunpack.c.h.b16 %v730
  %v4085 = vunpack.c.l.b16 %v731
  %v4086 = vunpack.c.h.b16 %v731
  %v4087 = vunpack.c.l.b16 %v732
  %v4088 = vunpack.c.h.b16 %v732
  %v4089 = vunpack.c.l.b16 %v733
  %v4090 = vunpack.c.h.b16 %v733
  %v4091 = vunpack.c.l.b16 %v734
  %v4092 = vunpack.c.h.b16 %v734
  %v4093 = vunpack.c.l.b16 %v735
  %v4094 = vunpack.c.h.b16 %v735
  %v4095 = vunpack.c.l.b16 %v736
  %v4096 = vunpack.c.h.b16 %v736
  %v4097 = vunpack.c.l.b16 %v737
  %v4098 = vunpack.c.h.b16 %v737
  %v4099 = vunpack.c.l.b16 %v738
  %v4100 = vunpack.c.h.b16 %v738
  %v4101 = vunpack.c.l.b16 %v739
  %v4102 = vunpack.c.h.b16 %v739
  %v4103 = vunpack.c.l.b16 %v740
  %v4104 = vunpack.c.h.b16 %v740
  %v4105 = vunpack.c.l.b16 %v741
  %v4106 = vunpack.c.h.b16 %v741
  %v4107 = vunpack.c.l.b16 %v742
  %v4108 = vunpack.c.h.b16 %v742
  %v4109 = vunpack.c.l.b16 %v743
  %v4110 = vunpack.c.h.b16 %v743
  %v4111 = vunpack.c.l.b16 %v744
  %v4112 = vunpack.c.h.b16 %v744
  %v4113 = vunpack.c.l.b16 %v745
  %v4114 = vunpack.c.h.b16 %v745
  %v4115 = vunpack.c.l.b16 %v746
  %v4116 = vunpack.c.h.b16 %v746
  %v4117 = vunpack.c.l.b16 %v747
  %v4118 = vunpack.c.h.b16 %v747
  %v4119 = vunpack.c.l.b16 %v748
  %v4120 = vunpack.c.h.b16 %v748
  %v4121 = vunpack.c.l.b16 %v749
  %v4122 = vunpack.c.h.b16 %v749
  %v4123 = vunpack.c.l.b16 %v750
  %v4124 = vunpack.c.h.b16 %v750
  %v4125 = vunpack.c.l.b16 %v751
  %v4126 = vunpack.c.h.b16 %v751
  %v4127 = vunpack.c.l.b16 %v752
  %v4128 = vunpack.c.h.b16 %v752
  %v4129 = vunpack.c.l.b16 %v753
  %v4130 = vunpack.c.h.b16 %v753
  %v4131 = vunpack.c.l.b16 %v754
  %v4132 = vunpack.c.h.b16 %v754
  %v4133 = vunpack.c.l.b16 %v755
  %v4134 = vunpack.c.h.b16 %v755
  %v4135 = vpack.c.b16 %v3631, %v3623
  %v4136 = vpack.c.b16 %v3632, %v3624
  %v4137 = vpack.c.b16 %v3633, %v3625
  %v4138 = vpack.c.b16 %v3634, %v3626
  %v4139 = vpack.c.b16 %v3635, %v3627
  %v4140 = vpack.c.b16 %v3636, %v3628
  %v4141 = vpack.c.b16 %v3637, %v3629
  %v4142 = vpack.c.b16 %v3638, %v3630
  %v4143 = vpack.c.b16 %v3647, %v3639
  %v4144 = vpack.c.b16 %v3648, %v3640
  %v4145 = vpack.c.b16 %v3649, %v3641
  %v4146 = vpack.c.b16 %v3650, %v3642
  %v4147 = vpack.c.b16 %v3651, %v3643
  %v4148 = vpack.c.b16 %v3652, %v3644
  %v4149 = vpack.c.b16 %v3653, %v3645
  %v4150 = vpack.c.b16 %v3654, %v3646
  %v4151 = vpack.c.b16 %v3663, %v3655
  %v4152 = vpack.c.b16 %v3664, %v3656
  %v4153 = vpack.c.b16 %v3665, %v3657
  %v4154 = vpack.c.b16 %v3666, %v3658
  %v4155 = vpack.c.b16 %v3667, %v3659
  %v4156 = vpack.c.b16 %v3668, %v3660
  %v4157 = vpack.c.b16 %v3669, %v3661
  %v4158 = vpack.c.b16 %v3670, %v3662
  %v4159 = vpack.c.b16 %v3679, %v3671
  %v4160 = vpack.c.b16 %v3680, %v3672
  %v4161 = vpack.c.b16 %v3681, %v3673
  %v4162 = vpack.c.b16 %v3682, %v3674
  %v4163 = vpack.c.b16 %v3683, %v3675
  %v4164 = vpack.c.b16 %v3684, %v3676
  %v4165 = vpack.c.b16 %v3685, %v3677
  %v4166 = vpack.c.b16 %v3686, %v3678
  %v4167 = vpack.c.b16 %v3695, %v3687
  %v4168 = vpack.c.b16 %v3696, %v3688
  %v4169 = vpack.c.b16 %v3697, %v3689
  %v4170 = vpack.c.b16 %v3698, %v3690
  %v4171 = vpack.c.b16 %v3699, %v3691
  %v4172 = vpack.c.b16 %v3700, %v3692
  %v4173 = vpack.c.b16 %v3701, %v3693
  %v4174 = vpack.c.b16 %v3702, %v3694
  %v4175 = vpack.c.b16 %v3711, %v3703
  %v4176 = vpack.c.b16 %v3712, %v3704
  %v4177 = vpack.c.b16 %v3713, %v3705
  %v4178 = vpack.c.b16 %v3714, %v3706
  %v4179 = vpack.c.b16 %v3715, %v3707
  %v4180 = vpack.c.b16 %v3716, %v3708
  %v4181 = vpack.c.b16 %v3717, %v3709
  %v4182 = vpack.c.b16 %v3718, %v3710
  %v4183 = vpack.c.b16 %v3727, %v3719
  %v4184 = vpack.c.b16 %v3728, %v3720
  %v4185 = vpack.c.b16 %v3729, %v3721
  %v4186 = vpack.c.b16 %v3730, %v3722
  %v4187 = vpack.c.b16 %v3731, %v3723
  %v4188 = vpack.c.b16 %v3732, %v3724
  %v4189 = vpack.c.b16 %v3733, %v3725
  %v4190 = vpack.c.b16 %v3734, %v3726
  %v4191 = vpack.c.b16 %v3743, %v3735
  %v4192 = vpack.c.b16 %v3744, %v3736
  %v4193 = vpack.c.b16 %v3745, %v3737
  %v4194 = vpack.c.b16 %v3746, %v3738
  %v4195 = vpack.c.b16 %v3747, %v3739
  %v4196 = vpack.c.b16 %v3748, %v3740
  %v4197 = vpack.c.b16 %v3749, %v3741
  %v4198 = vpack.c.b16 %v3750, %v3742
  %v4199 = vpack.c.b16 %v3759, %v3751
  %v4200 = vpack.c.b16 %v3760, %v3752
  %v4201 = vpack.c.b16 %v3761, %v3753
  %v4202 = vpack.c.b16 %v3762, %v3754
  %v4203 = vpack.c.b16 %v3763, %v3755
  %v4204 = vpack.c.b16 %v3764, %v3756
  %v4205 = vpack.c.b16 %v3765, %v3757
  %v4206 = vpack.c.b16 %v3766, %v3758
  %v4207 = vpack.c.b16 %v3775, %v3767
  %v4208 = vpack.c.b16 %v3776, %v3768
  %v4209 = vpack.c.b16 %v3777, %v3769
  %v4210 = vpack.c.b16 %v3778, %v3770
  %v4211 = vpack.c.b16 %v3779, %v3771
  %v4212 = vpack.c.b16 %v3780, %v3772
  %v4213 = vpack.c.b16 %v3781, %v3773
  %v4214 = vpack.c.b16 %v3782, %v3774
  %v4215 = vpack.c.b16 %v3791, %v3783
  %v4216 = vpack.c.b16 %v3792, %v3784
  %v4217 = vpack.c.b16 %v3793, %v3785
  %v4218 = vpack.c.b16 %v3794, %v3786
  %v4219 = vpack.c.b16 %v3795, %v3787
  %v4220 = vpack.c.b16 %v3796, %v3788
  %v4221 = vpack.c.b16 %v3797, %v3789
  %v4222 = vpack.c.b16 %v3798, %v3790
  %v4223 = vpack.c.b16 %v3807, %v3799
  %v4224 = vpack.c.b16 %v3808, %v3800
  %v4225 = vpack.c.b16 %v3809, %v3801
  %v4226 = vpack.c.b16 %v3810, %v3802
  %v4227 = vpack.c.b16 %v3811, %v3803
  %v4228 = vpack.c.b16 %v3812, %v3804
  %v4229 = vpack.c.b16 %v3813, %v3805
  %v4230 = vpack.c.b16 %v3814, %v3806
  %v4231 = vpack.c.b16 %v3823, %v3815
  %v4232 = vpack.c.b16 %v3824, %v3816
  %v4233 = vpack.c.b16 %v3825, %v3817
  %v4234 = vpack.c.b16 %v3826, %v3818
  %v4235 = vpack.c.b16 %v3827, %v3819
  %v4236 = vpack.c.b16 %v3828, %v3820
  %v4237 = vpack.c.b16 %v3829, %v3821
  %v4238 = vpack.c.b16 %v3830, %v3822
  %v4239 = vpack.c.b16 %v3839, %v3831
  %v4240 = vpack.c.b16 %v3840, %v3832
  %v4241 = vpack.c.b16 %v3841, %v3833
  %v4242 = vpack.c.b16 %v3842, %v3834
  %v4243 = vpack.c.b16 %v3843, %v3835
  %v4244 = vpack.c.b16 %v3844, %v3836
  %v4245 = vpack.c.b16 %v3845, %v3837
  %v4246 = vpack.c.b16 %v3846, %v3838
  %v4247 = vpack.c.b16 %v3855, %v3847
  %v4248 = vpack.c.b16 %v3856, %v3848
  %v4249 = vpack.c.b16 %v3857, %v3849
  %v4250 = vpack.c.b16 %v3858, %v3850
  %v4251 = vpack.c.b16 %v3859, %v3851
  %v4252 = vpack.c.b16 %v3860, %v3852
  %v4253 = vpack.c.b16 %v3861, %v3853
  %v4254 = vpack.c.b16 %v3862, %v3854
  %v4255 = vpack.c.b16 %v3871, %v3863
  %v4256 = vpack.c.b16 %v3872, %v3864
  %v4257 = vpack.c.b16 %v3873, %v3865
  %v4258 = vpack.c.b16 %v3874, %v3866
  %v4259 = vpack.c.b16 %v3875, %v3867
  %v4260 = vpack.c.b16 %v3876, %v3868
  %v4261 = vpack.c.b16 %v3877, %v3869
  %v4262 = vpack.c.b16 %v3878, %v3870
  %v4263 = vpack.c.b16 %v3887, %v3879
  %v4264 = vpack.c.b16 %v3888, %v3880
  %v4265 = vpack.c.b16 %v3889, %v3881
  %v4266 = vpack.c.b16 %v3890, %v3882
  %v4267 = vpack.c.b16 %v3891, %v3883
  %v4268 = vpack.c.b16 %v3892, %v3884
  %v4269 = vpack.c.b16 %v3893, %v3885
  %v4270 = vpack.c.b16 %v3894, %v3886
  %v4271 = vpack.c.b16 %v3903, %v3895
  %v4272 = vpack.c.b16 %v3904, %v3896
  %v4273 = vpack.c.b16 %v3905, %v3897
  %v4274 = vpack.c.b16 %v3906, %v3898
  %v4275 = vpack.c.b16 %v3907, %v3899
  %v4276 = vpack.c.b16 %v3908, %v3900
  %v4277 = vpack.c.b16 %v3909, %v3901
  %v4278 = vpack.c.b16 %v3910, %v3902
  %v4279 = vpack.c.b16 %v3919, %v3911
  %v4280 = vpack.c.b16 %v3920, %v3912
  %v4281 = vpack.c.b16 %v3921, %v3913
  %v4282 = vpack.c.b16 %v3922, %v3914
  %v4283 = vpack.c.b16 %v3923, %v3915
  %v4284 = vpack.c.b16 %v3924, %v3916
  %v4285 = vpack.c.b16 %v3925, %v3917
  %v4286 = vpack.c.b16 %v3926, %v3918
  %v4287 = vpack.c.b16 %v3935, %v3927
  %v4288 = vpack.c.b16 %v3936, %v3928
  %v4289 = vpack.c.b16 %v3937, %v3929
  %v4290 = vpack.c.b16 %v3938, %v3930
  %v4291 = vpack.c.b16 %v3939, %v3931
  %v4292 = vpack.c.b16 %v3940, %v3932
  %v4293 = vpack.c.b16 %v3941, %v3933
  %v4294 = vpack.c.b16 %v3942, %v3934
  %v4295 = vpack.c.b16 %v3951, %v3943
  %v4296 = vpack.c.b16 %v3952, %v3944
  %v4297 = vpack.c.b16 %v3953, %v3945
  %v4298 = vpack.c.b16 %v3954, %v3946
  %v4299 = vpack.c.b16 %v3955, %v3947
  %v4300 = vpack.c.b16 %v3956, %v3948
  %v4301 = vpack.c.b16 %v3957, %v3949
  %v4302 = vpack.c.b16 %v3958, %v3950
  %v4303 = vpack.c.b16 %v3967, %v3959
  %v4304 = vpack.c.b16 %v3968, %v3960
  %v4305 = vpack.c.b16 %v3969, %v3961
  %v4306 = vpack.c.b16 %v3970, %v3962
  %v4307 = vpack.c.b16 %v3971, %v3963
  %v4308 = vpack.c.b16 %v3972, %v3964
  %v4309 = vpack.c.b16 %v3973, %v3965
  %v4310 = vpack.c.b16 %v3974, %v3966
  %v4311 = vpack.c.b16 %v3983, %v3975
  %v4312 = vpack.c.b16 %v3984, %v3976
  %v4313 = vpack.c.b16 %v3985, %v3977
  %v4314 = vpack.c.b16 %v3986, %v3978
  %v4315 = vpack.c.b16 %v3987, %v3979
  %v4316 = vpack.c.b16 %v3988, %v3980
  %v4317 = vpack.c.b16 %v3989, %v3981
  %v4318 = vpack.c.b16 %v3990, %v3982
  %v4319 = vpack.c.b16 %v3999, %v3991
  %v4320 = vpack.c.b16 %v4000, %v3992
  %v4321 = vpack.c.b16 %v4001, %v3993
  %v4322 = vpack.c.b16 %v4002, %v3994
  %v4323 = vpack.c.b16 %v4003, %v3995
  %v4324 = vpack.c.b16 %v4004, %v3996
  %v4325 = vpack.c.b16 %v4005, %v3997
  %v4326 = vpack.c.b16 %v4006, %v3998
  %v4327 = vpack.c.b16 %v4015, %v4007
  %v4328 = vpack.c.b16 %v4016, %v4008
  %v4329 = vpack.c.b16 %v4017, %v4009
  %v4330 = vpack.c.b16 %v4018, %v4010
  %v4331 = vpack.c.b16 %v4019, %v4011
  %v4332 = vpack.c.b16 %v4020, %v4012
  %v4333 = vpack.c.b16 %v4021, %v4013
  %v4334 = vpack.c.b16 %v4022, %v4014
  %v4335 = vpack.c.b16 %v4031, %v4023
  %v4336 = vpack.c.b16 %v4032, %v4024
  %v4337 = vpack.c.b16 %v4033, %v4025
  %v4338 = vpack.c.b16 %v4034, %v4026
  %v4339 = vpack.c.b16 %v4035, %v4027
  %v4340 = vpack.c.b16 %v4036, %v4028
  %v4341 = vpack.c.b16 %v4037, %v4029
  %v4342 = vpack.c.b16 %v4038, %v4030
  %v4343 = vpack.c.b16 %v4047, %v4039
  %v4344 = vpack.c.b16 %v4048, %v4040
  %v4345 = vpack.c.b16 %v4049, %v4041
  %v4346 = vpack.c.b16 %v4050, %v4042
  %v4347 = vpack.c.b16 %v4051, %v4043
  %v4348 = vpack.c.b16 %v4052, %v4044
  %v4349 = vpack.c.b16 %v4053, %v4045
  %v4350 = vpack.c.b16 %v4054, %v4046
  %v4351 = vpack.c.b16 %v4063, %v4055
  %v4352 = vpack.c.b16 %v4064, %v4056
  %v4353 = vpack.c.b16 %v4065, %v4057
  %v4354 = vpack.c.b16 %v4066, %v4058
  %v4355 = vpack.c.b16 %v4067, %v4059
  %v4356 = vpack.c.b16 %v4068, %v4060
  %v4357 = vpack.c.b16 %v4069, %v4061
  %v4358 = vpack.c.b16 %v4070, %v4062
  %v4359 = vpack.c.b16 %v4079, %v4071
  %v4360 = vpack.c.b16 %v4080, %v4072
  %v4361 = vpack.c.b16 %v4081, %v4073
  %v4362 = vpack.c.b16 %v4082, %v4074
  %v4363 = vpack.c.b16 %v4083, %v4075
  %v4364 = vpack.c.b16 %v4084, %v4076
  %v4365 = vpack.c.b16 %v4085, %v4077
  %v4366 = vpack.c.b16 %v4086, %v4078
  %v4367 = vpack.c.b16 %v4095, %v4087
  %v4368 = vpack.c.b16 %v4096, %v4088
  %v4369 = vpack.c.b16 %v4097, %v4089
  %v4370 = vpack.c.b16 %v4098, %v4090
  %v4371 = vpack.c.b16 %v4099, %v4091
  %v4372 = vpack.c.b16 %v4100, %v4092
  %v4373 = vpack.c.b16 %v4101, %v4093
  %v4374 = vpack.c.b16 %v4102, %v4094
  %v4375 = vpack.c.b16 %v4111, %v4103
  %v4376 = vpack.c.b16 %v4112, %v4104
  %v4377 = vpack.c.b16 %v4113, %v4105
  %v4378 = vpack.c.b16 %v4114, %v4106
  %v4379 = vpack.c.b16 %v4115, %v4107
  %v4380 = vpack.c.b16 %v4116, %v4108
  %v4381 = vpack.c.b16 %v4117, %v4109
  %v4382 = vpack.c.b16 %v4118, %v4110
  %v4383 = vpack.c.b16 %v4127, %v4119
  %v4384 = vpack.c.b16 %v4128, %v4120
  %v4385 = vpack.c.b16 %v4129, %v4121
  %v4386 = vpack.c.b16 %v4130, %v4122
  %v4387 = vpack.c.b16 %v4131, %v4123
  %v4388 = vpack.c.b16 %v4132, %v4124
  %v4389 = vpack.c.b16 %v4133, %v4125
  %v4390 = vpack.c.b16 %v4134, %v4126
  %4647 = vmatprep.subr.bf16.mxu0 %v4136
  %4648 = vmatpush1.bf16.msra.mxu0 %v4135
  %4649 = vmatprep.subr.bf16.mxu0 %v4144
  %4650 = vmatpush1.bf16.msra.mxu0 %v4143
  %4651 = vmatprep.subr.bf16.mxu0 %v4152
  %4652 = vmatpush1.bf16.msra.mxu0 %v4151
  %4653 = vmatprep.subr.bf16.mxu0 %v4160
  %4654 = vmatpush1.bf16.msra.mxu0 %v4159
  %4655 = vmatprep.subr.bf16.mxu0 %v4168
  %4656 = vmatpush1.bf16.msra.mxu0 %v4167
  %4657 = vmatprep.subr.bf16.mxu0 %v4176
  %4658 = vmatpush1.bf16.msra.mxu0 %v4175
  %4659 = vmatprep.subr.bf16.mxu0 %v4184
  %4660 = vmatpush1.bf16.msra.mxu0 %v4183
  %4661 = vmatprep.subr.bf16.mxu0 %v4192
  %4662 = vmatpush1.bf16.msra.mxu0 %v4191
  %4663 = vmatprep.subr.bf16.mxu0 %v4200
  %4664 = vmatpush1.bf16.msra.mxu0 %v4199
  %4665 = vmatprep.subr.bf16.mxu0 %v4208
  %4666 = vmatpush1.bf16.msra.mxu0 %v4207
  %4667 = vmatprep.subr.bf16.mxu0 %v4216
  %4668 = vmatpush1.bf16.msra.mxu0 %v4215
  %4669 = vmatprep.subr.bf16.mxu0 %v4224
  %4670 = vmatpush1.bf16.msra.mxu0 %v4223
  %4671 = vmatprep.subr.bf16.mxu0 %v4232
  %4672 = vmatpush1.bf16.msra.mxu0 %v4231
  %4673 = vmatprep.subr.bf16.mxu0 %v4240
  %4674 = vmatpush1.bf16.msra.mxu0 %v4239
  %4675 = vmatprep.subr.bf16.mxu0 %v4248
  %4676 = vmatpush1.bf16.msra.mxu0 %v4247
  %4677 = vmatprep.subr.bf16.mxu0 %v4256
  %4678 = vmatpush1.bf16.msra.mxu0 %v4255
  %4679 = vmatprep.mubr.bf16.mxu0 %v3323
  %4680 = vmatmul.mubr.bf16.gmra.mrb[0].mxu0 %v3322
  %v4681 = vpop.f32.mrb[0].mxu0
  %v4682 = vadd.f32 %v3330, %v4681
  %v4683 = vpop.f32.mrb[0].mxu0
  %v4684 = vadd.f32 %v3334, %v4683
  %v4685 = vpop.f32.mrb[0].mxu0
  %v4686 = vpop.f32.mrb[0].mxu0
  %4687 = vdwg.mxu0
  %4688 = vmatprep.subr.bf16.mxu0 %v4264
  %4689 = vmatpush1.bf16.msra.mxu0 %v4263
  %4690 = vmatprep.subr.bf16.mxu0 %v4272
  %4691 = vmatpush1.bf16.msra.mxu0 %v4271
  %4692 = vmatprep.subr.bf16.mxu0 %v4280
  %4693 = vmatpush1.bf16.msra.mxu0 %v4279
  %4694 = vmatprep.subr.bf16.mxu0 %v4288
  %4695 = vmatpush1.bf16.msra.mxu0 %v4287
  %4696 = vmatprep.subr.bf16.mxu0 %v4296
  %4697 = vmatpush1.bf16.msra.mxu0 %v4295
  %4698 = vmatprep.subr.bf16.mxu0 %v4304
  %4699 = vmatpush1.bf16.msra.mxu0 %v4303
  %4700 = vmatprep.subr.bf16.mxu0 %v4312
  %4701 = vmatpush1.bf16.msra.mxu0 %v4311
  %4702 = vmatprep.subr.bf16.mxu0 %v4320
  %4703 = vmatpush1.bf16.msra.mxu0 %v4319
  %4704 = vmatprep.subr.bf16.mxu0 %v4328
  %4705 = vmatpush1.bf16.msra.mxu0 %v4327
  %4706 = vmatprep.subr.bf16.mxu0 %v4336
  %4707 = vmatpush1.bf16.msra.mxu0 %v4335
  %4708 = vmatprep.subr.bf16.mxu0 %v4344
  %4709 = vmatpush1.bf16.msra.mxu0 %v4343
  %4710 = vmatprep.subr.bf16.mxu0 %v4352
  %4711 = vmatpush1.bf16.msra.mxu0 %v4351
  %4712 = vmatprep.subr.bf16.mxu0 %v4360
  %4713 = vmatpush1.bf16.msra.mxu0 %v4359
  %4714 = vmatprep.subr.bf16.mxu0 %v4368
  %4715 = vmatpush1.bf16.msra.mxu0 %v4367
  %4716 = vmatprep.subr.bf16.mxu0 %v4376
  %4717 = vmatpush1.bf16.msra.mxu0 %v4375
  %4718 = vmatprep.subr.bf16.mxu0 %v4384
  %4719 = vmatpush1.bf16.msra.mxu0 %v4383
  %4720 = vmatprep.mubr.bf16.mxu0 %v3325
  %4721 = vmatmul.mubr.bf16.gmra.mrb[0].mxu0 %v3324
  %v4722 = vpop.f32.mrb[0].mxu0
  %v4723 = vadd.f32 %v4682, %v4722
  %v4724 = vpop.f32.mrb[0].mxu0
  %v4725 = vadd.f32 %v4684, %v4724
  %v4726 = vpop.f32.mrb[0].mxu0
  %v4727 = vpop.f32.mrb[0].mxu0
  %4728 = vdwg.mxu0
  %4729 = vmatprep.subr.bf16.mxu0 %v4138
  %4730 = vmatpush1.bf16.msra.mxu0 %v4137
  %4731 = vmatprep.subr.bf16.mxu0 %v4146
  %4732 = vmatpush1.bf16.msra.mxu0 %v4145
  %4733 = vmatprep.subr.bf16.mxu0 %v4154
  %4734 = vmatpush1.bf16.msra.mxu0 %v4153
  %4735 = vmatprep.subr.bf16.mxu0 %v4162
  %4736 = vmatpush1.bf16.msra.mxu0 %v4161
  %4737 = vmatprep.subr.bf16.mxu0 %v4170
  %4738 = vmatpush1.bf16.msra.mxu0 %v4169
  %4739 = vmatprep.subr.bf16.mxu0 %v4178
  %4740 = vmatpush1.bf16.msra.mxu0 %v4177
  %4741 = vmatprep.subr.bf16.mxu0 %v4186
  %4742 = vmatpush1.bf16.msra.mxu0 %v4185
  %4743 = vmatprep.subr.bf16.mxu0 %v4194
  %4744 = vmatpush1.bf16.msra.mxu0 %v4193
  %4745 = vmatprep.subr.bf16.mxu0 %v4202
  %4746 = vmatpush1.bf16.msra.mxu0 %v4201
  %4747 = vmatprep.subr.bf16.mxu0 %v4210
  %4748 = vmatpush1.bf16.msra.mxu0 %v4209
  %4749 = vmatprep.subr.bf16.mxu0 %v4218
  %4750 = vmatpush1.bf16.msra.mxu0 %v4217
  %4751 = vmatprep.subr.bf16.mxu0 %v4226
  %4752 = vmatpush1.bf16.msra.mxu0 %v4225
  %4753 = vmatprep.subr.bf16.mxu0 %v4234
  %4754 = vmatpush1.bf16.msra.mxu0 %v4233
  %4755 = vmatprep.subr.bf16.mxu0 %v4242
  %4756 = vmatpush1.bf16.msra.mxu0 %v4241
  %4757 = vmatprep.subr.bf16.mxu0 %v4250
  %4758 = vmatpush1.bf16.msra.mxu0 %v4249
  %4759 = vmatprep.subr.bf16.mxu0 %v4258
  %4760 = vmatpush1.bf16.msra.mxu0 %v4257
  %4761 = vmatprep.mubr.bf16.mxu0 %v3323
  %4762 = vmatmul.mubr.bf16.gmra.mrb[0].mxu0 %v3322
  %v4763 = vpop.f32.mrb[0].mxu0
  %v4764 = vadd.f32 %v3338, %v4763
  %v4765 = vpop.f32.mrb[0].mxu0
  %v4766 = vadd.f32 %v3342, %v4765
  %v4767 = vpop.f32.mrb[0].mxu0
  %v4768 = vpop.f32.mrb[0].mxu0
  %4769 = vdwg.mxu0
  %4770 = vmatprep.subr.bf16.mxu0 %v4266
  %4771 = vmatpush1.bf16.msra.mxu0 %v4265
  %4772 = vmatprep.subr.bf16.mxu0 %v4274
  %4773 = vmatpush1.bf16.msra.mxu0 %v4273
  %4774 = vmatprep.subr.bf16.mxu0 %v4282
  %4775 = vmatpush1.bf16.msra.mxu0 %v4281
  %4776 = vmatprep.subr.bf16.mxu0 %v4290
  %4777 = vmatpush1.bf16.msra.mxu0 %v4289
  %4778 = vmatprep.subr.bf16.mxu0 %v4298
  %4779 = vmatpush1.bf16.msra.mxu0 %v4297
  %4780 = vmatprep.subr.bf16.mxu0 %v4306
  %4781 = vmatpush1.bf16.msra.mxu0 %v4305
  %4782 = vmatprep.subr.bf16.mxu0 %v4314
  %4783 = vmatpush1.bf16.msra.mxu0 %v4313
  %4784 = vmatprep.subr.bf16.mxu0 %v4322
  %4785 = vmatpush1.bf16.msra.mxu0 %v4321
  %4786 = vmatprep.subr.bf16.mxu0 %v4330
  %4787 = vmatpush1.bf16.msra.mxu0 %v4329
  %4788 = vmatprep.subr.bf16.mxu0 %v4338
  %4789 = vmatpush1.bf16.msra.mxu0 %v4337
  %4790 = vmatprep.subr.bf16.mxu0 %v4346
  %4791 = vmatpush1.bf16.msra.mxu0 %v4345
  %4792 = vmatprep.subr.bf16.mxu0 %v4354
  %4793 = vmatpush1.bf16.msra.mxu0 %v4353
  %4794 = vmatprep.subr.bf16.mxu0 %v4362
  %4795 = vmatpush1.bf16.msra.mxu0 %v4361
  %4796 = vmatprep.subr.bf16.mxu0 %v4370
  %4797 = vmatpush1.bf16.msra.mxu0 %v4369
  %4798 = vmatprep.subr.bf16.mxu0 %v4378
  %4799 = vmatpush1.bf16.msra.mxu0 %v4377
  %4800 = vmatprep.subr.bf16.mxu0 %v4386
  %4801 = vmatpush1.bf16.msra.mxu0 %v4385
  %4802 = vmatprep.mubr.bf16.mxu0 %v3325
  %4803 = vmatmul.mubr.bf16.gmra.mrb[0].mxu0 %v3324
  %v4804 = vpop.f32.mrb[0].mxu0
  %v4805 = vadd.f32 %v4764, %v4804
  %v4806 = vpop.f32.mrb[0].mxu0
  %v4807 = vadd.f32 %v4766, %v4806
  %v4808 = vpop.f32.mrb[0].mxu0
  %v4809 = vpop.f32.mrb[0].mxu0
  %4810 = vdwg.mxu0
  %4811 = vmatprep.subr.bf16.mxu0 %v4140
  %4812 = vmatpush1.bf16.msra.mxu0 %v4139
  %4813 = vmatprep.subr.bf16.mxu0 %v4148
  %4814 = vmatpush1.bf16.msra.mxu0 %v4147
  %4815 = vmatprep.subr.bf16.mxu0 %v4156
  %4816 = vmatpush1.bf16.msra.mxu0 %v4155
  %4817 = vmatprep.subr.bf16.mxu0 %v4164
  %4818 = vmatpush1.bf16.msra.mxu0 %v4163
  %4819 = vmatprep.subr.bf16.mxu0 %v4172
  %4820 = vmatpush1.bf16.msra.mxu0 %v4171
  %4821 = vmatprep.subr.bf16.mxu0 %v4180
  %4822 = vmatpush1.bf16.msra.mxu0 %v4179
  %4823 = vmatprep.subr.bf16.mxu0 %v4188
  %4824 = vmatpush1.bf16.msra.mxu0 %v4187
  %4825 = vmatprep.subr.bf16.mxu0 %v4196
  %4826 = vmatpush1.bf16.msra.mxu0 %v4195
  %4827 = vmatprep.subr.bf16.mxu0 %v4204
  %4828 = vmatpush1.bf16.msra.mxu0 %v4203
  %4829 = vmatprep.subr.bf16.mxu0 %v4212
  %4830 = vmatpush1.bf16.msra.mxu0 %v4211
  %4831 = vmatprep.subr.bf16.mxu0 %v4220
  %4832 = vmatpush1.bf16.msra.mxu0 %v4219
  %4833 = vmatprep.subr.bf16.mxu0 %v4228
  %4834 = vmatpush1.bf16.msra.mxu0 %v4227
  %4835 = vmatprep.subr.bf16.mxu0 %v4236
  %4836 = vmatpush1.bf16.msra.mxu0 %v4235
  %4837 = vmatprep.subr.bf16.mxu0 %v4244
  %4838 = vmatpush1.bf16.msra.mxu0 %v4243
  %4839 = vmatprep.subr.bf16.mxu0 %v4252
  %4840 = vmatpush1.bf16.msra.mxu0 %v4251
  %4841 = vmatprep.subr.bf16.mxu0 %v4260
  %4842 = vmatpush1.bf16.msra.mxu0 %v4259
  %4843 = vmatprep.mubr.bf16.mxu0 %v3323
  %4844 = vmatmul.mubr.bf16.gmra.mrb[0].mxu0 %v3322
  %v4845 = vpop.f32.mrb[0].mxu0
  %v4846 = vadd.f32 %v3346, %v4845
  %v4847 = vpop.f32.mrb[0].mxu0
  %v4848 = vadd.f32 %v3350, %v4847
  %v4849 = vpop.f32.mrb[0].mxu0
  %v4850 = vpop.f32.mrb[0].mxu0
  %4851 = vdwg.mxu0
  %4852 = vmatprep.subr.bf16.mxu0 %v4268
  %4853 = vmatpush1.bf16.msra.mxu0 %v4267
  %4854 = vmatprep.subr.bf16.mxu0 %v4276
  %4855 = vmatpush1.bf16.msra.mxu0 %v4275
  %4856 = vmatprep.subr.bf16.mxu0 %v4284
  %4857 = vmatpush1.bf16.msra.mxu0 %v4283
  %4858 = vmatprep.subr.bf16.mxu0 %v4292
  %4859 = vmatpush1.bf16.msra.mxu0 %v4291
  %4860 = vmatprep.subr.bf16.mxu0 %v4300
  %4861 = vmatpush1.bf16.msra.mxu0 %v4299
  %4862 = vmatprep.subr.bf16.mxu0 %v4308
  %4863 = vmatpush1.bf16.msra.mxu0 %v4307
  %4864 = vmatprep.subr.bf16.mxu0 %v4316
  %4865 = vmatpush1.bf16.msra.mxu0 %v4315
  %4866 = vmatprep.subr.bf16.mxu0 %v4324
  %4867 = vmatpush1.bf16.msra.mxu0 %v4323
  %4868 = vmatprep.subr.bf16.mxu0 %v4332
  %4869 = vmatpush1.bf16.msra.mxu0 %v4331
  %4870 = vmatprep.subr.bf16.mxu0 %v4340
  %4871 = vmatpush1.bf16.msra.mxu0 %v4339
  %4872 = vmatprep.subr.bf16.mxu0 %v4348
  %4873 = vmatpush1.bf16.msra.mxu0 %v4347
  %4874 = vmatprep.subr.bf16.mxu0 %v4356
  %4875 = vmatpush1.bf16.msra.mxu0 %v4355
  %4876 = vmatprep.subr.bf16.mxu0 %v4364
  %4877 = vmatpush1.bf16.msra.mxu0 %v4363
  %4878 = vmatprep.subr.bf16.mxu0 %v4372
  %4879 = vmatpush1.bf16.msra.mxu0 %v4371
  %4880 = vmatprep.subr.bf16.mxu0 %v4380
  %4881 = vmatpush1.bf16.msra.mxu0 %v4379
  %4882 = vmatprep.subr.bf16.mxu0 %v4388
  %4883 = vmatpush1.bf16.msra.mxu0 %v4387
  %4884 = vmatprep.mubr.bf16.mxu0 %v3325
  %4885 = vmatmul.mubr.bf16.gmra.mrb[0].mxu0 %v3324
  %v4886 = vpop.f32.mrb[0].mxu0
  %v4887 = vadd.f32 %v4846, %v4886
  %v4888 = vpop.f32.mrb[0].mxu0
  %v4889 = vadd.f32 %v4848, %v4888
  %v4890 = vpop.f32.mrb[0].mxu0
  %v4891 = vpop.f32.mrb[0].mxu0
  %4892 = vdwg.mxu0
  %4893 = vmatprep.subr.bf16.mxu0 %v4142
  %4894 = vmatpush1.bf16.msra.mxu0 %v4141
  %4895 = vmatprep.subr.bf16.mxu0 %v4150
  %4896 = vmatpush1.bf16.msra.mxu0 %v4149
  %4897 = vmatprep.subr.bf16.mxu0 %v4158
  %4898 = vmatpush1.bf16.msra.mxu0 %v4157
  %4899 = vmatprep.subr.bf16.mxu0 %v4166
  %4900 = vmatpush1.bf16.msra.mxu0 %v4165
  %4901 = vmatprep.subr.bf16.mxu0 %v4174
  %4902 = vmatpush1.bf16.msra.mxu0 %v4173
  %4903 = vmatprep.subr.bf16.mxu0 %v4182
  %4904 = vmatpush1.bf16.msra.mxu0 %v4181
  %4905 = vmatprep.subr.bf16.mxu0 %v4190
  %4906 = vmatpush1.bf16.msra.mxu0 %v4189
  %4907 = vmatprep.subr.bf16.mxu0 %v4198
  %4908 = vmatpush1.bf16.msra.mxu0 %v4197
  %4909 = vmatprep.subr.bf16.mxu0 %v4206
  %4910 = vmatpush1.bf16.msra.mxu0 %v4205
  %4911 = vmatprep.subr.bf16.mxu0 %v4214
  %4912 = vmatpush1.bf16.msra.mxu0 %v4213
  %4913 = vmatprep.subr.bf16.mxu0 %v4222
  %4914 = vmatpush1.bf16.msra.mxu0 %v4221
  %4915 = vmatprep.subr.bf16.mxu0 %v4230
  %4916 = vmatpush1.bf16.msra.mxu0 %v4229
  %4917 = vmatprep.subr.bf16.mxu0 %v4238
  %4918 = vmatpush1.bf16.msra.mxu0 %v4237
  %4919 = vmatprep.subr.bf16.mxu0 %v4246
  %4920 = vmatpush1.bf16.msra.mxu0 %v4245
  %4921 = vmatprep.subr.bf16.mxu0 %v4254
  %4922 = vmatpush1.bf16.msra.mxu0 %v4253
  %4923 = vmatprep.subr.bf16.mxu0 %v4262
  %4924 = vmatpush1.bf16.msra.mxu0 %v4261
  %4925 = vmatprep.mubr.bf16.mxu0 %v3323
  %4926 = vmatmul.mubr.bf16.gmra.mrb[0].mxu0 %v3322
  %v4927 = vpop.f32.mrb[0].mxu0
  %v4928 = vadd.f32 %v3354, %v4927
  %v4929 = vpop.f32.mrb[0].mxu0
  %v4930 = vadd.f32 %v3358, %v4929
  %v4931 = vpop.f32.mrb[0].mxu0
  %v4932 = vpop.f32.mrb[0].mxu0
  %4933 = vdwg.mxu0
  %4934 = vmatprep.subr.bf16.mxu0 %v4270
  %4935 = vmatpush1.bf16.msra.mxu0 %v4269
  %4936 = vmatprep.subr.bf16.mxu0 %v4278
  %4937 = vmatpush1.bf16.msra.mxu0 %v4277
  %4938 = vmatprep.subr.bf16.mxu0 %v4286
  %4939 = vmatpush1.bf16.msra.mxu0 %v4285
  %4940 = vmatprep.subr.bf16.mxu0 %v4294
  %4941 = vmatpush1.bf16.msra.mxu0 %v4293
  %4942 = vmatprep.subr.bf16.mxu0 %v4302
  %4943 = vmatpush1.bf16.msra.mxu0 %v4301
  %4944 = vmatprep.subr.bf16.mxu0 %v4310
  %4945 = vmatpush1.bf16.msra.mxu0 %v4309
  %4946 = vmatprep.subr.bf16.mxu0 %v4318
  %4947 = vmatpush1.bf16.msra.mxu0 %v4317
  %4948 = vmatprep.subr.bf16.mxu0 %v4326
  %4949 = vmatpush1.bf16.msra.mxu0 %v4325
  %4950 = vmatprep.subr.bf16.mxu0 %v4334
  %4951 = vmatpush1.bf16.msra.mxu0 %v4333
  %4952 = vmatprep.subr.bf16.mxu0 %v4342
  %4953 = vmatpush1.bf16.msra.mxu0 %v4341
  %4954 = vmatprep.subr.bf16.mxu0 %v4350
  %4955 = vmatpush1.bf16.msra.mxu0 %v4349
  %4956 = vmatprep.subr.bf16.mxu0 %v4358
  %4957 = vmatpush1.bf16.msra.mxu0 %v4357
  %4958 = vmatprep.subr.bf16.mxu0 %v4366
  %4959 = vmatpush1.bf16.msra.mxu0 %v4365
  %4960 = vmatprep.subr.bf16.mxu0 %v4374
  %4961 = vmatpush1.bf16.msra.mxu0 %v4373
  %4962 = vmatprep.subr.bf16.mxu0 %v4382
  %4963 = vmatpush1.bf16.msra.mxu0 %v4381
  %4964 = vmatprep.subr.bf16.mxu0 %v4390
  %4965 = vmatpush1.bf16.msra.mxu0 %v4389
  %4966 = vmatprep.mubr.bf16.mxu0 %v3325
  %4967 = vmatmul.mubr.bf16.gmra.mrb[0].mxu0 %v3324
  %v4968 = vpop.f32.mrb[0].mxu0
  %v4969 = vadd.f32 %v4928, %v4968
  %v4970 = vpop.f32.mrb[0].mxu0
  %v4971 = vadd.f32 %v4930, %v4970
  %v4972 = vpop.f32.mrb[0].mxu0
  %v4973 = vpop.f32.mrb[0].mxu0
  %4974 = vdwg.mxu0
  %v4975 = vmax.f32 %v4723, 0.0
  %v4976 = vmax.f32 %v4725, 0.0
  %v4977 = vmax.f32 %v4805, 0.0
  %v4978 = vmax.f32 %v4807, 0.0
  %v4979 = vmax.f32 %v4887, 0.0
  %v4980 = vmax.f32 %v4889, 0.0
  %v4981 = vmax.f32 %v4969, 0.0
  %v4982 = vmax.f32 %v4971, 0.0
  %v4983 = vpack.c.bf16 %v4975, %v4975
  %v4984 = vpack.c.bf16 %v4976, %v4976
  %v4985 = vpack.c.bf16 %v4977, %v4977
  %v4986 = vpack.c.bf16 %v4978, %v4978
  %v4987 = vpack.c.bf16 %v4979, %v4979
  %v4988 = vpack.c.bf16 %v4980, %v4980
  %v4989 = vpack.c.bf16 %v4981, %v4981
  %v4990 = vpack.c.bf16 %v4982, %v4982
  %v4992 = vlaneseq
  %v4993 = vshrl.u32 %v4992, 7
  %v4994 = vsub.s32 0, %v4993
  %v4995 = vrot.slane %v885, %v4994
  %v5125 = vunpack.c.l.b16 %v757
  %v5126 = vunpack.c.l.b16 %v758
  %v5127 = vunpack.c.l.b16 %v759
  %v5128 = vunpack.c.l.b16 %v760
  %v5129 = vunpack.c.l.b16 %v761
  %v5130 = vunpack.c.l.b16 %v762
  %v5131 = vunpack.c.l.b16 %v763
  %v5132 = vunpack.c.l.b16 %v764
  %v5133 = vunpack.c.l.b16 %v765
  %v5134 = vunpack.c.l.b16 %v766
  %v5135 = vunpack.c.l.b16 %v767
  %v5136 = vunpack.c.l.b16 %v768
  %v5137 = vunpack.c.l.b16 %v769
  %v5138 = vunpack.c.l.b16 %v770
  %v5139 = vunpack.c.l.b16 %v771
  %v5140 = vunpack.c.l.b16 %v772
  %v5141 = vunpack.c.l.b16 %v773
  %v5142 = vunpack.c.l.b16 %v774
  %v5143 = vunpack.c.l.b16 %v775
  %v5144 = vunpack.c.l.b16 %v776
  %v5145 = vunpack.c.l.b16 %v777
  %v5146 = vunpack.c.l.b16 %v778
  %v5147 = vunpack.c.l.b16 %v779
  %v5148 = vunpack.c.l.b16 %v780
  %v5149 = vunpack.c.l.b16 %v781
  %v5150 = vunpack.c.l.b16 %v782
  %v5151 = vunpack.c.l.b16 %v783
  %v5152 = vunpack.c.l.b16 %v784
  %v5153 = vunpack.c.l.b16 %v785
  %v5154 = vunpack.c.l.b16 %v786
  %v5155 = vunpack.c.l.b16 %v787
  %v5156 = vunpack.c.l.b16 %v788
  %v5157 = vunpack.c.l.b16 %v789
  %v5158 = vunpack.c.l.b16 %v790
  %v5159 = vunpack.c.l.b16 %v791
  %v5160 = vunpack.c.l.b16 %v792
  %v5161 = vunpack.c.l.b16 %v793
  %v5162 = vunpack.c.l.b16 %v794
  %v5163 = vunpack.c.l.b16 %v795
  %v5164 = vunpack.c.l.b16 %v796
  %v5165 = vunpack.c.l.b16 %v797
  %v5166 = vunpack.c.l.b16 %v798
  %v5167 = vunpack.c.l.b16 %v799
  %v5168 = vunpack.c.l.b16 %v800
  %v5169 = vunpack.c.l.b16 %v801
  %v5170 = vunpack.c.l.b16 %v802
  %v5171 = vunpack.c.l.b16 %v803
  %v5172 = vunpack.c.l.b16 %v804
  %v5173 = vunpack.c.l.b16 %v805
  %v5174 = vunpack.c.l.b16 %v806
  %v5175 = vunpack.c.l.b16 %v807
  %v5176 = vunpack.c.l.b16 %v808
  %v5177 = vunpack.c.l.b16 %v809
  %v5178 = vunpack.c.l.b16 %v810
  %v5179 = vunpack.c.l.b16 %v811
  %v5180 = vunpack.c.l.b16 %v812
  %v5181 = vunpack.c.l.b16 %v813
  %v5182 = vunpack.c.l.b16 %v814
  %v5183 = vunpack.c.l.b16 %v815
  %v5184 = vunpack.c.l.b16 %v816
  %v5185 = vunpack.c.l.b16 %v817
  %v5186 = vunpack.c.l.b16 %v818
  %v5187 = vunpack.c.l.b16 %v819
  %v5188 = vunpack.c.l.b16 %v820
  %v5189 = vunpack.c.l.b16 %v821
  %v5190 = vunpack.c.l.b16 %v822
  %v5191 = vunpack.c.l.b16 %v823
  %v5192 = vunpack.c.l.b16 %v824
  %v5193 = vunpack.c.l.b16 %v825
  %v5194 = vunpack.c.l.b16 %v826
  %v5195 = vunpack.c.l.b16 %v827
  %v5196 = vunpack.c.l.b16 %v828
  %v5197 = vunpack.c.l.b16 %v829
  %v5198 = vunpack.c.l.b16 %v830
  %v5199 = vunpack.c.l.b16 %v831
  %v5200 = vunpack.c.l.b16 %v832
  %v5201 = vunpack.c.l.b16 %v833
  %v5202 = vunpack.c.l.b16 %v834
  %v5203 = vunpack.c.l.b16 %v835
  %v5204 = vunpack.c.l.b16 %v836
  %v5205 = vunpack.c.l.b16 %v837
  %v5206 = vunpack.c.l.b16 %v838
  %v5207 = vunpack.c.l.b16 %v839
  %v5208 = vunpack.c.l.b16 %v840
  %v5209 = vunpack.c.l.b16 %v841
  %v5210 = vunpack.c.l.b16 %v842
  %v5211 = vunpack.c.l.b16 %v843
  %v5212 = vunpack.c.l.b16 %v844
  %v5213 = vunpack.c.l.b16 %v845
  %v5214 = vunpack.c.l.b16 %v846
  %v5215 = vunpack.c.l.b16 %v847
  %v5216 = vunpack.c.l.b16 %v848
  %v5217 = vunpack.c.l.b16 %v849
  %v5218 = vunpack.c.l.b16 %v850
  %v5219 = vunpack.c.l.b16 %v851
  %v5220 = vunpack.c.l.b16 %v852
  %v5221 = vunpack.c.l.b16 %v853
  %v5222 = vunpack.c.l.b16 %v854
  %v5223 = vunpack.c.l.b16 %v855
  %v5224 = vunpack.c.l.b16 %v856
  %v5225 = vunpack.c.l.b16 %v857
  %v5226 = vunpack.c.l.b16 %v858
  %v5227 = vunpack.c.l.b16 %v859
  %v5228 = vunpack.c.l.b16 %v860
  %v5229 = vunpack.c.l.b16 %v861
  %v5230 = vunpack.c.l.b16 %v862
  %v5231 = vunpack.c.l.b16 %v863
  %v5232 = vunpack.c.l.b16 %v864
  %v5233 = vunpack.c.l.b16 %v865
  %v5234 = vunpack.c.l.b16 %v866
  %v5235 = vunpack.c.l.b16 %v867
  %v5236 = vunpack.c.l.b16 %v868
  %v5237 = vunpack.c.l.b16 %v869
  %v5238 = vunpack.c.l.b16 %v870
  %v5239 = vunpack.c.l.b16 %v871
  %v5240 = vunpack.c.l.b16 %v872
  %v5241 = vunpack.c.l.b16 %v873
  %v5242 = vunpack.c.l.b16 %v874
  %v5243 = vunpack.c.l.b16 %v875
  %v5244 = vunpack.c.l.b16 %v876
  %v5245 = vunpack.c.l.b16 %v877
  %v5246 = vunpack.c.l.b16 %v878
  %v5247 = vunpack.c.l.b16 %v879
  %v5248 = vunpack.c.l.b16 %v880
  %v5249 = vunpack.c.l.b16 %v881
  %v5250 = vunpack.c.l.b16 %v882
  %v5251 = vunpack.c.l.b16 %v883
  %v5252 = vunpack.c.l.b16 %v884
  %v5253 = vpack.c.b16 %v5126, %v5125
  %v5254 = vpack.c.b16 %v5128, %v5127
  %v5255 = vpack.c.b16 %v5130, %v5129
  %v5256 = vpack.c.b16 %v5132, %v5131
  %v5257 = vpack.c.b16 %v5134, %v5133
  %v5258 = vpack.c.b16 %v5136, %v5135
  %v5259 = vpack.c.b16 %v5138, %v5137
  %v5260 = vpack.c.b16 %v5140, %v5139
  %v5261 = vpack.c.b16 %v5142, %v5141
  %v5262 = vpack.c.b16 %v5144, %v5143
  %v5263 = vpack.c.b16 %v5146, %v5145
  %v5264 = vpack.c.b16 %v5148, %v5147
  %v5265 = vpack.c.b16 %v5150, %v5149
  %v5266 = vpack.c.b16 %v5152, %v5151
  %v5267 = vpack.c.b16 %v5154, %v5153
  %v5268 = vpack.c.b16 %v5156, %v5155
  %v5269 = vpack.c.b16 %v5158, %v5157
  %v5270 = vpack.c.b16 %v5160, %v5159
  %v5271 = vpack.c.b16 %v5162, %v5161
  %v5272 = vpack.c.b16 %v5164, %v5163
  %v5273 = vpack.c.b16 %v5166, %v5165
  %v5274 = vpack.c.b16 %v5168, %v5167
  %v5275 = vpack.c.b16 %v5170, %v5169
  %v5276 = vpack.c.b16 %v5172, %v5171
  %v5277 = vpack.c.b16 %v5174, %v5173
  %v5278 = vpack.c.b16 %v5176, %v5175
  %v5279 = vpack.c.b16 %v5178, %v5177
  %v5280 = vpack.c.b16 %v5180, %v5179
  %v5281 = vpack.c.b16 %v5182, %v5181
  %v5282 = vpack.c.b16 %v5184, %v5183
  %v5283 = vpack.c.b16 %v5186, %v5185
  %v5284 = vpack.c.b16 %v5188, %v5187
  %v5285 = vpack.c.b16 %v5190, %v5189
  %v5286 = vpack.c.b16 %v5192, %v5191
  %v5287 = vpack.c.b16 %v5194, %v5193
  %v5288 = vpack.c.b16 %v5196, %v5195
  %v5289 = vpack.c.b16 %v5198, %v5197
  %v5290 = vpack.c.b16 %v5200, %v5199
  %v5291 = vpack.c.b16 %v5202, %v5201
  %v5292 = vpack.c.b16 %v5204, %v5203
  %v5293 = vpack.c.b16 %v5206, %v5205
  %v5294 = vpack.c.b16 %v5208, %v5207
  %v5295 = vpack.c.b16 %v5210, %v5209
  %v5296 = vpack.c.b16 %v5212, %v5211
  %v5297 = vpack.c.b16 %v5214, %v5213
  %v5298 = vpack.c.b16 %v5216, %v5215
  %v5299 = vpack.c.b16 %v5218, %v5217
  %v5300 = vpack.c.b16 %v5220, %v5219
  %v5301 = vpack.c.b16 %v5222, %v5221
  %v5302 = vpack.c.b16 %v5224, %v5223
  %v5303 = vpack.c.b16 %v5226, %v5225
  %v5304 = vpack.c.b16 %v5228, %v5227
  %v5305 = vpack.c.b16 %v5230, %v5229
  %v5306 = vpack.c.b16 %v5232, %v5231
  %v5307 = vpack.c.b16 %v5234, %v5233
  %v5308 = vpack.c.b16 %v5236, %v5235
  %v5309 = vpack.c.b16 %v5238, %v5237
  %v5310 = vpack.c.b16 %v5240, %v5239
  %v5311 = vpack.c.b16 %v5242, %v5241
  %v5312 = vpack.c.b16 %v5244, %v5243
  %v5313 = vpack.c.b16 %v5246, %v5245
  %v5314 = vpack.c.b16 %v5248, %v5247
  %v5315 = vpack.c.b16 %v5250, %v5249
  %v5316 = vpack.c.b16 %v5252, %v5251
  %5381 = vmatprep.subr.bf16.mxu0 0
  %5382 = vmatpush1.bf16.msra.mxu0 %v5253
  %5383 = vmatprep.subr.bf16.mxu0 0
  %5384 = vmatpush1.bf16.msra.mxu0 %v5254
  %5385 = vmatprep.subr.bf16.mxu0 0
  %5386 = vmatpush1.bf16.msra.mxu0 %v5255
  %5387 = vmatprep.subr.bf16.mxu0 0
  %5388 = vmatpush1.bf16.msra.mxu0 %v5256
  %5389 = vmatprep.subr.bf16.mxu0 0
  %5390 = vmatpush1.bf16.msra.mxu0 %v5257
  %5391 = vmatprep.subr.bf16.mxu0 0
  %5392 = vmatpush1.bf16.msra.mxu0 %v5258
  %5393 = vmatprep.subr.bf16.mxu0 0
  %5394 = vmatpush1.bf16.msra.mxu0 %v5259
  %5395 = vmatprep.subr.bf16.mxu0 0
  %5396 = vmatpush1.bf16.msra.mxu0 %v5260
  %5397 = vmatprep.subr.bf16.mxu0 0
  %5398 = vmatpush1.bf16.msra.mxu0 %v5261
  %5399 = vmatprep.subr.bf16.mxu0 0
  %5400 = vmatpush1.bf16.msra.mxu0 %v5262
  %5401 = vmatprep.subr.bf16.mxu0 0
  %5402 = vmatpush1.bf16.msra.mxu0 %v5263
  %5403 = vmatprep.subr.bf16.mxu0 0
  %5404 = vmatpush1.bf16.msra.mxu0 %v5264
  %5405 = vmatprep.subr.bf16.mxu0 0
  %5406 = vmatpush1.bf16.msra.mxu0 %v5265
  %5407 = vmatprep.subr.bf16.mxu0 0
  %5408 = vmatpush1.bf16.msra.mxu0 %v5266
  %5409 = vmatprep.subr.bf16.mxu0 0
  %5410 = vmatpush1.bf16.msra.mxu0 %v5267
  %5411 = vmatprep.subr.bf16.mxu0 0
  %5412 = vmatpush1.bf16.msra.mxu0 %v5268
  %5413 = vmatprep.mubr.bf16.mxu0 %v4984
  %5414 = vmatmul.mubr.bf16.gmra.mrb[0].mxu0 %v4983
  %v5415 = vpop.f32.mrb[0].mxu0
  %v5416 = vadd.f32 %v4995, %v5415
  %v5417 = vpop.f32.mrb[0].mxu0
  %v5418 = vpop.f32.mrb[0].mxu0
  %v5419 = vpop.f32.mrb[0].mxu0
  %5420 = vdwg.mxu0
  %5421 = vmatprep.subr.bf16.mxu0 0
  %5422 = vmatpush1.bf16.msra.mxu0 %v5269
  %5423 = vmatprep.subr.bf16.mxu0 0
  %5424 = vmatpush1.bf16.msra.mxu0 %v5270
  %5425 = vmatprep.subr.bf16.mxu0 0
  %5426 = vmatpush1.bf16.msra.mxu0 %v5271
  %5427 = vmatprep.subr.bf16.mxu0 0
  %5428 = vmatpush1.bf16.msra.mxu0 %v5272
  %5429 = vmatprep.subr.bf16.mxu0 0
  %5430 = vmatpush1.bf16.msra.mxu0 %v5273
  %5431 = vmatprep.subr.bf16.mxu0 0
  %5432 = vmatpush1.bf16.msra.mxu0 %v5274
  %5433 = vmatprep.subr.bf16.mxu0 0
  %5434 = vmatpush1.bf16.msra.mxu0 %v5275
  %5435 = vmatprep.subr.bf16.mxu0 0
  %5436 = vmatpush1.bf16.msra.mxu0 %v5276
  %5437 = vmatprep.subr.bf16.mxu0 0
  %5438 = vmatpush1.bf16.msra.mxu0 %v5277
  %5439 = vmatprep.subr.bf16.mxu0 0
  %5440 = vmatpush1.bf16.msra.mxu0 %v5278
  %5441 = vmatprep.subr.bf16.mxu0 0
  %5442 = vmatpush1.bf16.msra.mxu0 %v5279
  %5443 = vmatprep.subr.bf16.mxu0 0
  %5444 = vmatpush1.bf16.msra.mxu0 %v5280
  %5445 = vmatprep.subr.bf16.mxu0 0
  %5446 = vmatpush1.bf16.msra.mxu0 %v5281
  %5447 = vmatprep.subr.bf16.mxu0 0
  %5448 = vmatpush1.bf16.msra.mxu0 %v5282
  %5449 = vmatprep.subr.bf16.mxu0 0
  %5450 = vmatpush1.bf16.msra.mxu0 %v5283
  %5451 = vmatprep.subr.bf16.mxu0 0
  %5452 = vmatpush1.bf16.msra.mxu0 %v5284
  %5453 = vmatprep.mubr.bf16.mxu0 %v4986
  %5454 = vmatmul.mubr.bf16.gmra.mrb[0].mxu0 %v4985
  %v5455 = vpop.f32.mrb[0].mxu0
  %v5456 = vadd.f32 %v5416, %v5455
  %v5457 = vpop.f32.mrb[0].mxu0
  %v5458 = vpop.f32.mrb[0].mxu0
  %v5459 = vpop.f32.mrb[0].mxu0
  %5460 = vdwg.mxu0
  %5461 = vmatprep.subr.bf16.mxu0 0
  %5462 = vmatpush1.bf16.msra.mxu0 %v5285
  %5463 = vmatprep.subr.bf16.mxu0 0
  %5464 = vmatpush1.bf16.msra.mxu0 %v5286
  %5465 = vmatprep.subr.bf16.mxu0 0
  %5466 = vmatpush1.bf16.msra.mxu0 %v5287
  %5467 = vmatprep.subr.bf16.mxu0 0
  %5468 = vmatpush1.bf16.msra.mxu0 %v5288
  %5469 = vmatprep.subr.bf16.mxu0 0
  %5470 = vmatpush1.bf16.msra.mxu0 %v5289
  %5471 = vmatprep.subr.bf16.mxu0 0
  %5472 = vmatpush1.bf16.msra.mxu0 %v5290
  %5473 = vmatprep.subr.bf16.mxu0 0
  %5474 = vmatpush1.bf16.msra.mxu0 %v5291
  %5475 = vmatprep.subr.bf16.mxu0 0
  %5476 = vmatpush1.bf16.msra.mxu0 %v5292
  %5477 = vmatprep.subr.bf16.mxu0 0
  %5478 = vmatpush1.bf16.msra.mxu0 %v5293
  %5479 = vmatprep.subr.bf16.mxu0 0
  %5480 = vmatpush1.bf16.msra.mxu0 %v5294
  %5481 = vmatprep.subr.bf16.mxu0 0
  %5482 = vmatpush1.bf16.msra.mxu0 %v5295
  %5483 = vmatprep.subr.bf16.mxu0 0
  %5484 = vmatpush1.bf16.msra.mxu0 %v5296
  %5485 = vmatprep.subr.bf16.mxu0 0
  %5486 = vmatpush1.bf16.msra.mxu0 %v5297
  %5487 = vmatprep.subr.bf16.mxu0 0
  %5488 = vmatpush1.bf16.msra.mxu0 %v5298
  %5489 = vmatprep.subr.bf16.mxu0 0
  %5490 = vmatpush1.bf16.msra.mxu0 %v5299
  %5491 = vmatprep.subr.bf16.mxu0 0
  %5492 = vmatpush1.bf16.msra.mxu0 %v5300
  %5493 = vmatprep.mubr.bf16.mxu0 %v4988
  %5494 = vmatmul.mubr.bf16.gmra.mrb[0].mxu0 %v4987
  %v5495 = vpop.f32.mrb[0].mxu0
  %v5496 = vadd.f32 %v5456, %v5495
  %v5497 = vpop.f32.mrb[0].mxu0
  %v5498 = vpop.f32.mrb[0].mxu0
  %v5499 = vpop.f32.mrb[0].mxu0
  %5500 = vdwg.mxu0
  %5501 = vmatprep.subr.bf16.mxu0 0
  %5502 = vmatpush1.bf16.msra.mxu0 %v5301
  %5503 = vmatprep.subr.bf16.mxu0 0
  %5504 = vmatpush1.bf16.msra.mxu0 %v5302
  %5505 = vmatprep.subr.bf16.mxu0 0
  %5506 = vmatpush1.bf16.msra.mxu0 %v5303
  %5507 = vmatprep.subr.bf16.mxu0 0
  %5508 = vmatpush1.bf16.msra.mxu0 %v5304
  %5509 = vmatprep.subr.bf16.mxu0 0
  %5510 = vmatpush1.bf16.msra.mxu0 %v5305
  %5511 = vmatprep.subr.bf16.mxu0 0
  %5512 = vmatpush1.bf16.msra.mxu0 %v5306
  %5513 = vmatprep.subr.bf16.mxu0 0
  %5514 = vmatpush1.bf16.msra.mxu0 %v5307
  %5515 = vmatprep.subr.bf16.mxu0 0
  %5516 = vmatpush1.bf16.msra.mxu0 %v5308
  %5517 = vmatprep.subr.bf16.mxu0 0
  %5518 = vmatpush1.bf16.msra.mxu0 %v5309
  %5519 = vmatprep.subr.bf16.mxu0 0
  %5520 = vmatpush1.bf16.msra.mxu0 %v5310
  %5521 = vmatprep.subr.bf16.mxu0 0
  %5522 = vmatpush1.bf16.msra.mxu0 %v5311
  %5523 = vmatprep.subr.bf16.mxu0 0
  %5524 = vmatpush1.bf16.msra.mxu0 %v5312
  %5525 = vmatprep.subr.bf16.mxu0 0
  %5526 = vmatpush1.bf16.msra.mxu0 %v5313
  %5527 = vmatprep.subr.bf16.mxu0 0
  %5528 = vmatpush1.bf16.msra.mxu0 %v5314
  %5529 = vmatprep.subr.bf16.mxu0 0
  %5530 = vmatpush1.bf16.msra.mxu0 %v5315
  %5531 = vmatprep.subr.bf16.mxu0 0
  %5532 = vmatpush1.bf16.msra.mxu0 %v5316
  %5533 = vmatprep.mubr.bf16.mxu0 %v4990
  %5534 = vmatmul.mubr.bf16.gmra.mrb[0].mxu0 %v4989
  %v5535 = vpop.f32.mrb[0].mxu0
  %v5536 = vadd.f32 %v5496, %v5535
  %v5537 = vpop.f32.mrb[0].mxu0
  %v5538 = vpop.f32.mrb[0].mxu0
  %v5539 = vpop.f32.mrb[0].mxu0
  %5540 = vdwg.mxu0
  %v5541 = vxor.u32 %v5536, 2147483648
  %v5542 = vmul.f32 %v5541, 1.442695
  %v5543 = vpow.pop %v5542
  %v5544 = vadd.f32 %v5543, 1.0
  %v5545 = vrcp.pop %v5544
  %v5546 = vmul.f32 1.0, %v5545
  %5547 = vst [vmem:[%s95] sm:$0xff] %v5546
  // Predicated region
  $region186: #{generator_forward.1} parent=0 // pred_check
    _
  $region187: #{generator_forward.1} parent=0 // pred_check_branch
    %5549 = sbr.rel (0) target = $region189
  $region188: #{generator_forward.1} parent=0 // pred_region
    _
  $region189: #{generator_forward.1} parent=0 // pred_fallthru
    _
  // Predicated region
  $region190: #{generator_forward.1} parent=0 // pred_check
    _
  $region191: #{generator_forward.1} parent=0 // pred_check_branch
    %5551 = sbr.rel (0) target = $region193
  $region192: #{generator_forward.1} parent=0 // pred_region
    _
  $region193: #{generator_forward.1} parent=0 // pred_fallthru
    _
  // Predicated region
  $region194: #{generator_forward.1} parent=0 // pred_check
    _
  $region195: #{generator_forward.1} parent=0 // pred_check_branch
    %5553 = sbr.rel (0) target = $region197
  $region196: #{generator_forward.1} parent=0 // pred_region
    _
  $region197: #{generator_forward.1} parent=0 // pred_fallthru
    _
  // Predicated region
  $region198: #{generator_forward.1} parent=0 // pred_check
    _
  $region199: #{generator_forward.1} parent=0 // pred_check_branch
    %5555 = sbr.rel (0) target = $region201
  $region200: #{generator_forward.1} parent=0 // pred_region
    _
  $region201: #{generator_forward.1} parent=0 // pred_fallthru
    _

</llo_original>
